<compile_context>
chip_gen: v5e
topology: v5e:2x2
jax: 0.10.0
libtpu: 0.0.40
codegen_flags: <defaults>
</compile_context>

<pallas_src>
import functools

import jax
import jax.numpy as jnp
import numpy as np
from jax.experimental import pallas as pl
from jax.experimental.pallas import tpu as pltpu


def _round_up(a, m):
    return (a + m - 1) // m * m


def lstm_kernel(len_ref, gin_ref, whh_hbm, y_ref, hn_ref, cn_ref, whh_vmem,
                *, tb, hp):
    """One grid step == (one batch tile, one block of `tb` LSTM timesteps)."""
    tblk = pl.program_id(1)                   # time-block index (sequential)

    @pl.when(tblk == 0)
    def _():
        # Loop-invariant recurrent weights: DMA once into a single VMEM copy
        # instead of letting a BlockSpec double-buffer them every grid step.
        pltpu.sync_copy(whh_hbm, whh_vmem)
        # h=None in the PyTorch forward -> zero initial state.
        hn_ref[...] = jnp.zeros_like(hn_ref)
        cn_ref[...] = jnp.zeros_like(cn_ref)

    lens = len_ref[...]                       # (BN, 1) int32

    def step(i, carry):
        h, c = carry                          # (BN, Hp) f32
        h_bf = h.astype(jnp.bfloat16)         # MXU input; state math stays f32

        def gate_pre(k):
            # bf16 G (precomputed x@W_ih^T + b_ih + b_hh) + bf16 recurrent
            # matmul with f32 accumulation.  Per-gate slices are lane-aligned
            # (Hp is a multiple of 128); splitting into 4 matmuls keeps the
            # live f32 intermediate Hp wide instead of 4*Hp.
            g_k = gin_ref[i, :, pl.ds(k * hp, hp)]
            w_k = whh_vmem[:, pl.ds(k * hp, hp)]
            return g_k + jnp.dot(h_bf, w_k, preferred_element_type=jnp.float32)

        # torch.nn.LSTM gate order [i, f, g, o].
        i_g = jax.nn.sigmoid(gate_pre(0))
        f_g = jax.nn.sigmoid(gate_pre(1))
        g_g = jnp.tanh(gate_pre(2))
        o_g = jax.nn.sigmoid(gate_pre(3))

        c_new = f_g * c + i_g * g_g
        h_new = o_g * jnp.tanh(c_new)

        # pack_padded_sequence semantics: padded timesteps (t >= length[b])
        # neither update the state nor contribute to the output.
        t_abs = tblk * tb + i
        valid = t_abs < lens                  # (BN, 1) bool -> vselect
        h = jnp.where(valid, h_new, h)
        c = jnp.where(valid, c_new, c)
        y_ref[i] = jnp.where(valid, h_new, 0.0).astype(y_ref.dtype)
        return h, c

    h, c = jax.lax.fori_loop(0, tb, step, (hn_ref[...], cn_ref[...]),
                             unroll=True)
    hn_ref[...] = h
    cn_ref[...] = c


@functools.partial(jax.jit, static_argnames=("tb", "bn"))
def batch_rnn_forward(x, output_lengths, w_ih, w_hh, b_ih, b_hh, *, tb=8, bn=8):
    """Forward of BatchRNN(input_size, hidden_size) with default flags.

    x:              (T, N, input_size) float32  (time-major, like torch RNNs)
    output_lengths: (N,) int sequence lengths
    w_ih: (4H, I), w_hh: (4H, H), b_ih/b_hh: (4H,)   (torch.nn.LSTM params)
    Returns (y, (h_n, c_n)) with y:(T,N,H), h_n/c_n:(1,N,H).
    """
    assert bn % 8 == 0, "batch tile must be a multiple of 8 sublanes"
    T, N, I = x.shape
    H = w_hh.shape[1]

    Hp = _round_up(H, 128)               # lane alignment
    Np = _round_up(max(N, bn), bn)       # batch-tile (and sublane) alignment
    Tp = _round_up(T, tb)                # whole number of timestep blocks

    # ---- hoisted input projection: one large bf16 MXU matmul, f32 accum ----
    g_in = jnp.einsum("tni,gi->tng",
                      x.astype(jnp.bfloat16), w_ih.astype(jnp.bfloat16),
                      preferred_element_type=jnp.float32)
    g_in = g_in + (b_ih + b_hh)[None, None, :]
    # gate-aligned, padded layout: (T, N, 4, H) -> (Tp, Np, 4*Hp), stored bf16
    g_in = g_in.reshape(T, N, 4, H)
    g_in = jnp.pad(g_in, ((0, Tp - T), (0, Np - N), (0, 0), (0, Hp - H)))
    g_in = g_in.reshape(Tp, Np, 4 * Hp).astype(jnp.bfloat16)

    # Recurrent weight W_hh^T in the same gate-block layout, bf16 for the MXU.
    w4 = w_hh.reshape(4, H, H)                                   # [gate, j, k]
    w4 = jnp.pad(w4, ((0, 0), (0, Hp - H), (0, Hp - H)))
    whh_t = jnp.transpose(w4, (2, 0, 1)).reshape(Hp, 4 * Hp)     # (Hp, 4*Hp)
    whh_t = whh_t.astype(jnp.bfloat16)

    # Padded batch rows get length 0 -> always masked.
    lens = jnp.zeros((Np,), jnp.int32).at[:N].set(
        output_lengths.astype(jnp.int32)).reshape(Np, 1)

    # VMEM budget: G dbl-buffer + y dbl-buffer + single W_hh copy + state.
    y_itemsize = jnp.dtype(x.dtype).itemsize
    vmem_needed = (2 * tb * bn * 4 * Hp * 2        # G blocks (bf16), dbl-buf
                   + 2 * tb * bn * Hp * y_itemsize  # y blocks, dbl-buf
                   + Hp * 4 * Hp * 2                # W_hh^T scratch (single)
                   + 2 * bn * Hp * 4                # h_n / c_n state blocks
                   + 4 * bn * 128 * 4)              # lens blocks (lane-padded)
    vmem_limit = int(min(max(2 * vmem_needed + (4 << 20), 32 << 20), 64 << 20))

    grid = (Np // bn, Tp // tb)

    y_p, hn_p, cn_p = pl.pallas_call(
        functools.partial(lstm_kernel, tb=tb, hp=Hp),
        out_shape=(
            jax.ShapeDtypeStruct((Tp, Np, Hp), x.dtype),
            jax.ShapeDtypeStruct((Np, Hp), jnp.float32),
            jax.ShapeDtypeStruct((Np, Hp), jnp.float32),
        ),
        grid_spec=pltpu.PrefetchScalarGridSpec(
            num_scalar_prefetch=0,
            grid=grid,
            in_specs=[
                pl.BlockSpec((bn, 1), lambda nb, tk: (nb, 0)),               # lengths
                pl.BlockSpec((tb, bn, 4 * Hp), lambda nb, tk: (tk, nb, 0)),  # G block
                pl.BlockSpec(memory_space=pl.ANY),                           # W_hh^T (HBM)
            ],
            out_specs=(
                pl.BlockSpec((tb, bn, Hp), lambda nb, tk: (tk, nb, 0)),      # y block
                pl.BlockSpec((bn, Hp), lambda nb, tk: (nb, 0)),              # h_n (state)
                pl.BlockSpec((bn, Hp), lambda nb, tk: (nb, 0)),              # c_n (state)
            ),
            scratch_shapes=[pltpu.VMEM((Hp, 4 * Hp), jnp.bfloat16)],          # W_hh^T copy
        ),
        compiler_params=pltpu.CompilerParams(
            # batch tiles are independent (megacore sharding on v7x);
            # the time-block axis carries the recurrence -> sequential.
            dimension_semantics=("parallel", "arbitrary"),
            vmem_limit_bytes=vmem_limit,
        ),
    )(lens, g_in, whh_t)

    y = y_p[:T, :N, :H]
    h_n = hn_p[:N, :H]
    c_n = cn_p[:N, :H]
    return y, (h_n[None], c_n[None])


def lstm_reference(x, output_lengths, w_ih, w_hh, b_ih, b_hh):
    """Pure-JAX f32 reference with pack_padded masking semantics."""
    T, N, I = x.shape
    H = w_hh.shape[1]
    bias = b_ih + b_hh

    def step(carry, xt):
        h, c, t = carry
        gates = xt @ w_ih.T + h @ w_hh.T + bias
        i_g = jax.nn.sigmoid(gates[:, 0 * H:1 * H])
        f_g = jax.nn.sigmoid(gates[:, 1 * H:2 * H])
        g_g = jnp.tanh(gates[:, 2 * H:3 * H])
        o_g = jax.nn.sigmoid(gates[:, 3 * H:4 * H])
        c_new = f_g * c + i_g * g_g
        h_new = o_g * jnp.tanh(c_new)
        valid = (t < output_lengths)[:, None]
        h = jnp.where(valid, h_new, h)
        c = jnp.where(valid, c_new, c)
        y = jnp.where(valid, h_new, 0.0)
        return (h, c, t + 1), y

    init = (jnp.zeros((N, H), jnp.float32),
            jnp.zeros((N, H), jnp.float32),
            jnp.int32(0))
    (h, c, _), ys = jax.lax.scan(step, init, x)
    return ys, h, c


if __name__ == "__main__":
    T, N, I, H = 12, 3, 16, 32     # seq=12, batch=3, input_size=16, hidden_size=32

    key = jax.random.PRNGKey(0)
    k_x, k_wih, k_whh, k_bih, k_bhh = jax.random.split(key, 5)
    std = 1.0 / jnp.sqrt(jnp.float32(H))   # torch.nn.LSTM init range

    x = jax.random.normal(k_x, (T, N, I), jnp.float32)
    w_ih = jax.random.uniform(k_wih, (4 * H, I), jnp.float32, -std, std)
    w_hh = jax.random.uniform(k_whh, (4 * H, H), jnp.float32, -std, std)
    b_ih = jax.random.uniform(k_bih, (4 * H,), jnp.float32, -std, std)
    b_hh = jax.random.uniform(k_bhh, (4 * H,), jnp.float32, -std, std)
    output_lengths = jnp.array([12, 7, 3], dtype=jnp.int32)

    y, (h_n, c_n) = batch_rnn_forward(x, output_lengths, w_ih, w_hh, b_ih, b_hh,
                                      tb=8, bn=8)
    jax.block_until_ready((y, h_n, c_n))

    assert y.shape == (T, N, H)
    assert h_n.shape == (1, N, H) and c_n.shape == (1, N, H)

    # Correctness vs. the f32 reference (the kernel uses bf16 for the hoisted
    # projection, the stored G stream, and h @ W_hh^T, so a loose tolerance).
    y_ref, h_ref, c_ref = lstm_reference(x, output_lengths, w_ih, w_hh, b_ih, b_hh)
    np.testing.assert_allclose(np.asarray(y), np.asarray(y_ref), atol=3e-2, rtol=3e-2)
    np.testing.assert_allclose(np.asarray(h_n[0]), np.asarray(h_ref), atol=3e-2, rtol=3e-2)
    np.testing.assert_allclose(np.asarray(c_n[0]), np.asarray(c_ref), atol=3e-2, rtol=3e-2)

    print("KERNEL_OK")
</pallas_src>

<mosaic_0001>
module attributes {stable_mosaic.version = 11 : i64} {
  func.func @lstm_kernel(%arg0: i32, %arg1: i32, %arg2: memref<8x1xi32, #tpu.memory_space<vmem>>, %arg3: memref<8x8x512xbf16, #tpu.memory_space<vmem>>, %arg4: memref<128x512xbf16, #tpu.memory_space<any>>, %arg5: memref<8x8x128xf32, #tpu.memory_space<vmem>>, %arg6: memref<8x128xf32, #tpu.memory_space<vmem>>, %arg7: memref<8x128xf32, #tpu.memory_space<vmem>>, %arg8: memref<128x512xbf16, #tpu.memory_space<vmem>>) attributes {dimension_semantics = [#tpu.dimension_semantics<parallel>, #tpu.dimension_semantics<arbitrary>], iteration_bounds = array<i64: 1, 2>, scalar_prefetch = 0 : i64, scratch_operands = 1 : i64, tpu.core_type = #tpu.core_type<tc>, window_params = [{transform_indices = @transform_0, window_bounds = array<i64: 8, 1>}, {transform_indices = @transform_1, window_bounds = array<i64: 8, 8, 512>}, {}, {transform_indices = @transform_3, window_bounds = array<i64: 8, 8, 128>}, {transform_indices = @transform_4, window_bounds = array<i64: 8, 128>}, {transform_indices = @transform_5, window_bounds = array<i64: 8, 128>}]} {
    %c0_i32 = arith.constant 0 : i32
    %0 = arith.cmpi eq, %arg1, %c0_i32 : i32
    %1 = arith.extui %0 : i1 to i32
    %c0_i32_0 = arith.constant 0 : i32
    %2 = arith.cmpi ne, %1, %c0_i32_0 : i32
    scf.if %2 {
      "tpu.region"() ({
        %556 = tpu.sem_alloc : memref<!tpu.dma_semaphore, #tpu.memory_space<semaphore_mem>>
        tpu.enqueue_dma source(%arg4 : memref<128x512xbf16, #tpu.memory_space<any>>) target(%arg8 : memref<128x512xbf16, #tpu.memory_space<vmem>>) target_semaphore(%556 : memref<!tpu.dma_semaphore, #tpu.memory_space<semaphore_mem>>)
        tpu.wait_dma2 semaphore(%556 : memref<!tpu.dma_semaphore, #tpu.memory_space<semaphore_mem>>) src(%arg4 : memref<128x512xbf16, #tpu.memory_space<any>>) dst(%arg8 : memref<128x512xbf16, #tpu.memory_space<vmem>>)
        tpu.yield
      }) : () -> ()
      %cst_223 = arith.constant 0.000000e+00 : f32
      %552 = vector.broadcast %cst_223 : f32 to vector<8x128xf32>
      %c0_224 = arith.constant 0 : index
      %c0_225 = arith.constant 0 : index
      %553 = vector.load %arg6[%c0_224, %c0_225] : memref<8x128xf32, #tpu.memory_space<vmem>>, vector<8x128xf32>
      tpu.vector_store %arg6[%c0_224, %c0_225], %552 {strides = array<i32>} : memref<8x128xf32, #tpu.memory_space<vmem>>, vector<8x128xf32>,
      %cst_226 = arith.constant 0.000000e+00 : f32
      %554 = vector.broadcast %cst_226 : f32 to vector<8x128xf32>
      %c0_227 = arith.constant 0 : index
      %c0_228 = arith.constant 0 : index
      %555 = vector.load %arg7[%c0_227, %c0_228] : memref<8x128xf32, #tpu.memory_space<vmem>>, vector<8x128xf32>
      tpu.vector_store %arg7[%c0_227, %c0_228], %554 {strides = array<i32>} : memref<8x128xf32, #tpu.memory_space<vmem>>, vector<8x128xf32>,
    } else {
    }
    %c0 = arith.constant 0 : index
    %c0_1 = arith.constant 0 : index
    %3 = vector.load %arg2[%c0, %c0_1] : memref<8x1xi32, #tpu.memory_space<vmem>>, vector<8x1xi32>
    %c0_2 = arith.constant 0 : index
    %c0_3 = arith.constant 0 : index
    %4 = vector.load %arg6[%c0_2, %c0_3] : memref<8x128xf32, #tpu.memory_space<vmem>>, vector<8x128xf32>
    %c0_4 = arith.constant 0 : index
    %c0_5 = arith.constant 0 : index
    %5 = vector.load %arg7[%c0_4, %c0_5] : memref<8x128xf32, #tpu.memory_space<vmem>>, vector<8x128xf32>
    %c0_i32_6 = arith.constant 0 : i32
    %6 = arith.truncf %4 : vector<8x128xf32> to vector<8x128xbf16>
    %7 = arith.index_cast %c0_i32_6 : i32 to index
    %c0_7 = arith.constant 0 : index
    %c0_8 = arith.constant 0 : index
    %8 = vector.load %arg3[%7, %c0_7, %c0_8] : memref<8x8x512xbf16, #tpu.memory_space<vmem>>, vector<1x8x128xbf16>
    %9 = vector.shape_cast %8 : vector<1x8x128xbf16> to vector<8x128xbf16>
    %c0_9 = arith.constant 0 : index
    %c0_10 = arith.constant 0 : index
    %10 = vector.load %arg8[%c0_9, %c0_10] : memref<128x512xbf16, #tpu.memory_space<vmem>>, vector<128x128xbf16>
    %cst = arith.constant dense<0.000000e+00> : vector<8x128xf32>
    %11 = tpu.matmul %6, %10, %cst {dimension_numbers = #tpu.dot_dimension_numbers<[1], [0], [0], [1], [0, 0, 1, 1], [], []>} : vector<8x128xbf16>, vector<128x128xbf16>, vector<8x128xf32> -> vector<8x128xf32>
    %12 = arith.extf %9 : vector<8x128xbf16> to vector<8x128xf32>
    %13 = arith.addf %12, %11 : vector<8x128xf32>
    %14 = arith.negf %13 : vector<8x128xf32>
    %15 = math.exp %14 : vector<8x128xf32>
    %cst_11 = arith.constant 1.000000e+00 : f32
    %16 = vector.broadcast %cst_11 : f32 to vector<8x128xf32>
    %17 = arith.addf %16, %15 : vector<8x128xf32>
    %18 = arith.divf %16, %17 : vector<8x128xf32>
    %19 = arith.index_cast %c0_i32_6 : i32 to index
    %c0_12 = arith.constant 0 : index
    %c128 = arith.constant 128 : index
    %20 = vector.load %arg3[%19, %c0_12, %c128] : memref<8x8x512xbf16, #tpu.memory_space<vmem>>, vector<1x8x128xbf16>
    %21 = vector.shape_cast %20 : vector<1x8x128xbf16> to vector<8x128xbf16>
    %c0_13 = arith.constant 0 : index
    %c128_14 = arith.constant 128 : index
    %22 = vector.load %arg8[%c0_13, %c128_14] : memref<128x512xbf16, #tpu.memory_space<vmem>>, vector<128x128xbf16>
    %cst_15 = arith.constant dense<0.000000e+00> : vector<8x128xf32>
    %23 = tpu.matmul %6, %22, %cst_15 {dimension_numbers = #tpu.dot_dimension_numbers<[1], [0], [0], [1], [0, 0, 1, 1], [], []>} : vector<8x128xbf16>, vector<128x128xbf16>, vector<8x128xf32> -> vector<8x128xf32>
    %24 = arith.extf %21 : vector<8x128xbf16> to vector<8x128xf32>
    %25 = arith.addf %24, %23 : vector<8x128xf32>
    %26 = arith.negf %25 : vector<8x128xf32>
    %27 = math.exp %26 : vector<8x128xf32>
    %cst_16 = arith.constant 1.000000e+00 : f32
    %28 = vector.broadcast %cst_16 : f32 to vector<8x128xf32>
    %29 = arith.addf %28, %27 : vector<8x128xf32>
    %30 = arith.divf %28, %29 : vector<8x128xf32>
    %31 = arith.index_cast %c0_i32_6 : i32 to index
    %c0_17 = arith.constant 0 : index
    %c256 = arith.constant 256 : index
    %32 = vector.load %arg3[%31, %c0_17, %c256] : memref<8x8x512xbf16, #tpu.memory_space<vmem>>, vector<1x8x128xbf16>
    %33 = vector.shape_cast %32 : vector<1x8x128xbf16> to vector<8x128xbf16>
    %c0_18 = arith.constant 0 : index
    %c256_19 = arith.constant 256 : index
    %34 = vector.load %arg8[%c0_18, %c256_19] : memref<128x512xbf16, #tpu.memory_space<vmem>>, vector<128x128xbf16>
    %cst_20 = arith.constant dense<0.000000e+00> : vector<8x128xf32>
    %35 = tpu.matmul %6, %34, %cst_20 {dimension_numbers = #tpu.dot_dimension_numbers<[1], [0], [0], [1], [0, 0, 1, 1], [], []>} : vector<8x128xbf16>, vector<128x128xbf16>, vector<8x128xf32> -> vector<8x128xf32>
    %36 = arith.extf %33 : vector<8x128xbf16> to vector<8x128xf32>
    %37 = arith.addf %36, %35 : vector<8x128xf32>
    %38 = math.tanh %37 : vector<8x128xf32>
    %39 = arith.index_cast %c0_i32_6 : i32 to index
    %c0_21 = arith.constant 0 : index
    %c384 = arith.constant 384 : index
    %40 = vector.load %arg3[%39, %c0_21, %c384] : memref<8x8x512xbf16, #tpu.memory_space<vmem>>, vector<1x8x128xbf16>
    %41 = vector.shape_cast %40 : vector<1x8x128xbf16> to vector<8x128xbf16>
    %c0_22 = arith.constant 0 : index
    %c384_23 = arith.constant 384 : index
    %42 = vector.load %arg8[%c0_22, %c384_23] : memref<128x512xbf16, #tpu.memory_space<vmem>>, vector<128x128xbf16>
    %cst_24 = arith.constant dense<0.000000e+00> : vector<8x128xf32>
    %43 = tpu.matmul %6, %42, %cst_24 {dimension_numbers = #tpu.dot_dimension_numbers<[1], [0], [0], [1], [0, 0, 1, 1], [], []>} : vector<8x128xbf16>, vector<128x128xbf16>, vector<8x128xf32> -> vector<8x128xf32>
    %44 = arith.extf %41 : vector<8x128xbf16> to vector<8x128xf32>
    %45 = arith.addf %44, %43 : vector<8x128xf32>
    %46 = arith.negf %45 : vector<8x128xf32>
    %47 = math.exp %46 : vector<8x128xf32>
    %cst_25 = arith.constant 1.000000e+00 : f32
    %48 = vector.broadcast %cst_25 : f32 to vector<8x128xf32>
    %49 = arith.addf %48, %47 : vector<8x128xf32>
    %50 = arith.divf %48, %49 : vector<8x128xf32>
    %51 = arith.mulf %30, %5 : vector<8x128xf32>
    %52 = arith.mulf %18, %38 : vector<8x128xf32>
    %53 = arith.addf %51, %52 : vector<8x128xf32>
    %54 = math.tanh %53 : vector<8x128xf32>
    %55 = arith.mulf %50, %54 : vector<8x128xf32>
    %c8_i32 = arith.constant 8 : i32
    %56 = arith.muli %arg1, %c8_i32 : i32
    %57 = arith.addi %56, %c0_i32_6 : i32
    %58 = vector.broadcast %57 : i32 to vector<8x1xi32>
    %59 = arith.cmpi slt, %58, %3 : vector<8x1xi32>
    %60 = vector.shape_cast %59 : vector<8x1xi1> to vector<8x1xi1>
    %61 = vector.broadcast %60 : vector<8x1xi1> to vector<8x128xi1>
    %62 = arith.select %61, %55, %4 : vector<8x128xi1>, vector<8x128xf32>
    %63 = vector.shape_cast %59 : vector<8x1xi1> to vector<8x1xi1>
    %64 = vector.broadcast %63 : vector<8x1xi1> to vector<8x128xi1>
    %65 = arith.select %64, %53, %5 : vector<8x128xi1>, vector<8x128xf32>
    %cst_26 = arith.constant 0.000000e+00 : f32
    %66 = vector.shape_cast %59 : vector<8x1xi1> to vector<8x1xi1>
    %67 = vector.broadcast %66 : vector<8x1xi1> to vector<8x128xi1>
    %68 = vector.broadcast %cst_26 : f32 to vector<8x128xf32>
    %69 = arith.select %67, %55, %68 : vector<8x128xi1>, vector<8x128xf32>
    %70 = arith.index_cast %c0_i32_6 : i32 to index
    %c0_27 = arith.constant 0 : index
    %c0_28 = arith.constant 0 : index
    %71 = vector.load %arg5[%70, %c0_27, %c0_28] : memref<8x8x128xf32, #tpu.memory_space<vmem>>, vector<1x8x128xf32>
    %72 = vector.shape_cast %71 : vector<1x8x128xf32> to vector<8x128xf32>
    %73 = vector.shape_cast %69 : vector<8x128xf32> to vector<1x8x128xf32>
    tpu.vector_store %arg5[%70, %c0_27, %c0_28], %73 {strides = array<i32>} : memref<8x8x128xf32, #tpu.memory_space<vmem>>, vector<1x8x128xf32>,
    %c1_i32 = arith.constant 1 : i32
    %74 = arith.truncf %62 : vector<8x128xf32> to vector<8x128xbf16>
    %75 = arith.index_cast %c1_i32 : i32 to index
    %c0_29 = arith.constant 0 : index
    %c0_30 = arith.constant 0 : index
    %76 = vector.load %arg3[%75, %c0_29, %c0_30] : memref<8x8x512xbf16, #tpu.memory_space<vmem>>, vector<1x8x128xbf16>
    %77 = vector.shape_cast %76 : vector<1x8x128xbf16> to vector<8x128xbf16>
    %c0_31 = arith.constant 0 : index
    %c0_32 = arith.constant 0 : index
    %78 = vector.load %arg8[%c0_31, %c0_32] : memref<128x512xbf16, #tpu.memory_space<vmem>>, vector<128x128xbf16>
    %cst_33 = arith.constant dense<0.000000e+00> : vector<8x128xf32>
    %79 = tpu.matmul %74, %78, %cst_33 {dimension_numbers = #tpu.dot_dimension_numbers<[1], [0], [0], [1], [0, 0, 1, 1], [], []>} : vector<8x128xbf16>, vector<128x128xbf16>, vector<8x128xf32> -> vector<8x128xf32>
    %80 = arith.extf %77 : vector<8x128xbf16> to vector<8x128xf32>
    %81 = arith.addf %80, %79 : vector<8x128xf32>
    %82 = arith.negf %81 : vector<8x128xf32>
    %83 = math.exp %82 : vector<8x128xf32>
    %cst_34 = arith.constant 1.000000e+00 : f32
    %84 = vector.broadcast %cst_34 : f32 to vector<8x128xf32>
    %85 = arith.addf %84, %83 : vector<8x128xf32>
    %86 = arith.divf %84, %85 : vector<8x128xf32>
    %87 = arith.index_cast %c1_i32 : i32 to index
    %c0_35 = arith.constant 0 : index
    %c128_36 = arith.constant 128 : index
    %88 = vector.load %arg3[%87, %c0_35, %c128_36] : memref<8x8x512xbf16, #tpu.memory_space<vmem>>, vector<1x8x128xbf16>
    %89 = vector.shape_cast %88 : vector<1x8x128xbf16> to vector<8x128xbf16>
    %c0_37 = arith.constant 0 : index
    %c128_38 = arith.constant 128 : index
    %90 = vector.load %arg8[%c0_37, %c128_38] : memref<128x512xbf16, #tpu.memory_space<vmem>>, vector<128x128xbf16>
    %cst_39 = arith.constant dense<0.000000e+00> : vector<8x128xf32>
    %91 = tpu.matmul %74, %90, %cst_39 {dimension_numbers = #tpu.dot_dimension_numbers<[1], [0], [0], [1], [0, 0, 1, 1], [], []>} : vector<8x128xbf16>, vector<128x128xbf16>, vector<8x128xf32> -> vector<8x128xf32>
    %92 = arith.extf %89 : vector<8x128xbf16> to vector<8x128xf32>
    %93 = arith.addf %92, %91 : vector<8x128xf32>
    %94 = arith.negf %93 : vector<8x128xf32>
    %95 = math.exp %94 : vector<8x128xf32>
    %cst_40 = arith.constant 1.000000e+00 : f32
    %96 = vector.broadcast %cst_40 : f32 to vector<8x128xf32>
    %97 = arith.addf %96, %95 : vector<8x128xf32>
    %98 = arith.divf %96, %97 : vector<8x128xf32>
    %99 = arith.index_cast %c1_i32 : i32 to index
    %c0_41 = arith.constant 0 : index
    %c256_42 = arith.constant 256 : index
    %100 = vector.load %arg3[%99, %c0_41, %c256_42] : memref<8x8x512xbf16, #tpu.memory_space<vmem>>, vector<1x8x128xbf16>
    %101 = vector.shape_cast %100 : vector<1x8x128xbf16> to vector<8x128xbf16>
    %c0_43 = arith.constant 0 : index
    %c256_44 = arith.constant 256 : index
    %102 = vector.load %arg8[%c0_43, %c256_44] : memref<128x512xbf16, #tpu.memory_space<vmem>>, vector<128x128xbf16>
    %cst_45 = arith.constant dense<0.000000e+00> : vector<8x128xf32>
    %103 = tpu.matmul %74, %102, %cst_45 {dimension_numbers = #tpu.dot_dimension_numbers<[1], [0], [0], [1], [0, 0, 1, 1], [], []>} : vector<8x128xbf16>, vector<128x128xbf16>, vector<8x128xf32> -> vector<8x128xf32>
    %104 = arith.extf %101 : vector<8x128xbf16> to vector<8x128xf32>
    %105 = arith.addf %104, %103 : vector<8x128xf32>
    %106 = math.tanh %105 : vector<8x128xf32>
    %107 = arith.index_cast %c1_i32 : i32 to index
    %c0_46 = arith.constant 0 : index
    %c384_47 = arith.constant 384 : index
    %108 = vector.load %arg3[%107, %c0_46, %c384_47] : memref<8x8x512xbf16, #tpu.memory_space<vmem>>, vector<1x8x128xbf16>
    %109 = vector.shape_cast %108 : vector<1x8x128xbf16> to vector<8x128xbf16>
    %c0_48 = arith.constant 0 : index
    %c384_49 = arith.constant 384 : index
    %110 = vector.load %arg8[%c0_48, %c384_49] : memref<128x512xbf16, #tpu.memory_space<vmem>>, vector<128x128xbf16>
    %cst_50 = arith.constant dense<0.000000e+00> : vector<8x128xf32>
    %111 = tpu.matmul %74, %110, %cst_50 {dimension_numbers = #tpu.dot_dimension_numbers<[1], [0], [0], [1], [0, 0, 1, 1], [], []>} : vector<8x128xbf16>, vector<128x128xbf16>, vector<8x128xf32> -> vector<8x128xf32>
    %112 = arith.extf %109 : vector<8x128xbf16> to vector<8x128xf32>
    %113 = arith.addf %112, %111 : vector<8x128xf32>
    %114 = arith.negf %113 : vector<8x128xf32>
    %115 = math.exp %114 : vector<8x128xf32>
    %cst_51 = arith.constant 1.000000e+00 : f32
    %116 = vector.broadcast %cst_51 : f32 to vector<8x128xf32>
    %117 = arith.addf %116, %115 : vector<8x128xf32>
    %118 = arith.divf %116, %117 : vector<8x128xf32>
    %119 = arith.mulf %98, %65 : vector<8x128xf32>
    %120 = arith.mulf %86, %106 : vector<8x128xf32>
    %121 = arith.addf %119, %120 : vector<8x128xf32>
    %122 = math.tanh %121 : vector<8x128xf32>
    %123 = arith.mulf %118, %122 : vector<8x128xf32>
    %c8_i32_52 = arith.constant 8 : i32
    %124 = arith.muli %arg1, %c8_i32_52 : i32
    %125 = arith.addi %124, %c1_i32 : i32
    %126 = vector.broadcast %125 : i32 to vector<8x1xi32>
    %127 = arith.cmpi slt, %126, %3 : vector<8x1xi32>
    %128 = vector.shape_cast %127 : vector<8x1xi1> to vector<8x1xi1>
    %129 = vector.broadcast %128 : vector<8x1xi1> to vector<8x128xi1>
    %130 = arith.select %129, %123, %62 : vector<8x128xi1>, vector<8x128xf32>
    %131 = vector.shape_cast %127 : vector<8x1xi1> to vector<8x1xi1>
    %132 = vector.broadcast %131 : vector<8x1xi1> to vector<8x128xi1>
    %133 = arith.select %132, %121, %65 : vector<8x128xi1>, vector<8x128xf32>
    %cst_53 = arith.constant 0.000000e+00 : f32
    %134 = vector.shape_cast %127 : vector<8x1xi1> to vector<8x1xi1>
    %135 = vector.broadcast %134 : vector<8x1xi1> to vector<8x128xi1>
    %136 = vector.broadcast %cst_53 : f32 to vector<8x128xf32>
    %137 = arith.select %135, %123, %136 : vector<8x128xi1>, vector<8x128xf32>
    %138 = arith.index_cast %c1_i32 : i32 to index
    %c0_54 = arith.constant 0 : index
    %c0_55 = arith.constant 0 : index
    %139 = vector.load %arg5[%138, %c0_54, %c0_55] : memref<8x8x128xf32, #tpu.memory_space<vmem>>, vector<1x8x128xf32>
    %140 = vector.shape_cast %139 : vector<1x8x128xf32> to vector<8x128xf32>
    %141 = vector.shape_cast %137 : vector<8x128xf32> to vector<1x8x128xf32>
    tpu.vector_store %arg5[%138, %c0_54, %c0_55], %141 {strides = array<i32>} : memref<8x8x128xf32, #tpu.memory_space<vmem>>, vector<1x8x128xf32>,
    %c2_i32 = arith.constant 2 : i32
    %142 = arith.truncf %130 : vector<8x128xf32> to vector<8x128xbf16>
    %143 = arith.index_cast %c2_i32 : i32 to index
    %c0_56 = arith.constant 0 : index
    %c0_57 = arith.constant 0 : index
    %144 = vector.load %arg3[%143, %c0_56, %c0_57] : memref<8x8x512xbf16, #tpu.memory_space<vmem>>, vector<1x8x128xbf16>
    %145 = vector.shape_cast %144 : vector<1x8x128xbf16> to vector<8x128xbf16>
    %c0_58 = arith.constant 0 : index
    %c0_59 = arith.constant 0 : index
    %146 = vector.load %arg8[%c0_58, %c0_59] : memref<128x512xbf16, #tpu.memory_space<vmem>>, vector<128x128xbf16>
    %cst_60 = arith.constant dense<0.000000e+00> : vector<8x128xf32>
    %147 = tpu.matmul %142, %146, %cst_60 {dimension_numbers = #tpu.dot_dimension_numbers<[1], [0], [0], [1], [0, 0, 1, 1], [], []>} : vector<8x128xbf16>, vector<128x128xbf16>, vector<8x128xf32> -> vector<8x128xf32>
    %148 = arith.extf %145 : vector<8x128xbf16> to vector<8x128xf32>
    %149 = arith.addf %148, %147 : vector<8x128xf32>
    %150 = arith.negf %149 : vector<8x128xf32>
    %151 = math.exp %150 : vector<8x128xf32>
    %cst_61 = arith.constant 1.000000e+00 : f32
    %152 = vector.broadcast %cst_61 : f32 to vector<8x128xf32>
    %153 = arith.addf %152, %151 : vector<8x128xf32>
    %154 = arith.divf %152, %153 : vector<8x128xf32>
    %155 = arith.index_cast %c2_i32 : i32 to index
    %c0_62 = arith.constant 0 : index
    %c128_63 = arith.constant 128 : index
    %156 = vector.load %arg3[%155, %c0_62, %c128_63] : memref<8x8x512xbf16, #tpu.memory_space<vmem>>, vector<1x8x128xbf16>
    %157 = vector.shape_cast %156 : vector<1x8x128xbf16> to vector<8x128xbf16>
    %c0_64 = arith.constant 0 : index
    %c128_65 = arith.constant 128 : index
    %158 = vector.load %arg8[%c0_64, %c128_65] : memref<128x512xbf16, #tpu.memory_space<vmem>>, vector<128x128xbf16>
    %cst_66 = arith.constant dense<0.000000e+00> : vector<8x128xf32>
    %159 = tpu.matmul %142, %158, %cst_66 {dimension_numbers = #tpu.dot_dimension_numbers<[1], [0], [0], [1], [0, 0, 1, 1], [], []>} : vector<8x128xbf16>, vector<128x128xbf16>, vector<8x128xf32> -> vector<8x128xf32>
    %160 = arith.extf %157 : vector<8x128xbf16> to vector<8x128xf32>
    %161 = arith.addf %160, %159 : vector<8x128xf32>
    %162 = arith.negf %161 : vector<8x128xf32>
    %163 = math.exp %162 : vector<8x128xf32>
    %cst_67 = arith.constant 1.000000e+00 : f32
    %164 = vector.broadcast %cst_67 : f32 to vector<8x128xf32>
    %165 = arith.addf %164, %163 : vector<8x128xf32>
    %166 = arith.divf %164, %165 : vector<8x128xf32>
    %167 = arith.index_cast %c2_i32 : i32 to index
    %c0_68 = arith.constant 0 : index
    %c256_69 = arith.constant 256 : index
    %168 = vector.load %arg3[%167, %c0_68, %c256_69] : memref<8x8x512xbf16, #tpu.memory_space<vmem>>, vector<1x8x128xbf16>
    %169 = vector.shape_cast %168 : vector<1x8x128xbf16> to vector<8x128xbf16>
    %c0_70 = arith.constant 0 : index
    %c256_71 = arith.constant 256 : index
    %170 = vector.load %arg8[%c0_70, %c256_71] : memref<128x512xbf16, #tpu.memory_space<vmem>>, vector<128x128xbf16>
    %cst_72 = arith.constant dense<0.000000e+00> : vector<8x128xf32>
    %171 = tpu.matmul %142, %170, %cst_72 {dimension_numbers = #tpu.dot_dimension_numbers<[1], [0], [0], [1], [0, 0, 1, 1], [], []>} : vector<8x128xbf16>, vector<128x128xbf16>, vector<8x128xf32> -> vector<8x128xf32>
    %172 = arith.extf %169 : vector<8x128xbf16> to vector<8x128xf32>
    %173 = arith.addf %172, %171 : vector<8x128xf32>
    %174 = math.tanh %173 : vector<8x128xf32>
    %175 = arith.index_cast %c2_i32 : i32 to index
    %c0_73 = arith.constant 0 : index
    %c384_74 = arith.constant 384 : index
    %176 = vector.load %arg3[%175, %c0_73, %c384_74] : memref<8x8x512xbf16, #tpu.memory_space<vmem>>, vector<1x8x128xbf16>
    %177 = vector.shape_cast %176 : vector<1x8x128xbf16> to vector<8x128xbf16>
    %c0_75 = arith.constant 0 : index
    %c384_76 = arith.constant 384 : index
    %178 = vector.load %arg8[%c0_75, %c384_76] : memref<128x512xbf16, #tpu.memory_space<vmem>>, vector<128x128xbf16>
    %cst_77 = arith.constant dense<0.000000e+00> : vector<8x128xf32>
    %179 = tpu.matmul %142, %178, %cst_77 {dimension_numbers = #tpu.dot_dimension_numbers<[1], [0], [0], [1], [0, 0, 1, 1], [], []>} : vector<8x128xbf16>, vector<128x128xbf16>, vector<8x128xf32> -> vector<8x128xf32>
    %180 = arith.extf %177 : vector<8x128xbf16> to vector<8x128xf32>
    %181 = arith.addf %180, %179 : vector<8x128xf32>
    %182 = arith.negf %181 : vector<8x128xf32>
    %183 = math.exp %182 : vector<8x128xf32>
    %cst_78 = arith.constant 1.000000e+00 : f32
    %184 = vector.broadcast %cst_78 : f32 to vector<8x128xf32>
    %185 = arith.addf %184, %183 : vector<8x128xf32>
    %186 = arith.divf %184, %185 : vector<8x128xf32>
    %187 = arith.mulf %166, %133 : vector<8x128xf32>
    %188 = arith.mulf %154, %174 : vector<8x128xf32>
    %189 = arith.addf %187, %188 : vector<8x128xf32>
    %190 = math.tanh %189 : vector<8x128xf32>
    %191 = arith.mulf %186, %190 : vector<8x128xf32>
    %c8_i32_79 = arith.constant 8 : i32
    %192 = arith.muli %arg1, %c8_i32_79 : i32
    %193 = arith.addi %192, %c2_i32 : i32
    %194 = vector.broadcast %193 : i32 to vector<8x1xi32>
    %195 = arith.cmpi slt, %194, %3 : vector<8x1xi32>
    %196 = vector.shape_cast %195 : vector<8x1xi1> to vector<8x1xi1>
    %197 = vector.broadcast %196 : vector<8x1xi1> to vector<8x128xi1>
    %198 = arith.select %197, %191, %130 : vector<8x128xi1>, vector<8x128xf32>
    %199 = vector.shape_cast %195 : vector<8x1xi1> to vector<8x1xi1>
    %200 = vector.broadcast %199 : vector<8x1xi1> to vector<8x128xi1>
    %201 = arith.select %200, %189, %133 : vector<8x128xi1>, vector<8x128xf32>
    %cst_80 = arith.constant 0.000000e+00 : f32
    %202 = vector.shape_cast %195 : vector<8x1xi1> to vector<8x1xi1>
    %203 = vector.broadcast %202 : vector<8x1xi1> to vector<8x128xi1>
    %204 = vector.broadcast %cst_80 : f32 to vector<8x128xf32>
    %205 = arith.select %203, %191, %204 : vector<8x128xi1>, vector<8x128xf32>
    %206 = arith.index_cast %c2_i32 : i32 to index
    %c0_81 = arith.constant 0 : index
    %c0_82 = arith.constant 0 : index
    %207 = vector.load %arg5[%206, %c0_81, %c0_82] : memref<8x8x128xf32, #tpu.memory_space<vmem>>, vector<1x8x128xf32>
    %208 = vector.shape_cast %207 : vector<1x8x128xf32> to vector<8x128xf32>
    %209 = vector.shape_cast %205 : vector<8x128xf32> to vector<1x8x128xf32>
    tpu.vector_store %arg5[%206, %c0_81, %c0_82], %209 {strides = array<i32>} : memref<8x8x128xf32, #tpu.memory_space<vmem>>, vector<1x8x128xf32>,
    %c3_i32 = arith.constant 3 : i32
    %210 = arith.truncf %198 : vector<8x128xf32> to vector<8x128xbf16>
    %211 = arith.index_cast %c3_i32 : i32 to index
    %c0_83 = arith.constant 0 : index
    %c0_84 = arith.constant 0 : index
    %212 = vector.load %arg3[%211, %c0_83, %c0_84] : memref<8x8x512xbf16, #tpu.memory_space<vmem>>, vector<1x8x128xbf16>
    %213 = vector.shape_cast %212 : vector<1x8x128xbf16> to vector<8x128xbf16>
    %c0_85 = arith.constant 0 : index
    %c0_86 = arith.constant 0 : index
    %214 = vector.load %arg8[%c0_85, %c0_86] : memref<128x512xbf16, #tpu.memory_space<vmem>>, vector<128x128xbf16>
    %cst_87 = arith.constant dense<0.000000e+00> : vector<8x128xf32>
    %215 = tpu.matmul %210, %214, %cst_87 {dimension_numbers = #tpu.dot_dimension_numbers<[1], [0], [0], [1], [0, 0, 1, 1], [], []>} : vector<8x128xbf16>, vector<128x128xbf16>, vector<8x128xf32> -> vector<8x128xf32>
    %216 = arith.extf %213 : vector<8x128xbf16> to vector<8x128xf32>
    %217 = arith.addf %216, %215 : vector<8x128xf32>
    %218 = arith.negf %217 : vector<8x128xf32>
    %219 = math.exp %218 : vector<8x128xf32>
    %cst_88 = arith.constant 1.000000e+00 : f32
    %220 = vector.broadcast %cst_88 : f32 to vector<8x128xf32>
    %221 = arith.addf %220, %219 : vector<8x128xf32>
    %222 = arith.divf %220, %221 : vector<8x128xf32>
    %223 = arith.index_cast %c3_i32 : i32 to index
    %c0_89 = arith.constant 0 : index
    %c128_90 = arith.constant 128 : index
    %224 = vector.load %arg3[%223, %c0_89, %c128_90] : memref<8x8x512xbf16, #tpu.memory_space<vmem>>, vector<1x8x128xbf16>
    %225 = vector.shape_cast %224 : vector<1x8x128xbf16> to vector<8x128xbf16>
    %c0_91 = arith.constant 0 : index
    %c128_92 = arith.constant 128 : index
    %226 = vector.load %arg8[%c0_91, %c128_92] : memref<128x512xbf16, #tpu.memory_space<vmem>>, vector<128x128xbf16>
    %cst_93 = arith.constant dense<0.000000e+00> : vector<8x128xf32>
    %227 = tpu.matmul %210, %226, %cst_93 {dimension_numbers = #tpu.dot_dimension_numbers<[1], [0], [0], [1], [0, 0, 1, 1], [], []>} : vector<8x128xbf16>, vector<128x128xbf16>, vector<8x128xf32> -> vector<8x128xf32>
    %228 = arith.extf %225 : vector<8x128xbf16> to vector<8x128xf32>
    %229 = arith.addf %228, %227 : vector<8x128xf32>
    %230 = arith.negf %229 : vector<8x128xf32>
    %231 = math.exp %230 : vector<8x128xf32>
    %cst_94 = arith.constant 1.000000e+00 : f32
    %232 = vector.broadcast %cst_94 : f32 to vector<8x128xf32>
    %233 = arith.addf %232, %231 : vector<8x128xf32>
    %234 = arith.divf %232, %233 : vector<8x128xf32>
    %235 = arith.index_cast %c3_i32 : i32 to index
    %c0_95 = arith.constant 0 : index
    %c256_96 = arith.constant 256 : index
    %236 = vector.load %arg3[%235, %c0_95, %c256_96] : memref<8x8x512xbf16, #tpu.memory_space<vmem>>, vector<1x8x128xbf16>
    %237 = vector.shape_cast %236 : vector<1x8x128xbf16> to vector<8x128xbf16>
    %c0_97 = arith.constant 0 : index
    %c256_98 = arith.constant 256 : index
    %238 = vector.load %arg8[%c0_97, %c256_98] : memref<128x512xbf16, #tpu.memory_space<vmem>>, vector<128x128xbf16>
    %cst_99 = arith.constant dense<0.000000e+00> : vector<8x128xf32>
    %239 = tpu.matmul %210, %238, %cst_99 {dimension_numbers = #tpu.dot_dimension_numbers<[1], [0], [0], [1], [0, 0, 1, 1], [], []>} : vector<8x128xbf16>, vector<128x128xbf16>, vector<8x128xf32> -> vector<8x128xf32>
    %240 = arith.extf %237 : vector<8x128xbf16> to vector<8x128xf32>
    %241 = arith.addf %240, %239 : vector<8x128xf32>
    %242 = math.tanh %241 : vector<8x128xf32>
    %243 = arith.index_cast %c3_i32 : i32 to index
    %c0_100 = arith.constant 0 : index
    %c384_101 = arith.constant 384 : index
    %244 = vector.load %arg3[%243, %c0_100, %c384_101] : memref<8x8x512xbf16, #tpu.memory_space<vmem>>, vector<1x8x128xbf16>
    %245 = vector.shape_cast %244 : vector<1x8x128xbf16> to vector<8x128xbf16>
    %c0_102 = arith.constant 0 : index
    %c384_103 = arith.constant 384 : index
    %246 = vector.load %arg8[%c0_102, %c384_103] : memref<128x512xbf16, #tpu.memory_space<vmem>>, vector<128x128xbf16>
    %cst_104 = arith.constant dense<0.000000e+00> : vector<8x128xf32>
    %247 = tpu.matmul %210, %246, %cst_104 {dimension_numbers = #tpu.dot_dimension_numbers<[1], [0], [0], [1], [0, 0, 1, 1], [], []>} : vector<8x128xbf16>, vector<128x128xbf16>, vector<8x128xf32> -> vector<8x128xf32>
    %248 = arith.extf %245 : vector<8x128xbf16> to vector<8x128xf32>
    %249 = arith.addf %248, %247 : vector<8x128xf32>
    %250 = arith.negf %249 : vector<8x128xf32>
    %251 = math.exp %250 : vector<8x128xf32>
    %cst_105 = arith.constant 1.000000e+00 : f32
    %252 = vector.broadcast %cst_105 : f32 to vector<8x128xf32>
    %253 = arith.addf %252, %251 : vector<8x128xf32>
    %254 = arith.divf %252, %253 : vector<8x128xf32>
    %255 = arith.mulf %234, %201 : vector<8x128xf32>
    %256 = arith.mulf %222, %242 : vector<8x128xf32>
    %257 = arith.addf %255, %256 : vector<8x128xf32>
    %258 = math.tanh %257 : vector<8x128xf32>
    %259 = arith.mulf %254, %258 : vector<8x128xf32>
    %c8_i32_106 = arith.constant 8 : i32
    %260 = arith.muli %arg1, %c8_i32_106 : i32
    %261 = arith.addi %260, %c3_i32 : i32
    %262 = vector.broadcast %261 : i32 to vector<8x1xi32>
    %263 = arith.cmpi slt, %262, %3 : vector<8x1xi32>
    %264 = vector.shape_cast %263 : vector<8x1xi1> to vector<8x1xi1>
    %265 = vector.broadcast %264 : vector<8x1xi1> to vector<8x128xi1>
    %266 = arith.select %265, %259, %198 : vector<8x128xi1>, vector<8x128xf32>
    %267 = vector.shape_cast %263 : vector<8x1xi1> to vector<8x1xi1>
    %268 = vector.broadcast %267 : vector<8x1xi1> to vector<8x128xi1>
    %269 = arith.select %268, %257, %201 : vector<8x128xi1>, vector<8x128xf32>
    %cst_107 = arith.constant 0.000000e+00 : f32
    %270 = vector.shape_cast %263 : vector<8x1xi1> to vector<8x1xi1>
    %271 = vector.broadcast %270 : vector<8x1xi1> to vector<8x128xi1>
    %272 = vector.broadcast %cst_107 : f32 to vector<8x128xf32>
    %273 = arith.select %271, %259, %272 : vector<8x128xi1>, vector<8x128xf32>
    %274 = arith.index_cast %c3_i32 : i32 to index
    %c0_108 = arith.constant 0 : index
    %c0_109 = arith.constant 0 : index
    %275 = vector.load %arg5[%274, %c0_108, %c0_109] : memref<8x8x128xf32, #tpu.memory_space<vmem>>, vector<1x8x128xf32>
    %276 = vector.shape_cast %275 : vector<1x8x128xf32> to vector<8x128xf32>
    %277 = vector.shape_cast %273 : vector<8x128xf32> to vector<1x8x128xf32>
    tpu.vector_store %arg5[%274, %c0_108, %c0_109], %277 {strides = array<i32>} : memref<8x8x128xf32, #tpu.memory_space<vmem>>, vector<1x8x128xf32>,
    %c4_i32 = arith.constant 4 : i32
    %278 = arith.truncf %266 : vector<8x128xf32> to vector<8x128xbf16>
    %279 = arith.index_cast %c4_i32 : i32 to index
    %c0_110 = arith.constant 0 : index
    %c0_111 = arith.constant 0 : index
    %280 = vector.load %arg3[%279, %c0_110, %c0_111] : memref<8x8x512xbf16, #tpu.memory_space<vmem>>, vector<1x8x128xbf16>
    %281 = vector.shape_cast %280 : vector<1x8x128xbf16> to vector<8x128xbf16>
    %c0_112 = arith.constant 0 : index
    %c0_113 = arith.constant 0 : index
    %282 = vector.load %arg8[%c0_112, %c0_113] : memref<128x512xbf16, #tpu.memory_space<vmem>>, vector<128x128xbf16>
    %cst_114 = arith.constant dense<0.000000e+00> : vector<8x128xf32>
    %283 = tpu.matmul %278, %282, %cst_114 {dimension_numbers = #tpu.dot_dimension_numbers<[1], [0], [0], [1], [0, 0, 1, 1], [], []>} : vector<8x128xbf16>, vector<128x128xbf16>, vector<8x128xf32> -> vector<8x128xf32>
    %284 = arith.extf %281 : vector<8x128xbf16> to vector<8x128xf32>
    %285 = arith.addf %284, %283 : vector<8x128xf32>
    %286 = arith.negf %285 : vector<8x128xf32>
    %287 = math.exp %286 : vector<8x128xf32>
    %cst_115 = arith.constant 1.000000e+00 : f32
    %288 = vector.broadcast %cst_115 : f32 to vector<8x128xf32>
    %289 = arith.addf %288, %287 : vector<8x128xf32>
    %290 = arith.divf %288, %289 : vector<8x128xf32>
    %291 = arith.index_cast %c4_i32 : i32 to index
    %c0_116 = arith.constant 0 : index
    %c128_117 = arith.constant 128 : index
    %292 = vector.load %arg3[%291, %c0_116, %c128_117] : memref<8x8x512xbf16, #tpu.memory_space<vmem>>, vector<1x8x128xbf16>
    %293 = vector.shape_cast %292 : vector<1x8x128xbf16> to vector<8x128xbf16>
    %c0_118 = arith.constant 0 : index
    %c128_119 = arith.constant 128 : index
    %294 = vector.load %arg8[%c0_118, %c128_119] : memref<128x512xbf16, #tpu.memory_space<vmem>>, vector<128x128xbf16>
    %cst_120 = arith.constant dense<0.000000e+00> : vector<8x128xf32>
    %295 = tpu.matmul %278, %294, %cst_120 {dimension_numbers = #tpu.dot_dimension_numbers<[1], [0], [0], [1], [0, 0, 1, 1], [], []>} : vector<8x128xbf16>, vector<128x128xbf16>, vector<8x128xf32> -> vector<8x128xf32>
    %296 = arith.extf %293 : vector<8x128xbf16> to vector<8x128xf32>
    %297 = arith.addf %296, %295 : vector<8x128xf32>
    %298 = arith.negf %297 : vector<8x128xf32>
    %299 = math.exp %298 : vector<8x128xf32>
    %cst_121 = arith.constant 1.000000e+00 : f32
    %300 = vector.broadcast %cst_121 : f32 to vector<8x128xf32>
    %301 = arith.addf %300, %299 : vector<8x128xf32>
    %302 = arith.divf %300, %301 : vector<8x128xf32>
    %303 = arith.index_cast %c4_i32 : i32 to index
    %c0_122 = arith.constant 0 : index
    %c256_123 = arith.constant 256 : index
    %304 = vector.load %arg3[%303, %c0_122, %c256_123] : memref<8x8x512xbf16, #tpu.memory_space<vmem>>, vector<1x8x128xbf16>
    %305 = vector.shape_cast %304 : vector<1x8x128xbf16> to vector<8x128xbf16>
    %c0_124 = arith.constant 0 : index
    %c256_125 = arith.constant 256 : index
    %306 = vector.load %arg8[%c0_124, %c256_125] : memref<128x512xbf16, #tpu.memory_space<vmem>>, vector<128x128xbf16>
    %cst_126 = arith.constant dense<0.000000e+00> : vector<8x128xf32>
    %307 = tpu.matmul %278, %306, %cst_126 {dimension_numbers = #tpu.dot_dimension_numbers<[1], [0], [0], [1], [0, 0, 1, 1], [], []>} : vector<8x128xbf16>, vector<128x128xbf16>, vector<8x128xf32> -> vector<8x128xf32>
    %308 = arith.extf %305 : vector<8x128xbf16> to vector<8x128xf32>
    %309 = arith.addf %308, %307 : vector<8x128xf32>
    %310 = math.tanh %309 : vector<8x128xf32>
    %311 = arith.index_cast %c4_i32 : i32 to index
    %c0_127 = arith.constant 0 : index
    %c384_128 = arith.constant 384 : index
    %312 = vector.load %arg3[%311, %c0_127, %c384_128] : memref<8x8x512xbf16, #tpu.memory_space<vmem>>, vector<1x8x128xbf16>
    %313 = vector.shape_cast %312 : vector<1x8x128xbf16> to vector<8x128xbf16>
    %c0_129 = arith.constant 0 : index
    %c384_130 = arith.constant 384 : index
    %314 = vector.load %arg8[%c0_129, %c384_130] : memref<128x512xbf16, #tpu.memory_space<vmem>>, vector<128x128xbf16>
    %cst_131 = arith.constant dense<0.000000e+00> : vector<8x128xf32>
    %315 = tpu.matmul %278, %314, %cst_131 {dimension_numbers = #tpu.dot_dimension_numbers<[1], [0], [0], [1], [0, 0, 1, 1], [], []>} : vector<8x128xbf16>, vector<128x128xbf16>, vector<8x128xf32> -> vector<8x128xf32>
    %316 = arith.extf %313 : vector<8x128xbf16> to vector<8x128xf32>
    %317 = arith.addf %316, %315 : vector<8x128xf32>
    %318 = arith.negf %317 : vector<8x128xf32>
    %319 = math.exp %318 : vector<8x128xf32>
    %cst_132 = arith.constant 1.000000e+00 : f32
    %320 = vector.broadcast %cst_132 : f32 to vector<8x128xf32>
    %321 = arith.addf %320, %319 : vector<8x128xf32>
    %322 = arith.divf %320, %321 : vector<8x128xf32>
    %323 = arith.mulf %302, %269 : vector<8x128xf32>
    %324 = arith.mulf %290, %310 : vector<8x128xf32>
    %325 = arith.addf %323, %324 : vector<8x128xf32>
    %326 = math.tanh %325 : vector<8x128xf32>
    %327 = arith.mulf %322, %326 : vector<8x128xf32>
    %c8_i32_133 = arith.constant 8 : i32
    %328 = arith.muli %arg1, %c8_i32_133 : i32
    %329 = arith.addi %328, %c4_i32 : i32
    %330 = vector.broadcast %329 : i32 to vector<8x1xi32>
    %331 = arith.cmpi slt, %330, %3 : vector<8x1xi32>
    %332 = vector.shape_cast %331 : vector<8x1xi1> to vector<8x1xi1>
    %333 = vector.broadcast %332 : vector<8x1xi1> to vector<8x128xi1>
    %334 = arith.select %333, %327, %266 : vector<8x128xi1>, vector<8x128xf32>
    %335 = vector.shape_cast %331 : vector<8x1xi1> to vector<8x1xi1>
    %336 = vector.broadcast %335 : vector<8x1xi1> to vector<8x128xi1>
    %337 = arith.select %336, %325, %269 : vector<8x128xi1>, vector<8x128xf32>
    %cst_134 = arith.constant 0.000000e+00 : f32
    %338 = vector.shape_cast %331 : vector<8x1xi1> to vector<8x1xi1>
    %339 = vector.broadcast %338 : vector<8x1xi1> to vector<8x128xi1>
    %340 = vector.broadcast %cst_134 : f32 to vector<8x128xf32>
    %341 = arith.select %339, %327, %340 : vector<8x128xi1>, vector<8x128xf32>
    %342 = arith.index_cast %c4_i32 : i32 to index
    %c0_135 = arith.constant 0 : index
    %c0_136 = arith.constant 0 : index
    %343 = vector.load %arg5[%342, %c0_135, %c0_136] : memref<8x8x128xf32, #tpu.memory_space<vmem>>, vector<1x8x128xf32>
    %344 = vector.shape_cast %343 : vector<1x8x128xf32> to vector<8x128xf32>
    %345 = vector.shape_cast %341 : vector<8x128xf32> to vector<1x8x128xf32>
    tpu.vector_store %arg5[%342, %c0_135, %c0_136], %345 {strides = array<i32>} : memref<8x8x128xf32, #tpu.memory_space<vmem>>, vector<1x8x128xf32>,
    %c5_i32 = arith.constant 5 : i32
    %346 = arith.truncf %334 : vector<8x128xf32> to vector<8x128xbf16>
    %347 = arith.index_cast %c5_i32 : i32 to index
    %c0_137 = arith.constant 0 : index
    %c0_138 = arith.constant 0 : index
    %348 = vector.load %arg3[%347, %c0_137, %c0_138] : memref<8x8x512xbf16, #tpu.memory_space<vmem>>, vector<1x8x128xbf16>
    %349 = vector.shape_cast %348 : vector<1x8x128xbf16> to vector<8x128xbf16>
    %c0_139 = arith.constant 0 : index
    %c0_140 = arith.constant 0 : index
    %350 = vector.load %arg8[%c0_139, %c0_140] : memref<128x512xbf16, #tpu.memory_space<vmem>>, vector<128x128xbf16>
    %cst_141 = arith.constant dense<0.000000e+00> : vector<8x128xf32>
    %351 = tpu.matmul %346, %350, %cst_141 {dimension_numbers = #tpu.dot_dimension_numbers<[1], [0], [0], [1], [0, 0, 1, 1], [], []>} : vector<8x128xbf16>, vector<128x128xbf16>, vector<8x128xf32> -> vector<8x128xf32>
    %352 = arith.extf %349 : vector<8x128xbf16> to vector<8x128xf32>
    %353 = arith.addf %352, %351 : vector<8x128xf32>
    %354 = arith.negf %353 : vector<8x128xf32>
    %355 = math.exp %354 : vector<8x128xf32>
    %cst_142 = arith.constant 1.000000e+00 : f32
    %356 = vector.broadcast %cst_142 : f32 to vector<8x128xf32>
    %357 = arith.addf %356, %355 : vector<8x128xf32>
    %358 = arith.divf %356, %357 : vector<8x128xf32>
    %359 = arith.index_cast %c5_i32 : i32 to index
    %c0_143 = arith.constant 0 : index
    %c128_144 = arith.constant 128 : index
    %360 = vector.load %arg3[%359, %c0_143, %c128_144] : memref<8x8x512xbf16, #tpu.memory_space<vmem>>, vector<1x8x128xbf16>
    %361 = vector.shape_cast %360 : vector<1x8x128xbf16> to vector<8x128xbf16>
    %c0_145 = arith.constant 0 : index
    %c128_146 = arith.constant 128 : index
    %362 = vector.load %arg8[%c0_145, %c128_146] : memref<128x512xbf16, #tpu.memory_space<vmem>>, vector<128x128xbf16>
    %cst_147 = arith.constant dense<0.000000e+00> : vector<8x128xf32>
    %363 = tpu.matmul %346, %362, %cst_147 {dimension_numbers = #tpu.dot_dimension_numbers<[1], [0], [0], [1], [0, 0, 1, 1], [], []>} : vector<8x128xbf16>, vector<128x128xbf16>, vector<8x128xf32> -> vector<8x128xf32>
    %364 = arith.extf %361 : vector<8x128xbf16> to vector<8x128xf32>
    %365 = arith.addf %364, %363 : vector<8x128xf32>
    %366 = arith.negf %365 : vector<8x128xf32>
    %367 = math.exp %366 : vector<8x128xf32>
    %cst_148 = arith.constant 1.000000e+00 : f32
    %368 = vector.broadcast %cst_148 : f32 to vector<8x128xf32>
    %369 = arith.addf %368, %367 : vector<8x128xf32>
    %370 = arith.divf %368, %369 : vector<8x128xf32>
    %371 = arith.index_cast %c5_i32 : i32 to index
    %c0_149 = arith.constant 0 : index
    %c256_150 = arith.constant 256 : index
    %372 = vector.load %arg3[%371, %c0_149, %c256_150] : memref<8x8x512xbf16, #tpu.memory_space<vmem>>, vector<1x8x128xbf16>
    %373 = vector.shape_cast %372 : vector<1x8x128xbf16> to vector<8x128xbf16>
    %c0_151 = arith.constant 0 : index
    %c256_152 = arith.constant 256 : index
    %374 = vector.load %arg8[%c0_151, %c256_152] : memref<128x512xbf16, #tpu.memory_space<vmem>>, vector<128x128xbf16>
    %cst_153 = arith.constant dense<0.000000e+00> : vector<8x128xf32>
    %375 = tpu.matmul %346, %374, %cst_153 {dimension_numbers = #tpu.dot_dimension_numbers<[1], [0], [0], [1], [0, 0, 1, 1], [], []>} : vector<8x128xbf16>, vector<128x128xbf16>, vector<8x128xf32> -> vector<8x128xf32>
    %376 = arith.extf %373 : vector<8x128xbf16> to vector<8x128xf32>
    %377 = arith.addf %376, %375 : vector<8x128xf32>
    %378 = math.tanh %377 : vector<8x128xf32>
    %379 = arith.index_cast %c5_i32 : i32 to index
    %c0_154 = arith.constant 0 : index
    %c384_155 = arith.constant 384 : index
    %380 = vector.load %arg3[%379, %c0_154, %c384_155] : memref<8x8x512xbf16, #tpu.memory_space<vmem>>, vector<1x8x128xbf16>
    %381 = vector.shape_cast %380 : vector<1x8x128xbf16> to vector<8x128xbf16>
    %c0_156 = arith.constant 0 : index
    %c384_157 = arith.constant 384 : index
    %382 = vector.load %arg8[%c0_156, %c384_157] : memref<128x512xbf16, #tpu.memory_space<vmem>>, vector<128x128xbf16>
    %cst_158 = arith.constant dense<0.000000e+00> : vector<8x128xf32>
    %383 = tpu.matmul %346, %382, %cst_158 {dimension_numbers = #tpu.dot_dimension_numbers<[1], [0], [0], [1], [0, 0, 1, 1], [], []>} : vector<8x128xbf16>, vector<128x128xbf16>, vector<8x128xf32> -> vector<8x128xf32>
    %384 = arith.extf %381 : vector<8x128xbf16> to vector<8x128xf32>
    %385 = arith.addf %384, %383 : vector<8x128xf32>
    %386 = arith.negf %385 : vector<8x128xf32>
    %387 = math.exp %386 : vector<8x128xf32>
    %cst_159 = arith.constant 1.000000e+00 : f32
    %388 = vector.broadcast %cst_159 : f32 to vector<8x128xf32>
    %389 = arith.addf %388, %387 : vector<8x128xf32>
    %390 = arith.divf %388, %389 : vector<8x128xf32>
    %391 = arith.mulf %370, %337 : vector<8x128xf32>
    %392 = arith.mulf %358, %378 : vector<8x128xf32>
    %393 = arith.addf %391, %392 : vector<8x128xf32>
    %394 = math.tanh %393 : vector<8x128xf32>
    %395 = arith.mulf %390, %394 : vector<8x128xf32>
    %c8_i32_160 = arith.constant 8 : i32
    %396 = arith.muli %arg1, %c8_i32_160 : i32
    %397 = arith.addi %396, %c5_i32 : i32
    %398 = vector.broadcast %397 : i32 to vector<8x1xi32>
    %399 = arith.cmpi slt, %398, %3 : vector<8x1xi32>
    %400 = vector.shape_cast %399 : vector<8x1xi1> to vector<8x1xi1>
    %401 = vector.broadcast %400 : vector<8x1xi1> to vector<8x128xi1>
    %402 = arith.select %401, %395, %334 : vector<8x128xi1>, vector<8x128xf32>
    %403 = vector.shape_cast %399 : vector<8x1xi1> to vector<8x1xi1>
    %404 = vector.broadcast %403 : vector<8x1xi1> to vector<8x128xi1>
    %405 = arith.select %404, %393, %337 : vector<8x128xi1>, vector<8x128xf32>
    %cst_161 = arith.constant 0.000000e+00 : f32
    %406 = vector.shape_cast %399 : vector<8x1xi1> to vector<8x1xi1>
    %407 = vector.broadcast %406 : vector<8x1xi1> to vector<8x128xi1>
    %408 = vector.broadcast %cst_161 : f32 to vector<8x128xf32>
    %409 = arith.select %407, %395, %408 : vector<8x128xi1>, vector<8x128xf32>
    %410 = arith.index_cast %c5_i32 : i32 to index
    %c0_162 = arith.constant 0 : index
    %c0_163 = arith.constant 0 : index
    %411 = vector.load %arg5[%410, %c0_162, %c0_163] : memref<8x8x128xf32, #tpu.memory_space<vmem>>, vector<1x8x128xf32>
    %412 = vector.shape_cast %411 : vector<1x8x128xf32> to vector<8x128xf32>
    %413 = vector.shape_cast %409 : vector<8x128xf32> to vector<1x8x128xf32>
    tpu.vector_store %arg5[%410, %c0_162, %c0_163], %413 {strides = array<i32>} : memref<8x8x128xf32, #tpu.memory_space<vmem>>, vector<1x8x128xf32>,
    %c6_i32 = arith.constant 6 : i32
    %414 = arith.truncf %402 : vector<8x128xf32> to vector<8x128xbf16>
    %415 = arith.index_cast %c6_i32 : i32 to index
    %c0_164 = arith.constant 0 : index
    %c0_165 = arith.constant 0 : index
    %416 = vector.load %arg3[%415, %c0_164, %c0_165] : memref<8x8x512xbf16, #tpu.memory_space<vmem>>, vector<1x8x128xbf16>
    %417 = vector.shape_cast %416 : vector<1x8x128xbf16> to vector<8x128xbf16>
    %c0_166 = arith.constant 0 : index
    %c0_167 = arith.constant 0 : index
    %418 = vector.load %arg8[%c0_166, %c0_167] : memref<128x512xbf16, #tpu.memory_space<vmem>>, vector<128x128xbf16>
    %cst_168 = arith.constant dense<0.000000e+00> : vector<8x128xf32>
    %419 = tpu.matmul %414, %418, %cst_168 {dimension_numbers = #tpu.dot_dimension_numbers<[1], [0], [0], [1], [0, 0, 1, 1], [], []>} : vector<8x128xbf16>, vector<128x128xbf16>, vector<8x128xf32> -> vector<8x128xf32>
    %420 = arith.extf %417 : vector<8x128xbf16> to vector<8x128xf32>
    %421 = arith.addf %420, %419 : vector<8x128xf32>
    %422 = arith.negf %421 : vector<8x128xf32>
    %423 = math.exp %422 : vector<8x128xf32>
    %cst_169 = arith.constant 1.000000e+00 : f32
    %424 = vector.broadcast %cst_169 : f32 to vector<8x128xf32>
    %425 = arith.addf %424, %423 : vector<8x128xf32>
    %426 = arith.divf %424, %425 : vector<8x128xf32>
    %427 = arith.index_cast %c6_i32 : i32 to index
    %c0_170 = arith.constant 0 : index
    %c128_171 = arith.constant 128 : index
    %428 = vector.load %arg3[%427, %c0_170, %c128_171] : memref<8x8x512xbf16, #tpu.memory_space<vmem>>, vector<1x8x128xbf16>
    %429 = vector.shape_cast %428 : vector<1x8x128xbf16> to vector<8x128xbf16>
    %c0_172 = arith.constant 0 : index
    %c128_173 = arith.constant 128 : index
    %430 = vector.load %arg8[%c0_172, %c128_173] : memref<128x512xbf16, #tpu.memory_space<vmem>>, vector<128x128xbf16>
    %cst_174 = arith.constant dense<0.000000e+00> : vector<8x128xf32>
    %431 = tpu.matmul %414, %430, %cst_174 {dimension_numbers = #tpu.dot_dimension_numbers<[1], [0], [0], [1], [0, 0, 1, 1], [], []>} : vector<8x128xbf16>, vector<128x128xbf16>, vector<8x128xf32> -> vector<8x128xf32>
    %432 = arith.extf %429 : vector<8x128xbf16> to vector<8x128xf32>
    %433 = arith.addf %432, %431 : vector<8x128xf32>
    %434 = arith.negf %433 : vector<8x128xf32>
    %435 = math.exp %434 : vector<8x128xf32>
    %cst_175 = arith.constant 1.000000e+00 : f32
    %436 = vector.broadcast %cst_175 : f32 to vector<8x128xf32>
    %437 = arith.addf %436, %435 : vector<8x128xf32>
    %438 = arith.divf %436, %437 : vector<8x128xf32>
    %439 = arith.index_cast %c6_i32 : i32 to index
    %c0_176 = arith.constant 0 : index
    %c256_177 = arith.constant 256 : index
    %440 = vector.load %arg3[%439, %c0_176, %c256_177] : memref<8x8x512xbf16, #tpu.memory_space<vmem>>, vector<1x8x128xbf16>
    %441 = vector.shape_cast %440 : vector<1x8x128xbf16> to vector<8x128xbf16>
    %c0_178 = arith.constant 0 : index
    %c256_179 = arith.constant 256 : index
    %442 = vector.load %arg8[%c0_178, %c256_179] : memref<128x512xbf16, #tpu.memory_space<vmem>>, vector<128x128xbf16>
    %cst_180 = arith.constant dense<0.000000e+00> : vector<8x128xf32>
    %443 = tpu.matmul %414, %442, %cst_180 {dimension_numbers = #tpu.dot_dimension_numbers<[1], [0], [0], [1], [0, 0, 1, 1], [], []>} : vector<8x128xbf16>, vector<128x128xbf16>, vector<8x128xf32> -> vector<8x128xf32>
    %444 = arith.extf %441 : vector<8x128xbf16> to vector<8x128xf32>
    %445 = arith.addf %444, %443 : vector<8x128xf32>
    %446 = math.tanh %445 : vector<8x128xf32>
    %447 = arith.index_cast %c6_i32 : i32 to index
    %c0_181 = arith.constant 0 : index
    %c384_182 = arith.constant 384 : index
    %448 = vector.load %arg3[%447, %c0_181, %c384_182] : memref<8x8x512xbf16, #tpu.memory_space<vmem>>, vector<1x8x128xbf16>
    %449 = vector.shape_cast %448 : vector<1x8x128xbf16> to vector<8x128xbf16>
    %c0_183 = arith.constant 0 : index
    %c384_184 = arith.constant 384 : index
    %450 = vector.load %arg8[%c0_183, %c384_184] : memref<128x512xbf16, #tpu.memory_space<vmem>>, vector<128x128xbf16>
    %cst_185 = arith.constant dense<0.000000e+00> : vector<8x128xf32>
    %451 = tpu.matmul %414, %450, %cst_185 {dimension_numbers = #tpu.dot_dimension_numbers<[1], [0], [0], [1], [0, 0, 1, 1], [], []>} : vector<8x128xbf16>, vector<128x128xbf16>, vector<8x128xf32> -> vector<8x128xf32>
    %452 = arith.extf %449 : vector<8x128xbf16> to vector<8x128xf32>
    %453 = arith.addf %452, %451 : vector<8x128xf32>
    %454 = arith.negf %453 : vector<8x128xf32>
    %455 = math.exp %454 : vector<8x128xf32>
    %cst_186 = arith.constant 1.000000e+00 : f32
    %456 = vector.broadcast %cst_186 : f32 to vector<8x128xf32>
    %457 = arith.addf %456, %455 : vector<8x128xf32>
    %458 = arith.divf %456, %457 : vector<8x128xf32>
    %459 = arith.mulf %438, %405 : vector<8x128xf32>
    %460 = arith.mulf %426, %446 : vector<8x128xf32>
    %461 = arith.addf %459, %460 : vector<8x128xf32>
    %462 = math.tanh %461 : vector<8x128xf32>
    %463 = arith.mulf %458, %462 : vector<8x128xf32>
    %c8_i32_187 = arith.constant 8 : i32
    %464 = arith.muli %arg1, %c8_i32_187 : i32
    %465 = arith.addi %464, %c6_i32 : i32
    %466 = vector.broadcast %465 : i32 to vector<8x1xi32>
    %467 = arith.cmpi slt, %466, %3 : vector<8x1xi32>
    %468 = vector.shape_cast %467 : vector<8x1xi1> to vector<8x1xi1>
    %469 = vector.broadcast %468 : vector<8x1xi1> to vector<8x128xi1>
    %470 = arith.select %469, %463, %402 : vector<8x128xi1>, vector<8x128xf32>
    %471 = vector.shape_cast %467 : vector<8x1xi1> to vector<8x1xi1>
    %472 = vector.broadcast %471 : vector<8x1xi1> to vector<8x128xi1>
    %473 = arith.select %472, %461, %405 : vector<8x128xi1>, vector<8x128xf32>
    %cst_188 = arith.constant 0.000000e+00 : f32
    %474 = vector.shape_cast %467 : vector<8x1xi1> to vector<8x1xi1>
    %475 = vector.broadcast %474 : vector<8x1xi1> to vector<8x128xi1>
    %476 = vector.broadcast %cst_188 : f32 to vector<8x128xf32>
    %477 = arith.select %475, %463, %476 : vector<8x128xi1>, vector<8x128xf32>
    %478 = arith.index_cast %c6_i32 : i32 to index
    %c0_189 = arith.constant 0 : index
    %c0_190 = arith.constant 0 : index
    %479 = vector.load %arg5[%478, %c0_189, %c0_190] : memref<8x8x128xf32, #tpu.memory_space<vmem>>, vector<1x8x128xf32>
    %480 = vector.shape_cast %479 : vector<1x8x128xf32> to vector<8x128xf32>
    %481 = vector.shape_cast %477 : vector<8x128xf32> to vector<1x8x128xf32>
    tpu.vector_store %arg5[%478, %c0_189, %c0_190], %481 {strides = array<i32>} : memref<8x8x128xf32, #tpu.memory_space<vmem>>, vector<1x8x128xf32>,
    %c7_i32 = arith.constant 7 : i32
    %482 = arith.truncf %470 : vector<8x128xf32> to vector<8x128xbf16>
    %483 = arith.index_cast %c7_i32 : i32 to index
    %c0_191 = arith.constant 0 : index
    %c0_192 = arith.constant 0 : index
    %484 = vector.load %arg3[%483, %c0_191, %c0_192] : memref<8x8x512xbf16, #tpu.memory_space<vmem>>, vector<1x8x128xbf16>
    %485 = vector.shape_cast %484 : vector<1x8x128xbf16> to vector<8x128xbf16>
    %c0_193 = arith.constant 0 : index
    %c0_194 = arith.constant 0 : index
    %486 = vector.load %arg8[%c0_193, %c0_194] : memref<128x512xbf16, #tpu.memory_space<vmem>>, vector<128x128xbf16>
    %cst_195 = arith.constant dense<0.000000e+00> : vector<8x128xf32>
    %487 = tpu.matmul %482, %486, %cst_195 {dimension_numbers = #tpu.dot_dimension_numbers<[1], [0], [0], [1], [0, 0, 1, 1], [], []>} : vector<8x128xbf16>, vector<128x128xbf16>, vector<8x128xf32> -> vector<8x128xf32>
    %488 = arith.extf %485 : vector<8x128xbf16> to vector<8x128xf32>
    %489 = arith.addf %488, %487 : vector<8x128xf32>
    %490 = arith.negf %489 : vector<8x128xf32>
    %491 = math.exp %490 : vector<8x128xf32>
    %cst_196 = arith.constant 1.000000e+00 : f32
    %492 = vector.broadcast %cst_196 : f32 to vector<8x128xf32>
    %493 = arith.addf %492, %491 : vector<8x128xf32>
    %494 = arith.divf %492, %493 : vector<8x128xf32>
    %495 = arith.index_cast %c7_i32 : i32 to index
    %c0_197 = arith.constant 0 : index
    %c128_198 = arith.constant 128 : index
    %496 = vector.load %arg3[%495, %c0_197, %c128_198] : memref<8x8x512xbf16, #tpu.memory_space<vmem>>, vector<1x8x128xbf16>
    %497 = vector.shape_cast %496 : vector<1x8x128xbf16> to vector<8x128xbf16>
    %c0_199 = arith.constant 0 : index
    %c128_200 = arith.constant 128 : index
    %498 = vector.load %arg8[%c0_199, %c128_200] : memref<128x512xbf16, #tpu.memory_space<vmem>>, vector<128x128xbf16>
    %cst_201 = arith.constant dense<0.000000e+00> : vector<8x128xf32>
    %499 = tpu.matmul %482, %498, %cst_201 {dimension_numbers = #tpu.dot_dimension_numbers<[1], [0], [0], [1], [0, 0, 1, 1], [], []>} : vector<8x128xbf16>, vector<128x128xbf16>, vector<8x128xf32> -> vector<8x128xf32>
    %500 = arith.extf %497 : vector<8x128xbf16> to vector<8x128xf32>
    %501 = arith.addf %500, %499 : vector<8x128xf32>
    %502 = arith.negf %501 : vector<8x128xf32>
    %503 = math.exp %502 : vector<8x128xf32>
    %cst_202 = arith.constant 1.000000e+00 : f32
    %504 = vector.broadcast %cst_202 : f32 to vector<8x128xf32>
    %505 = arith.addf %504, %503 : vector<8x128xf32>
    %506 = arith.divf %504, %505 : vector<8x128xf32>
    %507 = arith.index_cast %c7_i32 : i32 to index
    %c0_203 = arith.constant 0 : index
    %c256_204 = arith.constant 256 : index
    %508 = vector.load %arg3[%507, %c0_203, %c256_204] : memref<8x8x512xbf16, #tpu.memory_space<vmem>>, vector<1x8x128xbf16>
    %509 = vector.shape_cast %508 : vector<1x8x128xbf16> to vector<8x128xbf16>
    %c0_205 = arith.constant 0 : index
    %c256_206 = arith.constant 256 : index
    %510 = vector.load %arg8[%c0_205, %c256_206] : memref<128x512xbf16, #tpu.memory_space<vmem>>, vector<128x128xbf16>
    %cst_207 = arith.constant dense<0.000000e+00> : vector<8x128xf32>
    %511 = tpu.matmul %482, %510, %cst_207 {dimension_numbers = #tpu.dot_dimension_numbers<[1], [0], [0], [1], [0, 0, 1, 1], [], []>} : vector<8x128xbf16>, vector<128x128xbf16>, vector<8x128xf32> -> vector<8x128xf32>
    %512 = arith.extf %509 : vector<8x128xbf16> to vector<8x128xf32>
    %513 = arith.addf %512, %511 : vector<8x128xf32>
    %514 = math.tanh %513 : vector<8x128xf32>
    %515 = arith.index_cast %c7_i32 : i32 to index
    %c0_208 = arith.constant 0 : index
    %c384_209 = arith.constant 384 : index
    %516 = vector.load %arg3[%515, %c0_208, %c384_209] : memref<8x8x512xbf16, #tpu.memory_space<vmem>>, vector<1x8x128xbf16>
    %517 = vector.shape_cast %516 : vector<1x8x128xbf16> to vector<8x128xbf16>
    %c0_210 = arith.constant 0 : index
    %c384_211 = arith.constant 384 : index
    %518 = vector.load %arg8[%c0_210, %c384_211] : memref<128x512xbf16, #tpu.memory_space<vmem>>, vector<128x128xbf16>
    %cst_212 = arith.constant dense<0.000000e+00> : vector<8x128xf32>
    %519 = tpu.matmul %482, %518, %cst_212 {dimension_numbers = #tpu.dot_dimension_numbers<[1], [0], [0], [1], [0, 0, 1, 1], [], []>} : vector<8x128xbf16>, vector<128x128xbf16>, vector<8x128xf32> -> vector<8x128xf32>
    %520 = arith.extf %517 : vector<8x128xbf16> to vector<8x128xf32>
    %521 = arith.addf %520, %519 : vector<8x128xf32>
    %522 = arith.negf %521 : vector<8x128xf32>
    %523 = math.exp %522 : vector<8x128xf32>
    %cst_213 = arith.constant 1.000000e+00 : f32
    %524 = vector.broadcast %cst_213 : f32 to vector<8x128xf32>
    %525 = arith.addf %524, %523 : vector<8x128xf32>
    %526 = arith.divf %524, %525 : vector<8x128xf32>
    %527 = arith.mulf %506, %473 : vector<8x128xf32>
    %528 = arith.mulf %494, %514 : vector<8x128xf32>
    %529 = arith.addf %527, %528 : vector<8x128xf32>
    %530 = math.tanh %529 : vector<8x128xf32>
    %531 = arith.mulf %526, %530 : vector<8x128xf32>
    %c8_i32_214 = arith.constant 8 : i32
    %532 = arith.muli %arg1, %c8_i32_214 : i32
    %533 = arith.addi %532, %c7_i32 : i32
    %534 = vector.broadcast %533 : i32 to vector<8x1xi32>
    %535 = arith.cmpi slt, %534, %3 : vector<8x1xi32>
    %536 = vector.shape_cast %535 : vector<8x1xi1> to vector<8x1xi1>
    %537 = vector.broadcast %536 : vector<8x1xi1> to vector<8x128xi1>
    %538 = arith.select %537, %531, %470 : vector<8x128xi1>, vector<8x128xf32>
    %539 = vector.shape_cast %535 : vector<8x1xi1> to vector<8x1xi1>
    %540 = vector.broadcast %539 : vector<8x1xi1> to vector<8x128xi1>
    %541 = arith.select %540, %529, %473 : vector<8x128xi1>, vector<8x128xf32>
    %cst_215 = arith.constant 0.000000e+00 : f32
    %542 = vector.shape_cast %535 : vector<8x1xi1> to vector<8x1xi1>
    %543 = vector.broadcast %542 : vector<8x1xi1> to vector<8x128xi1>
    %544 = vector.broadcast %cst_215 : f32 to vector<8x128xf32>
    %545 = arith.select %543, %531, %544 : vector<8x128xi1>, vector<8x128xf32>
    %546 = arith.index_cast %c7_i32 : i32 to index
    %c0_216 = arith.constant 0 : index
    %c0_217 = arith.constant 0 : index
    %547 = vector.load %arg5[%546, %c0_216, %c0_217] : memref<8x8x128xf32, #tpu.memory_space<vmem>>, vector<1x8x128xf32>
    %548 = vector.shape_cast %547 : vector<1x8x128xf32> to vector<8x128xf32>
    %549 = vector.shape_cast %545 : vector<8x128xf32> to vector<1x8x128xf32>
    tpu.vector_store %arg5[%546, %c0_216, %c0_217], %549 {strides = array<i32>} : memref<8x8x128xf32, #tpu.memory_space<vmem>>, vector<1x8x128xf32>,
    %c8_i32_218 = arith.constant 8 : i32
    %c0_219 = arith.constant 0 : index
    %c0_220 = arith.constant 0 : index
    %550 = vector.load %arg6[%c0_219, %c0_220] : memref<8x128xf32, #tpu.memory_space<vmem>>, vector<8x128xf32>
    tpu.vector_store %arg6[%c0_219, %c0_220], %538 {strides = array<i32>} : memref<8x128xf32, #tpu.memory_space<vmem>>, vector<8x128xf32>,
    %c0_221 = arith.constant 0 : index
    %c0_222 = arith.constant 0 : index
    %551 = vector.load %arg7[%c0_221, %c0_222] : memref<8x128xf32, #tpu.memory_space<vmem>>, vector<8x128xf32>
    tpu.vector_store %arg7[%c0_221, %c0_222], %541 {strides = array<i32>} : memref<8x128xf32, #tpu.memory_space<vmem>>, vector<8x128xf32>,
    return
  }
  func.func @transform_0(%arg0: i32, %arg1: i32) -> (i32, i32) {
    %c0_i32 = arith.constant 0 : i32
    %c0_i32_0 = arith.constant 0 : i32
    return %arg0, %c0_i32 : i32, i32
  }
  func.func @transform_1(%arg0: i32, %arg1: i32) -> (i32, i32, i32) {
    %c0_i32 = arith.constant 0 : i32
    %c0_i32_0 = arith.constant 0 : i32
    return %arg1, %arg0, %c0_i32 : i32, i32, i32
  }
  func.func @transform_3(%arg0: i32, %arg1: i32) -> (i32, i32, i32) {
    %c0_i32 = arith.constant 0 : i32
    %c0_i32_0 = arith.constant 0 : i32
    return %arg1, %arg0, %c0_i32 : i32, i32, i32
  }
  func.func @transform_4(%arg0: i32, %arg1: i32) -> (i32, i32) {
    %c0_i32 = arith.constant 0 : i32
    %c0_i32_0 = arith.constant 0 : i32
    return %arg0, %c0_i32 : i32, i32
  }
  func.func @transform_5(%arg0: i32, %arg1: i32) -> (i32, i32) {
    %c0_i32 = arith.constant 0 : i32
    %c0_i32_0 = arith.constant 0 : i32
    return %arg0, %c0_i32 : i32, i32
  }
}

</mosaic_0001>

<llo_original>
// kernel: batch_rnn_forward.1
$region0: #{batch_rnn_forward.1}
  #allocation0 [shape = 'u32[]', space=smem, size = 0x4, offset = 0x4, fixed_abs, tag = 'smem constant byte address 0x4 - core index']
  #allocation1 [shape = 'u32[72,128]{1,0:T(1,128)}', space=vmem, size = 0x9000, scoped, tag = 'internal scratch']
  #allocation2 [shape = 'bf16[128,512]{1,0:T(8,128)(2,1)}', space=vmem, size = 0x20000, scoped, tag = 'scratch operand']
  #allocation4 [shape = 's32[]', space=sflag, size = 0x4, offset = 0, fixed_abs, tag = 'sflag constant byte address 0x0 - dummy sync flag']
  %s0 = inlined_call_operand.vmem [shape: s32[8,1], index: 0, kind: input, shape index: {}]
  %s1 = inlined_call_operand.vmem [shape: bf16[16,8,512], index: 1, kind: input, shape index: {}]
  %s2 = inlined_call_operand.vmem [shape: bf16[128,512], index: 2, kind: input, shape index: {}]
  %s3 = inlined_call_operand.vmem [shape: f32[16,8,128], index: 3, kind: output, shape index: {0}]
  %s4 = inlined_call_operand.vmem [shape: f32[8,128], index: 4, kind: output, shape index: {1}]
  %s5 = inlined_call_operand.vmem [shape: f32[8,128], index: 5, kind: output, shape index: {2}]
  %6 = xla_tuple %s3, %s4, %s5
  %s7 = sld [smem:[#allocation0]]
  $region81: #{batch_rnn_forward.1} parent=0
    _
  %s9 = ssub.s32 1, %s7
  %s10 = scalar_select 0, %s9, %s7
  loop: start=0, step=1, limit=4
  $region2: #{batch_rnn_forward.1} parent=0 // loop_pre_header
    _
  $region3: #{batch_rnn_forward.1} parent=0 // loop_header
    %s12 = sphi 0, %s16
    %p13 = scmp.ge.s32.totalorder %s12, 4
    %s19 = sphi 0, %s31
    %s20 = sphi 0, %s27
    %s21 = sphi 0, %s19
    %s22 = sphi 0, %s20
    %s23 = sphi 0, %s21
    %s24 = sphi 0, %s22
    %s34 = sphi 0, %s36
    %s37 = sphi 0, %s34
    %s38 = sphi 0, %s37
    %s54 = sphi 0, %s38
    %s62 = sphi 0, %s64
    %s65 = sphi 0, %s62
    %s66 = sphi 0, %s65
    %s82 = sphi 0, %s66
    %s90 = sphi 0, %s92
    %s93 = sphi 0, %s90
    %s94 = sphi 0, %s93
    %s110 = sphi 0, %s94
    %s116 = sphi 0, %s118
    %s119 = sphi 0, %s116
    %s120 = sphi 0, %s119
    %s136 = sphi 0, %s120
    %s142 = sphi 0, %s144
    %s145 = sphi 0, %s142
    %s146 = sphi 0, %s145
    %s162 = sphi 0, %s146
  $region4: #{batch_rnn_forward.1} parent=0 // loop_header_branch
    %15 = sbr.rel (%p13) target = $region8
  $region5: #{batch_rnn_forward.1} parent=0 // loop_body
    %s17 = ssub.s32 %s12, 1
    %s18 = ssub.s32 %s12, 2
    %s25 = sadd.s32 1, %s20
    %p26 = scmp.ge.s32.totalorder %s25, 2
    %s27 = scalar_select %p26, 0, %s25
    %s28 = sadd.s32 1, %s19
    %s29 = scalar_select %p26, %s28, %s19
    %p30 = scmp.ge.s32.totalorder %s29, 1
    %s31 = scalar_select %p30, 0, %s29
    %s32 = ssub.s32 %s19, %s31
    %p33 = scmp.eq.s32.totalorder %s32, 0
    %s35 = sadd.s32 %s34, 1
    %s36 = scalar_select %p33, %s34, %s35
    %p39 = pneg %p33
    %p40 = scmp.eq.s32.totalorder %s12, 1
    %p41 = por %p39, %p40
    %p42 = scmp.ne.s32.totalorder %s34, %s37
    %p43 = scmp.eq.s32.totalorder %s12, 0
    %p44 = por %p42, %p43
    %p45 = scmp.ne.s32.totalorder %s34, %s37
    %p46 = scmp.eq.s32.totalorder %s17, 1
    %p47 = por %p45, %p46
    %p48 = scmp.ne.s32.totalorder %s37, %s38
    %p49 = scmp.eq.s32.totalorder %s17, 0
    %p50 = por %p48, %p49
    %p51 = scmp.ne.s32.totalorder %s37, %s38
    %p52 = scmp.eq.s32.totalorder %s18, 1
    %p53 = por %p51, %p52
    %p55 = scmp.ne.s32.totalorder %s38, %s54
    %p56 = scmp.eq.s32.totalorder %s18, 0
    %p57 = por %p55, %p56
    %s58 = ssub.s32 %s20, %s27
    %s59 = ssub.s32 %s19, %s31
    %s60 = sor.u32 %s58, %s59
    %p61 = scmp.eq.s32.totalorder %s60, 0
    %s63 = sadd.s32 %s62, 1
    %s64 = scalar_select %p61, %s62, %s63
    %p67 = pneg %p61
    %p68 = scmp.eq.s32.totalorder %s12, 1
    %p69 = por %p67, %p68
    %p70 = scmp.ne.s32.totalorder %s62, %s65
    %p71 = scmp.eq.s32.totalorder %s12, 0
    %p72 = por %p70, %p71
    %p73 = scmp.ne.s32.totalorder %s62, %s65
    %p74 = scmp.eq.s32.totalorder %s17, 1
    %p75 = por %p73, %p74
    %p76 = scmp.ne.s32.totalorder %s65, %s66
    %p77 = scmp.eq.s32.totalorder %s17, 0
    %p78 = por %p76, %p77
    %p79 = scmp.ne.s32.totalorder %s65, %s66
    %p80 = scmp.eq.s32.totalorder %s18, 1
    %p81 = por %p79, %p80
    %p83 = scmp.ne.s32.totalorder %s66, %s82
    %p84 = scmp.eq.s32.totalorder %s18, 0
    %p85 = por %p83, %p84
    %s86 = ssub.s32 %s20, %s27
    %s87 = ssub.s32 %s19, %s31
    %s88 = sor.u32 %s86, %s87
    %p89 = scmp.eq.s32.totalorder %s88, 0
    %s91 = sadd.s32 %s90, 1
    %s92 = scalar_select %p89, %s90, %s91
    %p95 = pneg %p89
    %p96 = scmp.eq.s32.totalorder %s12, 1
    %p97 = por %p95, %p96
    %p98 = scmp.ne.s32.totalorder %s90, %s93
    %p99 = scmp.eq.s32.totalorder %s12, 0
    %p100 = por %p98, %p99
    %p101 = scmp.ne.s32.totalorder %s90, %s93
    %p102 = scmp.eq.s32.totalorder %s17, 1
    %p103 = por %p101, %p102
    %p104 = scmp.ne.s32.totalorder %s93, %s94
    %p105 = scmp.eq.s32.totalorder %s17, 0
    %p106 = por %p104, %p105
    %p107 = scmp.ne.s32.totalorder %s93, %s94
    %p108 = scmp.eq.s32.totalorder %s18, 1
    %p109 = por %p107, %p108
    %p111 = scmp.ne.s32.totalorder %s94, %s110
    %p112 = scmp.eq.s32.totalorder %s18, 0
    %p113 = por %p111, %p112
    %s114 = ssub.s32 %s19, %s31
    %p115 = scmp.eq.s32.totalorder %s114, 0
    %s117 = sadd.s32 %s116, 1
    %s118 = scalar_select %p115, %s116, %s117
    %p121 = pneg %p115
    %p122 = scmp.eq.s32.totalorder %s12, 1
    %p123 = por %p121, %p122
    %p124 = scmp.ne.s32.totalorder %s116, %s119
    %p125 = scmp.eq.s32.totalorder %s12, 0
    %p126 = por %p124, %p125
    %p127 = scmp.ne.s32.totalorder %s116, %s119
    %p128 = scmp.eq.s32.totalorder %s17, 1
    %p129 = por %p127, %p128
    %p130 = scmp.ne.s32.totalorder %s119, %s120
    %p131 = scmp.eq.s32.totalorder %s17, 0
    %p132 = por %p130, %p131
    %p133 = scmp.ne.s32.totalorder %s119, %s120
    %p134 = scmp.eq.s32.totalorder %s18, 1
    %p135 = por %p133, %p134
    %p137 = scmp.ne.s32.totalorder %s120, %s136
    %p138 = scmp.eq.s32.totalorder %s18, 0
    %p139 = por %p137, %p138
    %s140 = ssub.s32 %s19, %s31
    %p141 = scmp.eq.s32.totalorder %s140, 0
    %s143 = sadd.s32 %s142, 1
    %s144 = scalar_select %p141, %s142, %s143
    %p147 = pneg %p141
    %p148 = scmp.eq.s32.totalorder %s12, 1
    %p149 = por %p147, %p148
    %p150 = scmp.ne.s32.totalorder %s142, %s145
    %p151 = scmp.eq.s32.totalorder %s12, 0
    %p152 = por %p150, %p151
    %p153 = scmp.ne.s32.totalorder %s142, %s145
    %p154 = scmp.eq.s32.totalorder %s17, 1
    %p155 = por %p153, %p154
    %p156 = scmp.ne.s32.totalorder %s145, %s146
    %p157 = scmp.eq.s32.totalorder %s17, 0
    %p158 = por %p156, %p157
    %p159 = scmp.ne.s32.totalorder %s145, %s146
    %p160 = scmp.eq.s32.totalorder %s18, 1
    %p161 = por %p159, %p160
    %p163 = scmp.ne.s32.totalorder %s146, %s162
    %p164 = scmp.eq.s32.totalorder %s18, 0
    %p165 = por %p163, %p164
    %p166 = scmp.le.s32.totalorder 1, %s12
    %p167 = scmp.lt.s32.totalorder %s12, 3
    %p168 = pnand %p166, %p167
    %p169 = pneg %p168
    // Predicated region
    $region9: #{batch_rnn_forward.1} parent=5 // pred_check
      _
    $region10: #{batch_rnn_forward.1} parent=5 // pred_check_branch
      %171 = sbr.rel (%p168) target = $region12
    $region11: #{batch_rnn_forward.1} parent=5 // pred_region
      %s172 = ssub.s32 %s12, 1
      // Predicated region
      $region13: #{batch_rnn_forward.1} parent=11 // pred_check
        %p173 = pneg %p50
      $region14: #{batch_rnn_forward.1} parent=11 // pred_check_branch
        %175 = sbr.rel (%p173) target = $region16
      $region15: #{batch_rnn_forward.1} parent=11 // pred_region
        %p176 = scmp.lt.s32.totalorder %s21, 0
        %s177 = scalar_select %p176, %s21, 0
        %s178 = smul.addr %s177, 8
        %s179 = scalar_lea.vmem %s0, %s178
      $region16: #{batch_rnn_forward.1} parent=11 // pred_fallthru
        _
    $region12: #{batch_rnn_forward.1} parent=5 // pred_fallthru
      _
    %p180 = scmp.lt.s32.totalorder %s12, 2
    // Predicated region
    $region17: #{batch_rnn_forward.1} parent=5 // pred_check
      %p181 = pneg %p180
    $region18: #{batch_rnn_forward.1} parent=5 // pred_check_branch
      %183 = sbr.rel (%p181) target = $region20
    $region19: #{batch_rnn_forward.1} parent=5 // pred_region
      // Predicated region
      $region21: #{batch_rnn_forward.1} parent=19 // pred_check
        %p184 = pneg %p72
      $region22: #{batch_rnn_forward.1} parent=19 // pred_check_branch
        %186 = sbr.rel (%p184) target = $region24
      $region23: #{batch_rnn_forward.1} parent=19 // pred_region
        %s187 = smul.u32 8, %s20
        %p188 = scmp.lt.s32.totalorder %s187, 15
        %s189 = scalar_select %p188, %s187, 15
        %p190 = scmp.lt.s32.totalorder %s19, 0
        %s191 = scalar_select %p190, %s19, 0
        %s192 = smul.addr %s191, 4
        %s193 = smul.addr %s189, 4
        %s194 = sadd.s32 %s192, %s193
        %s195 = smul.addr %s194, 4
        %s196 = scalar_lea.vmem %s1, %s195
        %s197 = smul.u32 8, %s20
      $region24: #{batch_rnn_forward.1} parent=19 // pred_fallthru
        _
    $region20: #{batch_rnn_forward.1} parent=5 // pred_fallthru
      _
    %p198 = scmp.le.s32.totalorder 1, %s12
    %p199 = scmp.lt.s32.totalorder %s12, 3
    %p200 = pnand %p198, %p199
    %p201 = pneg %p200
    // Predicated region
    $region25: #{batch_rnn_forward.1} parent=5 // pred_check
      _
    $region26: #{batch_rnn_forward.1} parent=5 // pred_check_branch
      %203 = sbr.rel (%p200) target = $region28
    $region27: #{batch_rnn_forward.1} parent=5 // pred_region
      %s204 = ssub.s32 %s12, 1
      %p205 = scmp.lt.s32.totalorder %s21, 0
      %s206 = scalar_select %p205, %s21, 0
      %s207 = smul.addr %s206, 8
      %s208 = scalar_lea.vmem %s0, %s207
      %p209 = pneg %p50
      %p210 = pneg %p47
      %s211 = smul.u32 8, %s22
      %p212 = scmp.lt.s32.totalorder %s211, 15
      %s213 = scalar_select %p212, %s211, 15
      %p214 = scmp.lt.s32.totalorder %s21, 0
      %s215 = scalar_select %p214, %s21, 0
      %s216 = smul.addr %s215, 4
      %s217 = smul.addr %s213, 4
      %s218 = sadd.s32 %s216, %s217
      %s219 = smul.addr %s218, 4
      %s220 = scalar_lea.vmem %s1, %s219
      %p221 = pneg %p78
      %p222 = pneg %p75
      %p223 = pneg %p106
      %p224 = pneg %p103
      %s225 = smul.u32 8, %s22
      %p226 = scmp.lt.s32.totalorder %s225, 15
      %s227 = scalar_select %p226, %s225, 15
      %p228 = scmp.lt.s32.totalorder %s21, 0
      %s229 = scalar_select %p228, %s21, 0
      %s230 = sadd.s32 %s229, %s227
      %s231 = smul.addr %s230, 8
      %s232 = scalar_lea.vmem %s3, %s231
      %p233 = pneg %p132
      %p234 = pneg %p129
      %p235 = scmp.lt.s32.totalorder %s21, 0
      %s236 = scalar_select %p235, %s21, 0
      %s237 = smul.addr %s236, 8
      %s238 = scalar_lea.vmem %s4, %s237
      %p239 = pneg %p158
      %p240 = pneg %p155
      %p241 = scmp.lt.s32.totalorder %s21, 0
      %s242 = scalar_select %p241, %s21, 0
      %s243 = smul.addr %s242, 8
      %s244 = scalar_lea.vmem %s5, %s243
      %p245 = scmp.lt.s32.totalorder %s21, 0
      %s246 = scalar_select %p245, %s21, 0
      %s247 = smul.addr %s246, 8
      %s248 = scalar_lea.vmem %s0, %s247
      %s249 = smul.u32 8, %s22
      %p250 = scmp.lt.s32.totalorder %s249, 15
      %s251 = scalar_select %p250, %s249, 15
      %p252 = scmp.lt.s32.totalorder %s21, 0
      %s253 = scalar_select %p252, %s21, 0
      %s254 = smul.addr %s253, 4
      %s255 = smul.addr %s251, 4
      %s256 = sadd.s32 %s254, %s255
      %s257 = smul.addr %s256, 4
      %s258 = scalar_lea.vmem %s1, %s257
      %s259 = smul.u32 8, %s22
      %s260 = smul.u32 8, %s22
      %p261 = scmp.lt.s32.totalorder %s260, 15
      %s262 = scalar_select %p261, %s260, 15
      %p263 = scmp.lt.s32.totalorder %s21, 0
      %s264 = scalar_select %p263, %s21, 0
      %s265 = sadd.s32 %s264, %s262
      %s266 = smul.addr %s265, 8
      %s267 = scalar_lea.vmem %s3, %s266
      %s268 = smul.u32 8, %s22
      %p269 = scmp.lt.s32.totalorder %s21, 0
      %s270 = scalar_select %p269, %s21, 0
      %s271 = smul.addr %s270, 8
      %s272 = scalar_lea.vmem %s4, %s271
      %p273 = scmp.lt.s32.totalorder %s21, 0
      %s274 = scalar_select %p273, %s21, 0
      %s275 = smul.addr %s274, 8
      %s276 = scalar_lea.vmem %s5, %s275
      %p277 = scmp.eq.s32.totalorder %s22, 0
      // Predicated region
      $region29: #{batch_rnn_forward.1} parent=27 // pred_check
        %p278 = pneg %p277
      $region30: #{batch_rnn_forward.1} parent=27 // pred_check_branch
        %280 = sbr.rel (%p278) target = $region32
      $region31: #{batch_rnn_forward.1} parent=27 // pred_region
        $region33: #{batch_rnn_forward.1} parent=31
          #allocation3 [shape = 's32[1]{0}', space=sflag, size = 0x4, scoped, tag = 'scoped memory for batch_rnn_forward.1']
          // Predicated region
          $region34: #{batch_rnn_forward.1} parent=33 // pred_check
            _
          $region35: #{batch_rnn_forward.1} parent=33 // pred_check_branch
            %282 = sbr.rel (0) target = $region37
          $region36: #{batch_rnn_forward.1} parent=33 // pred_region
            loop: start=0, step=1, limit=1
            $region38: #{batch_rnn_forward.1} parent=36 // loop_pre_header
              _
            $region39: #{batch_rnn_forward.1} parent=36 // loop_header
              %s284 = sphi 0, %s288
              %p285 = scmp.ge.s32.totalorder %s284, 1
              %s289 = sphi %s2, %s2
              %s290 = sphi [#allocation2], [#allocation2]
            $region40: #{batch_rnn_forward.1} parent=36 // loop_header_branch
              %287 = sbr.rel (%p285) target = $region44
            $region41: #{batch_rnn_forward.1} parent=36 // loop_body
              %v291 = vld [vmem:[%s289] sm:$0xff]
              %292 = vst [vmem:[%s290] sm:$0xff] %v291
              %v293 = vld [vmem:[%s289 + $0x8] sm:$0xff]
              %294 = vst [vmem:[%s290 + $0x8] sm:$0xff] %v293
              %v295 = vld [vmem:[%s289 + $0x10] sm:$0xff]
              %296 = vst [vmem:[%s290 + $0x10] sm:$0xff] %v295
              %v297 = vld [vmem:[%s289 + $0x18] sm:$0xff]
              %298 = vst [vmem:[%s290 + $0x18] sm:$0xff] %v297
              %v299 = vld [vmem:[%s289 + $0x20] sm:$0xff]
              %300 = vst [vmem:[%s290 + $0x20] sm:$0xff] %v299
              %v301 = vld [vmem:[%s289 + $0x28] sm:$0xff]
              %302 = vst [vmem:[%s290 + $0x28] sm:$0xff] %v301
              %v303 = vld [vmem:[%s289 + $0x30] sm:$0xff]
              %304 = vst [vmem:[%s290 + $0x30] sm:$0xff] %v303
              %v305 = vld [vmem:[%s289 + $0x38] sm:$0xff]
              %306 = vst [vmem:[%s290 + $0x38] sm:$0xff] %v305
              %v307 = vld [vmem:[%s289 + $0x40] sm:$0xff]
              %308 = vst [vmem:[%s290 + $0x40] sm:$0xff] %v307
              %v309 = vld [vmem:[%s289 + $0x48] sm:$0xff]
              %310 = vst [vmem:[%s290 + $0x48] sm:$0xff] %v309
              %v311 = vld [vmem:[%s289 + $0x50] sm:$0xff]
              %312 = vst [vmem:[%s290 + $0x50] sm:$0xff] %v311
              %v313 = vld [vmem:[%s289 + $0x58] sm:$0xff]
              %314 = vst [vmem:[%s290 + $0x58] sm:$0xff] %v313
              %v315 = vld [vmem:[%s289 + $0x60] sm:$0xff]
              %316 = vst [vmem:[%s290 + $0x60] sm:$0xff] %v315
              %v317 = vld [vmem:[%s289 + $0x68] sm:$0xff]
              %318 = vst [vmem:[%s290 + $0x68] sm:$0xff] %v317
              %v319 = vld [vmem:[%s289 + $0x70] sm:$0xff]
              %320 = vst [vmem:[%s290 + $0x70] sm:$0xff] %v319
              %v321 = vld [vmem:[%s289 + $0x78] sm:$0xff]
              %322 = vst [vmem:[%s290 + $0x78] sm:$0xff] %v321
              %v323 = vld [vmem:[%s289 + $0x80] sm:$0xff]
              %324 = vst [vmem:[%s290 + $0x80] sm:$0xff] %v323
              %v325 = vld [vmem:[%s289 + $0x88] sm:$0xff]
              %326 = vst [vmem:[%s290 + $0x88] sm:$0xff] %v325
              %v327 = vld [vmem:[%s289 + $0x90] sm:$0xff]
              %328 = vst [vmem:[%s290 + $0x90] sm:$0xff] %v327
              %v329 = vld [vmem:[%s289 + $0x98] sm:$0xff]
              %330 = vst [vmem:[%s290 + $0x98] sm:$0xff] %v329
              %v331 = vld [vmem:[%s289 + $0xa0] sm:$0xff]
              %332 = vst [vmem:[%s290 + $0xa0] sm:$0xff] %v331
              %v333 = vld [vmem:[%s289 + $0xa8] sm:$0xff]
              %334 = vst [vmem:[%s290 + $0xa8] sm:$0xff] %v333
              %v335 = vld [vmem:[%s289 + $0xb0] sm:$0xff]
              %336 = vst [vmem:[%s290 + $0xb0] sm:$0xff] %v335
              %v337 = vld [vmem:[%s289 + $0xb8] sm:$0xff]
              %338 = vst [vmem:[%s290 + $0xb8] sm:$0xff] %v337
              %v339 = vld [vmem:[%s289 + $0xc0] sm:$0xff]
              %340 = vst [vmem:[%s290 + $0xc0] sm:$0xff] %v339
              %v341 = vld [vmem:[%s289 + $0xc8] sm:$0xff]
              %342 = vst [vmem:[%s290 + $0xc8] sm:$0xff] %v341
              %v343 = vld [vmem:[%s289 + $0xd0] sm:$0xff]
              %344 = vst [vmem:[%s290 + $0xd0] sm:$0xff] %v343
              %v345 = vld [vmem:[%s289 + $0xd8] sm:$0xff]
              %346 = vst [vmem:[%s290 + $0xd8] sm:$0xff] %v345
              %v347 = vld [vmem:[%s289 + $0xe0] sm:$0xff]
              %348 = vst [vmem:[%s290 + $0xe0] sm:$0xff] %v347
              %v349 = vld [vmem:[%s289 + $0xe8] sm:$0xff]
              %350 = vst [vmem:[%s290 + $0xe8] sm:$0xff] %v349
              %v351 = vld [vmem:[%s289 + $0xf0] sm:$0xff]
              %352 = vst [vmem:[%s290 + $0xf0] sm:$0xff] %v351
              %v353 = vld [vmem:[%s289 + $0xf8] sm:$0xff]
              %354 = vst [vmem:[%s290 + $0xf8] sm:$0xff] %v353
            $region42: #{batch_rnn_forward.1} parent=36 // loop_footer
              %s288 = sadd.s32 1, %s284
            $region43: #{batch_rnn_forward.1} parent=36 // loop_footer_branch
              %283 = sbr.rel target = $region39
            $region44: #{batch_rnn_forward.1} parent=36 // loop_exit
              _
          $region37: #{batch_rnn_forward.1} parent=33 // pred_fallthru
            _
          // Predicated region
          $region45: #{batch_rnn_forward.1} parent=33 // pred_check
            _
          $region46: #{batch_rnn_forward.1} parent=33 // pred_check_branch
            %356 = sbr.rel target = $region48
          $region47: #{batch_rnn_forward.1} parent=33 // pred_region
            _
          $region48: #{batch_rnn_forward.1} parent=33 // pred_fallthru
            _
          // Predicated region
          $region49: #{batch_rnn_forward.1} parent=33 // pred_check
            _
          $region50: #{batch_rnn_forward.1} parent=33 // pred_check_branch
            %359 = sbr.rel (0) target = $region52
          $region51: #{batch_rnn_forward.1} parent=33 // pred_region
            %360 = vsyncadd [#allocation3], 4096
          $region52: #{batch_rnn_forward.1} parent=33 // pred_fallthru
            _
          %s361 = smul.u32 4, 16
          %s362 = smul.u32 %s361, 4
          %s363 = sshll.u32 %s362, 4
          %364 = dma.done [#allocation3], %s363
        %365 = vst [vmem:[%s272] sm:$0xff] 0.0
        %366 = vst [vmem:[%s276] sm:$0xff] 0.0
      $region32: #{batch_rnn_forward.1} parent=27 // pred_fallthru
        _
      %v367 = vld [vmem:[%s248] sm:$0xff]
      %v368 = vld [vmem:[%s272] sm:$0xff]
      %v369 = vld [vmem:[%s276] sm:$0xff]
      %v370 = vpack.c.bf16 %v368, %v368
      %v371 = vld [vmem:[%s258] sm:$0xf]
      %v372 = vld [vmem:[#allocation2] sm:$0xf]
      %v373 = vld [vmem:[#allocation2 + $0x10] sm:$0xf]
      %v374 = vld [vmem:[#allocation2 + $0x20] sm:$0xf]
      %v375 = vld [vmem:[#allocation2 + $0x30] sm:$0xf]
      %v376 = vld [vmem:[#allocation2 + $0x40] sm:$0xf]
      %v377 = vld [vmem:[#allocation2 + $0x50] sm:$0xf]
      %v378 = vld [vmem:[#allocation2 + $0x60] sm:$0xf]
      %v379 = vld [vmem:[#allocation2 + $0x70] sm:$0xf]
      %v380 = vld [vmem:[#allocation2 + $0x80] sm:$0xf]
      %v381 = vld [vmem:[#allocation2 + $0x90] sm:$0xf]
      %v382 = vld [vmem:[#allocation2 + $0xa0] sm:$0xf]
      %v383 = vld [vmem:[#allocation2 + $0xb0] sm:$0xf]
      %v384 = vld [vmem:[#allocation2 + $0xc0] sm:$0xf]
      %v385 = vld [vmem:[#allocation2 + $0xd0] sm:$0xf]
      %v386 = vld [vmem:[#allocation2 + $0xe0] sm:$0xf]
      %v387 = vld [vmem:[#allocation2 + $0xf0] sm:$0xf]
      %v404 = vunpack.c.l.b16 %v372
      %v405 = vunpack.c.l.b16 %v373
      %v406 = vunpack.c.l.b16 %v374
      %v407 = vunpack.c.l.b16 %v375
      %v408 = vunpack.c.l.b16 %v376
      %v409 = vunpack.c.l.b16 %v377
      %v410 = vunpack.c.l.b16 %v378
      %v411 = vunpack.c.l.b16 %v379
      %v412 = vunpack.c.l.b16 %v380
      %v413 = vunpack.c.l.b16 %v381
      %v414 = vunpack.c.l.b16 %v382
      %v415 = vunpack.c.l.b16 %v383
      %v416 = vunpack.c.l.b16 %v384
      %v417 = vunpack.c.l.b16 %v385
      %v418 = vunpack.c.l.b16 %v386
      %v419 = vunpack.c.l.b16 %v387
      %v420 = vpack.c.b16 %v405, %v404
      %v421 = vpack.c.b16 %v407, %v406
      %v422 = vpack.c.b16 %v409, %v408
      %v423 = vpack.c.b16 %v411, %v410
      %v424 = vpack.c.b16 %v413, %v412
      %v425 = vpack.c.b16 %v415, %v414
      %v426 = vpack.c.b16 %v417, %v416
      %v427 = vpack.c.b16 %v419, %v418
      %436 = vmatpush.bf16.msra.mxu0 %v427
      %437 = vmatpush.bf16.msra.mxu0 %v426
      %438 = vmatpush.bf16.msra.mxu0 %v425
      %439 = vmatpush.bf16.msra.mxu0 %v424
      %440 = vmatpush.bf16.msra.mxu0 %v423
      %441 = vmatpush.bf16.msra.mxu0 %v422
      %442 = vmatpush.bf16.msra.mxu0 %v421
      %443 = vmatpush.bf16.msra.mxu0 %v420
      %444 = vmatmul.bf16.gmra.mxu0 %v370
      %v445 = vpop.f32.mrf.mxu0
      %v446 = vadd.f32 0.0, %v445
      %v447 = vpop.f32.mrf.mxu0
      %448 = vdwg.mxu0
      %v449 = vunpack.c.l.bf16 %v371
      %v450 = vadd.f32 %v449, %v446
      %v451 = vxor.u32 %v450, 2147483648
      %v452 = vmul.f32 %v451, 1.442695
      %v453 = vpow.pop %v452
      %v454 = vadd.f32 %v453, 1.0
      %v455 = vrcp.pop %v454
      %v456 = vmul.f32 %v454, %v455
      %v457 = vsub.f32 1.0, %v456
      %v458 = vmul.f32 %v455, %v457
      %v459 = vadd.f32 %v455, %v458
      %vm460 = vweird.f32 %v454
      %vm461 = vweird.f32 %v455
      %vm462 = vmor %vm460, %vm461
      %v463 = vsel %vm462, %v455, %v459
      %v464 = vand.u32 2147483647, %v454
      %vm465 = vcmp.eq.f32.partialorder %v464, 8.507059e+37
      %v466 = vand.u32 %v454, 2147483648
      %v467 = vor.u32 1.1754944e-38, %v466
      %v468 = vsel %vm465, %v467, %v463
      %v469 = vmul.f32 1.0, %v468
      %v470 = vld [vmem:[%s258 + $0x4] sm:$0xf]
      %v471 = vld [vmem:[#allocation2 + $0x4] sm:$0xf]
      %v472 = vld [vmem:[#allocation2 + $0x14] sm:$0xf]
      %v473 = vld [vmem:[#allocation2 + $0x24] sm:$0xf]
      %v474 = vld [vmem:[#allocation2 + $0x34] sm:$0xf]
      %v475 = vld [vmem:[#allocation2 + $0x44] sm:$0xf]
      %v476 = vld [vmem:[#allocation2 + $0x54] sm:$0xf]
      %v477 = vld [vmem:[#allocation2 + $0x64] sm:$0xf]
      %v478 = vld [vmem:[#allocation2 + $0x74] sm:$0xf]
      %v479 = vld [vmem:[#allocation2 + $0x84] sm:$0xf]
      %v480 = vld [vmem:[#allocation2 + $0x94] sm:$0xf]
      %v481 = vld [vmem:[#allocation2 + $0xa4] sm:$0xf]
      %v482 = vld [vmem:[#allocation2 + $0xb4] sm:$0xf]
      %v483 = vld [vmem:[#allocation2 + $0xc4] sm:$0xf]
      %v484 = vld [vmem:[#allocation2 + $0xd4] sm:$0xf]
      %v485 = vld [vmem:[#allocation2 + $0xe4] sm:$0xf]
      %v486 = vld [vmem:[#allocation2 + $0xf4] sm:$0xf]
      %v503 = vunpack.c.l.b16 %v471
      %v504 = vunpack.c.l.b16 %v472
      %v505 = vunpack.c.l.b16 %v473
      %v506 = vunpack.c.l.b16 %v474
      %v507 = vunpack.c.l.b16 %v475
      %v508 = vunpack.c.l.b16 %v476
      %v509 = vunpack.c.l.b16 %v477
      %v510 = vunpack.c.l.b16 %v478
      %v511 = vunpack.c.l.b16 %v479
      %v512 = vunpack.c.l.b16 %v480
      %v513 = vunpack.c.l.b16 %v481
      %v514 = vunpack.c.l.b16 %v482
      %v515 = vunpack.c.l.b16 %v483
      %v516 = vunpack.c.l.b16 %v484
      %v517 = vunpack.c.l.b16 %v485
      %v518 = vunpack.c.l.b16 %v486
      %v519 = vpack.c.b16 %v504, %v503
      %v520 = vpack.c.b16 %v506, %v505
      %v521 = vpack.c.b16 %v508, %v507
      %v522 = vpack.c.b16 %v510, %v509
      %v523 = vpack.c.b16 %v512, %v511
      %v524 = vpack.c.b16 %v514, %v513
      %v525 = vpack.c.b16 %v516, %v515
      %v526 = vpack.c.b16 %v518, %v517
      %535 = vmatpush.bf16.msra.mxu0 %v526
      %536 = vmatpush.bf16.msra.mxu0 %v525
      %537 = vmatpush.bf16.msra.mxu0 %v524
      %538 = vmatpush.bf16.msra.mxu0 %v523
      %539 = vmatpush.bf16.msra.mxu0 %v522
      %540 = vmatpush.bf16.msra.mxu0 %v521
      %541 = vmatpush.bf16.msra.mxu0 %v520
      %542 = vmatpush.bf16.msra.mxu0 %v519
      %543 = vmatmul.bf16.gmra.mxu0 %v370
      %v544 = vpop.f32.mrf.mxu0
      %v545 = vadd.f32 0.0, %v544
      %v546 = vpop.f32.mrf.mxu0
      %547 = vdwg.mxu0
      %v548 = vunpack.c.l.bf16 %v470
      %v549 = vadd.f32 %v548, %v545
      %v550 = vxor.u32 %v549, 2147483648
      %v551 = vmul.f32 %v550, 1.442695
      %v552 = vpow.pop %v551
      %v553 = vadd.f32 %v552, 1.0
      %v554 = vrcp.pop %v553
      %v555 = vmul.f32 %v553, %v554
      %v556 = vsub.f32 1.0, %v555
      %v557 = vmul.f32 %v554, %v556
      %v558 = vadd.f32 %v554, %v557
      %vm559 = vweird.f32 %v553
      %vm560 = vweird.f32 %v554
      %vm561 = vmor %vm559, %vm560
      %v562 = vsel %vm561, %v554, %v558
      %v563 = vand.u32 2147483647, %v553
      %vm564 = vcmp.eq.f32.partialorder %v563, 8.507059e+37
      %v565 = vand.u32 %v553, 2147483648
      %v566 = vor.u32 1.1754944e-38, %v565
      %v567 = vsel %vm564, %v566, %v562
      %v568 = vmul.f32 1.0, %v567
      %v569 = vld [vmem:[%s258 + $0x8] sm:$0xf]
      %v570 = vld [vmem:[#allocation2 + $0x8] sm:$0xf]
      %v571 = vld [vmem:[#allocation2 + $0x18] sm:$0xf]
      %v572 = vld [vmem:[#allocation2 + $0x28] sm:$0xf]
      %v573 = vld [vmem:[#allocation2 + $0x38] sm:$0xf]
      %v574 = vld [vmem:[#allocation2 + $0x48] sm:$0xf]
      %v575 = vld [vmem:[#allocation2 + $0x58] sm:$0xf]
      %v576 = vld [vmem:[#allocation2 + $0x68] sm:$0xf]
      %v577 = vld [vmem:[#allocation2 + $0x78] sm:$0xf]
      %v578 = vld [vmem:[#allocation2 + $0x88] sm:$0xf]
      %v579 = vld [vmem:[#allocation2 + $0x98] sm:$0xf]
      %v580 = vld [vmem:[#allocation2 + $0xa8] sm:$0xf]
      %v581 = vld [vmem:[#allocation2 + $0xb8] sm:$0xf]
      %v582 = vld [vmem:[#allocation2 + $0xc8] sm:$0xf]
      %v583 = vld [vmem:[#allocation2 + $0xd8] sm:$0xf]
      %v584 = vld [vmem:[#allocation2 + $0xe8] sm:$0xf]
      %v585 = vld [vmem:[#allocation2 + $0xf8] sm:$0xf]
      %v602 = vunpack.c.l.b16 %v570
      %v603 = vunpack.c.l.b16 %v571
      %v604 = vunpack.c.l.b16 %v572
      %v605 = vunpack.c.l.b16 %v573
      %v606 = vunpack.c.l.b16 %v574
      %v607 = vunpack.c.l.b16 %v575
      %v608 = vunpack.c.l.b16 %v576
      %v609 = vunpack.c.l.b16 %v577
      %v610 = vunpack.c.l.b16 %v578
      %v611 = vunpack.c.l.b16 %v579
      %v612 = vunpack.c.l.b16 %v580
      %v613 = vunpack.c.l.b16 %v581
      %v614 = vunpack.c.l.b16 %v582
      %v615 = vunpack.c.l.b16 %v583
      %v616 = vunpack.c.l.b16 %v584
      %v617 = vunpack.c.l.b16 %v585
      %v618 = vpack.c.b16 %v603, %v602
      %v619 = vpack.c.b16 %v605, %v604
      %v620 = vpack.c.b16 %v607, %v606
      %v621 = vpack.c.b16 %v609, %v608
      %v622 = vpack.c.b16 %v611, %v610
      %v623 = vpack.c.b16 %v613, %v612
      %v624 = vpack.c.b16 %v615, %v614
      %v625 = vpack.c.b16 %v617, %v616
      %634 = vmatpush.bf16.msra.mxu0 %v625
      %635 = vmatpush.bf16.msra.mxu0 %v624
      %636 = vmatpush.bf16.msra.mxu0 %v623
      %637 = vmatpush.bf16.msra.mxu0 %v622
      %638 = vmatpush.bf16.msra.mxu0 %v621
      %639 = vmatpush.bf16.msra.mxu0 %v620
      %640 = vmatpush.bf16.msra.mxu0 %v619
      %641 = vmatpush.bf16.msra.mxu0 %v618
      %642 = vmatmul.bf16.gmra.mxu0 %v370
      %v643 = vpop.f32.mrf.mxu0
      %v644 = vadd.f32 0.0, %v643
      %v645 = vpop.f32.mrf.mxu0
      %646 = vdwg.mxu0
      %v647 = vunpack.c.l.bf16 %v569
      %v648 = vadd.f32 %v647, %v644
      %v649 = vtanh.pop %v648
      %v650 = vld [vmem:[%s258 + $0xc] sm:$0xf]
      %v651 = vld [vmem:[#allocation2 + $0xc] sm:$0xf]
      %v652 = vld [vmem:[#allocation2 + $0x1c] sm:$0xf]
      %v653 = vld [vmem:[#allocation2 + $0x2c] sm:$0xf]
      %v654 = vld [vmem:[#allocation2 + $0x3c] sm:$0xf]
      %v655 = vld [vmem:[#allocation2 + $0x4c] sm:$0xf]
      %v656 = vld [vmem:[#allocation2 + $0x5c] sm:$0xf]
      %v657 = vld [vmem:[#allocation2 + $0x6c] sm:$0xf]
      %v658 = vld [vmem:[#allocation2 + $0x7c] sm:$0xf]
      %v659 = vld [vmem:[#allocation2 + $0x8c] sm:$0xf]
      %v660 = vld [vmem:[#allocation2 + $0x9c] sm:$0xf]
      %v661 = vld [vmem:[#allocation2 + $0xac] sm:$0xf]
      %v662 = vld [vmem:[#allocation2 + $0xbc] sm:$0xf]
      %v663 = vld [vmem:[#allocation2 + $0xcc] sm:$0xf]
      %v664 = vld [vmem:[#allocation2 + $0xdc] sm:$0xf]
      %v665 = vld [vmem:[#allocation2 + $0xec] sm:$0xf]
      %v666 = vld [vmem:[#allocation2 + $0xfc] sm:$0xf]
      %v683 = vunpack.c.l.b16 %v651
      %v684 = vunpack.c.l.b16 %v652
      %v685 = vunpack.c.l.b16 %v653
      %v686 = vunpack.c.l.b16 %v654
      %v687 = vunpack.c.l.b16 %v655
      %v688 = vunpack.c.l.b16 %v656
      %v689 = vunpack.c.l.b16 %v657
      %v690 = vunpack.c.l.b16 %v658
      %v691 = vunpack.c.l.b16 %v659
      %v692 = vunpack.c.l.b16 %v660
      %v693 = vunpack.c.l.b16 %v661
      %v694 = vunpack.c.l.b16 %v662
      %v695 = vunpack.c.l.b16 %v663
      %v696 = vunpack.c.l.b16 %v664
      %v697 = vunpack.c.l.b16 %v665
      %v698 = vunpack.c.l.b16 %v666
      %v699 = vpack.c.b16 %v684, %v683
      %v700 = vpack.c.b16 %v686, %v685
      %v701 = vpack.c.b16 %v688, %v687
      %v702 = vpack.c.b16 %v690, %v689
      %v703 = vpack.c.b16 %v692, %v691
      %v704 = vpack.c.b16 %v694, %v693
      %v705 = vpack.c.b16 %v696, %v695
      %v706 = vpack.c.b16 %v698, %v697
      %715 = vmatpush.bf16.msra.mxu0 %v706
      %716 = vmatpush.bf16.msra.mxu0 %v705
      %717 = vmatpush.bf16.msra.mxu0 %v704
      %718 = vmatpush.bf16.msra.mxu0 %v703
      %719 = vmatpush.bf16.msra.mxu0 %v702
      %720 = vmatpush.bf16.msra.mxu0 %v701
      %721 = vmatpush.bf16.msra.mxu0 %v700
      %722 = vmatpush.bf16.msra.mxu0 %v699
      %723 = vmatmul.bf16.gmra.mxu0 %v370
      %v724 = vpop.f32.mrf.mxu0
      %v725 = vadd.f32 0.0, %v724
      %v726 = vpop.f32.mrf.mxu0
      %727 = vdwg.mxu0
      %v728 = vunpack.c.l.bf16 %v650
      %v729 = vadd.f32 %v728, %v725
      %v730 = vxor.u32 %v729, 2147483648
      %v731 = vmul.f32 %v730, 1.442695
      %v732 = vpow.pop %v731
      %v733 = vadd.f32 %v732, 1.0
      %v734 = vrcp.pop %v733
      %v735 = vmul.f32 %v733, %v734
      %v736 = vsub.f32 1.0, %v735
      %v737 = vmul.f32 %v734, %v736
      %v738 = vadd.f32 %v734, %v737
      %vm739 = vweird.f32 %v733
      %vm740 = vweird.f32 %v734
      %vm741 = vmor %vm739, %vm740
      %v742 = vsel %vm741, %v734, %v738
      %v743 = vand.u32 2147483647, %v733
      %vm744 = vcmp.eq.f32.partialorder %v743, 8.507059e+37
      %v745 = vand.u32 %v733, 2147483648
      %v746 = vor.u32 1.1754944e-38, %v745
      %v747 = vsel %vm744, %v746, %v742
      %v748 = vmul.f32 1.0, %v747
      %v749 = vmul.f32 %v568, %v369
      %v750 = vmul.f32 %v469, %v649
      %v751 = vadd.f32 %v749, %v750
      %v752 = vtanh.pop %v751
      %v753 = vmul.f32 %v748, %v752
      %s754 = smul.u32 %s22, 8
      %v755 = vstv %s754
      %vm756 = vcmp.lt.s32.totalorder %v755, %v367
      %v757 = vsel %vm756, 1, 0
      %758 = vset.pattern.permute.xlu0 0
      %759 = vperm.xlu0 %758, %v757
      %v760 = vpop.permute.xlu0 %759
      %vm761 = vcmp.eq.s32.totalorder %v760, 1
      %v762 = vsel %vm761, %v753, %v368
      %v763 = vsel %vm761, %v751, %v369
      %v764 = vsel %vm761, %v753, 0.0
      %765 = vst [vmem:[%s267] sm:$0xff] %v764
      %v766 = vpack.c.bf16 %v762, %v762
      %s767 = scalar_lea.vmem %s258, 16
      %v768 = vld [vmem:[%s767] sm:$0xf]
      %v769 = vld [vmem:[#allocation2] sm:$0xf]
      %v770 = vld [vmem:[#allocation2 + $0x10] sm:$0xf]
      %v771 = vld [vmem:[#allocation2 + $0x20] sm:$0xf]
      %v772 = vld [vmem:[#allocation2 + $0x30] sm:$0xf]
      %v773 = vld [vmem:[#allocation2 + $0x40] sm:$0xf]
      %v774 = vld [vmem:[#allocation2 + $0x50] sm:$0xf]
      %v775 = vld [vmem:[#allocation2 + $0x60] sm:$0xf]
      %v776 = vld [vmem:[#allocation2 + $0x70] sm:$0xf]
      %v777 = vld [vmem:[#allocation2 + $0x80] sm:$0xf]
      %v778 = vld [vmem:[#allocation2 + $0x90] sm:$0xf]
      %v779 = vld [vmem:[#allocation2 + $0xa0] sm:$0xf]
      %v780 = vld [vmem:[#allocation2 + $0xb0] sm:$0xf]
      %v781 = vld [vmem:[#allocation2 + $0xc0] sm:$0xf]
      %v782 = vld [vmem:[#allocation2 + $0xd0] sm:$0xf]
      %v783 = vld [vmem:[#allocation2 + $0xe0] sm:$0xf]
      %v784 = vld [vmem:[#allocation2 + $0xf0] sm:$0xf]
      %v801 = vunpack.c.l.b16 %v769
      %v802 = vunpack.c.l.b16 %v770
      %v803 = vunpack.c.l.b16 %v771
      %v804 = vunpack.c.l.b16 %v772
      %v805 = vunpack.c.l.b16 %v773
      %v806 = vunpack.c.l.b16 %v774
      %v807 = vunpack.c.l.b16 %v775
      %v808 = vunpack.c.l.b16 %v776
      %v809 = vunpack.c.l.b16 %v777
      %v810 = vunpack.c.l.b16 %v778
      %v811 = vunpack.c.l.b16 %v779
      %v812 = vunpack.c.l.b16 %v780
      %v813 = vunpack.c.l.b16 %v781
      %v814 = vunpack.c.l.b16 %v782
      %v815 = vunpack.c.l.b16 %v783
      %v816 = vunpack.c.l.b16 %v784
      %v817 = vpack.c.b16 %v802, %v801
      %v818 = vpack.c.b16 %v804, %v803
      %v819 = vpack.c.b16 %v806, %v805
      %v820 = vpack.c.b16 %v808, %v807
      %v821 = vpack.c.b16 %v810, %v809
      %v822 = vpack.c.b16 %v812, %v811
      %v823 = vpack.c.b16 %v814, %v813
      %v824 = vpack.c.b16 %v816, %v815
      %833 = vmatpush.bf16.msra.mxu0 %v824
      %834 = vmatpush.bf16.msra.mxu0 %v823
      %835 = vmatpush.bf16.msra.mxu0 %v822
      %836 = vmatpush.bf16.msra.mxu0 %v821
      %837 = vmatpush.bf16.msra.mxu0 %v820
      %838 = vmatpush.bf16.msra.mxu0 %v819
      %839 = vmatpush.bf16.msra.mxu0 %v818
      %840 = vmatpush.bf16.msra.mxu0 %v817
      %841 = vmatmul.bf16.gmra.mxu0 %v766
      %v842 = vpop.f32.mrf.mxu0
      %v843 = vadd.f32 0.0, %v842
      %v844 = vpop.f32.mrf.mxu0
      %845 = vdwg.mxu0
      %v846 = vunpack.c.l.bf16 %v768
      %v847 = vadd.f32 %v846, %v843
      %v848 = vxor.u32 %v847, 2147483648
      %v849 = vmul.f32 %v848, 1.442695
      %v850 = vpow.pop %v849
      %v851 = vadd.f32 %v850, 1.0
      %v852 = vrcp.pop %v851
      %v853 = vmul.f32 %v851, %v852
      %v854 = vsub.f32 1.0, %v853
      %v855 = vmul.f32 %v852, %v854
      %v856 = vadd.f32 %v852, %v855
      %vm857 = vweird.f32 %v851
      %vm858 = vweird.f32 %v852
      %vm859 = vmor %vm857, %vm858
      %v860 = vsel %vm859, %v852, %v856
      %v861 = vand.u32 2147483647, %v851
      %vm862 = vcmp.eq.f32.partialorder %v861, 8.507059e+37
      %v863 = vand.u32 %v851, 2147483648
      %v864 = vor.u32 1.1754944e-38, %v863
      %v865 = vsel %vm862, %v864, %v860
      %v866 = vmul.f32 1.0, %v865
      %v867 = vld [vmem:[%s767 + $0x4] sm:$0xf]
      %v868 = vld [vmem:[#allocation2 + $0x4] sm:$0xf]
      %v869 = vld [vmem:[#allocation2 + $0x14] sm:$0xf]
      %v870 = vld [vmem:[#allocation2 + $0x24] sm:$0xf]
      %v871 = vld [vmem:[#allocation2 + $0x34] sm:$0xf]
      %v872 = vld [vmem:[#allocation2 + $0x44] sm:$0xf]
      %v873 = vld [vmem:[#allocation2 + $0x54] sm:$0xf]
      %v874 = vld [vmem:[#allocation2 + $0x64] sm:$0xf]
      %v875 = vld [vmem:[#allocation2 + $0x74] sm:$0xf]
      %v876 = vld [vmem:[#allocation2 + $0x84] sm:$0xf]
      %v877 = vld [vmem:[#allocation2 + $0x94] sm:$0xf]
      %v878 = vld [vmem:[#allocation2 + $0xa4] sm:$0xf]
      %v879 = vld [vmem:[#allocation2 + $0xb4] sm:$0xf]
      %v880 = vld [vmem:[#allocation2 + $0xc4] sm:$0xf]
      %v881 = vld [vmem:[#allocation2 + $0xd4] sm:$0xf]
      %v882 = vld [vmem:[#allocation2 + $0xe4] sm:$0xf]
      %v883 = vld [vmem:[#allocation2 + $0xf4] sm:$0xf]
      %v900 = vunpack.c.l.b16 %v868
      %v901 = vunpack.c.l.b16 %v869
      %v902 = vunpack.c.l.b16 %v870
      %v903 = vunpack.c.l.b16 %v871
      %v904 = vunpack.c.l.b16 %v872
      %v905 = vunpack.c.l.b16 %v873
      %v906 = vunpack.c.l.b16 %v874
      %v907 = vunpack.c.l.b16 %v875
      %v908 = vunpack.c.l.b16 %v876
      %v909 = vunpack.c.l.b16 %v877
      %v910 = vunpack.c.l.b16 %v878
      %v911 = vunpack.c.l.b16 %v879
      %v912 = vunpack.c.l.b16 %v880
      %v913 = vunpack.c.l.b16 %v881
      %v914 = vunpack.c.l.b16 %v882
      %v915 = vunpack.c.l.b16 %v883
      %v916 = vpack.c.b16 %v901, %v900
      %v917 = vpack.c.b16 %v903, %v902
      %v918 = vpack.c.b16 %v905, %v904
      %v919 = vpack.c.b16 %v907, %v906
      %v920 = vpack.c.b16 %v909, %v908
      %v921 = vpack.c.b16 %v911, %v910
      %v922 = vpack.c.b16 %v913, %v912
      %v923 = vpack.c.b16 %v915, %v914
      %932 = vmatpush.bf16.msra.mxu0 %v923
      %933 = vmatpush.bf16.msra.mxu0 %v922
      %934 = vmatpush.bf16.msra.mxu0 %v921
      %935 = vmatpush.bf16.msra.mxu0 %v920
      %936 = vmatpush.bf16.msra.mxu0 %v919
      %937 = vmatpush.bf16.msra.mxu0 %v918
      %938 = vmatpush.bf16.msra.mxu0 %v917
      %939 = vmatpush.bf16.msra.mxu0 %v916
      %940 = vmatmul.bf16.gmra.mxu0 %v766
      %v941 = vpop.f32.mrf.mxu0
      %v942 = vadd.f32 0.0, %v941
      %v943 = vpop.f32.mrf.mxu0
      %944 = vdwg.mxu0
      %v945 = vunpack.c.l.bf16 %v867
      %v946 = vadd.f32 %v945, %v942
      %v947 = vxor.u32 %v946, 2147483648
      %v948 = vmul.f32 %v947, 1.442695
      %v949 = vpow.pop %v948
      %v950 = vadd.f32 %v949, 1.0
      %v951 = vrcp.pop %v950
      %v952 = vmul.f32 %v950, %v951
      %v953 = vsub.f32 1.0, %v952
      %v954 = vmul.f32 %v951, %v953
      %v955 = vadd.f32 %v951, %v954
      %vm956 = vweird.f32 %v950
      %vm957 = vweird.f32 %v951
      %vm958 = vmor %vm956, %vm957
      %v959 = vsel %vm958, %v951, %v955
      %v960 = vand.u32 2147483647, %v950
      %vm961 = vcmp.eq.f32.partialorder %v960, 8.507059e+37
      %v962 = vand.u32 %v950, 2147483648
      %v963 = vor.u32 1.1754944e-38, %v962
      %v964 = vsel %vm961, %v963, %v959
      %v965 = vmul.f32 1.0, %v964
      %v966 = vld [vmem:[%s767 + $0x8] sm:$0xf]
      %v967 = vld [vmem:[#allocation2 + $0x8] sm:$0xf]
      %v968 = vld [vmem:[#allocation2 + $0x18] sm:$0xf]
      %v969 = vld [vmem:[#allocation2 + $0x28] sm:$0xf]
      %v970 = vld [vmem:[#allocation2 + $0x38] sm:$0xf]
      %v971 = vld [vmem:[#allocation2 + $0x48] sm:$0xf]
      %v972 = vld [vmem:[#allocation2 + $0x58] sm:$0xf]
      %v973 = vld [vmem:[#allocation2 + $0x68] sm:$0xf]
      %v974 = vld [vmem:[#allocation2 + $0x78] sm:$0xf]
      %v975 = vld [vmem:[#allocation2 + $0x88] sm:$0xf]
      %v976 = vld [vmem:[#allocation2 + $0x98] sm:$0xf]
      %v977 = vld [vmem:[#allocation2 + $0xa8] sm:$0xf]
      %v978 = vld [vmem:[#allocation2 + $0xb8] sm:$0xf]
      %v979 = vld [vmem:[#allocation2 + $0xc8] sm:$0xf]
      %v980 = vld [vmem:[#allocation2 + $0xd8] sm:$0xf]
      %v981 = vld [vmem:[#allocation2 + $0xe8] sm:$0xf]
      %v982 = vld [vmem:[#allocation2 + $0xf8] sm:$0xf]
      %v999 = vunpack.c.l.b16 %v967
      %v1000 = vunpack.c.l.b16 %v968
      %v1001 = vunpack.c.l.b16 %v969
      %v1002 = vunpack.c.l.b16 %v970
      %v1003 = vunpack.c.l.b16 %v971
      %v1004 = vunpack.c.l.b16 %v972
      %v1005 = vunpack.c.l.b16 %v973
      %v1006 = vunpack.c.l.b16 %v974
      %v1007 = vunpack.c.l.b16 %v975
      %v1008 = vunpack.c.l.b16 %v976
      %v1009 = vunpack.c.l.b16 %v977
      %v1010 = vunpack.c.l.b16 %v978
      %v1011 = vunpack.c.l.b16 %v979
      %v1012 = vunpack.c.l.b16 %v980
      %v1013 = vunpack.c.l.b16 %v981
      %v1014 = vunpack.c.l.b16 %v982
      %v1015 = vpack.c.b16 %v1000, %v999
      %v1016 = vpack.c.b16 %v1002, %v1001
      %v1017 = vpack.c.b16 %v1004, %v1003
      %v1018 = vpack.c.b16 %v1006, %v1005
      %v1019 = vpack.c.b16 %v1008, %v1007
      %v1020 = vpack.c.b16 %v1010, %v1009
      %v1021 = vpack.c.b16 %v1012, %v1011
      %v1022 = vpack.c.b16 %v1014, %v1013
      %1031 = vmatpush.bf16.msra.mxu0 %v1022
      %1032 = vmatpush.bf16.msra.mxu0 %v1021
      %1033 = vmatpush.bf16.msra.mxu0 %v1020
      %1034 = vmatpush.bf16.msra.mxu0 %v1019
      %1035 = vmatpush.bf16.msra.mxu0 %v1018
      %1036 = vmatpush.bf16.msra.mxu0 %v1017
      %1037 = vmatpush.bf16.msra.mxu0 %v1016
      %1038 = vmatpush.bf16.msra.mxu0 %v1015
      %1039 = vmatmul.bf16.gmra.mxu0 %v766
      %v1040 = vpop.f32.mrf.mxu0
      %v1041 = vadd.f32 0.0, %v1040
      %v1042 = vpop.f32.mrf.mxu0
      %1043 = vdwg.mxu0
      %v1044 = vunpack.c.l.bf16 %v966
      %v1045 = vadd.f32 %v1044, %v1041
      %v1046 = vtanh.pop %v1045
      %v1047 = vld [vmem:[%s767 + $0xc] sm:$0xf]
      %v1048 = vld [vmem:[#allocation2 + $0xc] sm:$0xf]
      %v1049 = vld [vmem:[#allocation2 + $0x1c] sm:$0xf]
      %v1050 = vld [vmem:[#allocation2 + $0x2c] sm:$0xf]
      %v1051 = vld [vmem:[#allocation2 + $0x3c] sm:$0xf]
      %v1052 = vld [vmem:[#allocation2 + $0x4c] sm:$0xf]
      %v1053 = vld [vmem:[#allocation2 + $0x5c] sm:$0xf]
      %v1054 = vld [vmem:[#allocation2 + $0x6c] sm:$0xf]
      %v1055 = vld [vmem:[#allocation2 + $0x7c] sm:$0xf]
      %v1056 = vld [vmem:[#allocation2 + $0x8c] sm:$0xf]
      %v1057 = vld [vmem:[#allocation2 + $0x9c] sm:$0xf]
      %v1058 = vld [vmem:[#allocation2 + $0xac] sm:$0xf]
      %v1059 = vld [vmem:[#allocation2 + $0xbc] sm:$0xf]
      %v1060 = vld [vmem:[#allocation2 + $0xcc] sm:$0xf]
      %v1061 = vld [vmem:[#allocation2 + $0xdc] sm:$0xf]
      %v1062 = vld [vmem:[#allocation2 + $0xec] sm:$0xf]
      %v1063 = vld [vmem:[#allocation2 + $0xfc] sm:$0xf]
      %v1080 = vunpack.c.l.b16 %v1048
      %v1081 = vunpack.c.l.b16 %v1049
      %v1082 = vunpack.c.l.b16 %v1050
      %v1083 = vunpack.c.l.b16 %v1051
      %v1084 = vunpack.c.l.b16 %v1052
      %v1085 = vunpack.c.l.b16 %v1053
      %v1086 = vunpack.c.l.b16 %v1054
      %v1087 = vunpack.c.l.b16 %v1055
      %v1088 = vunpack.c.l.b16 %v1056
      %v1089 = vunpack.c.l.b16 %v1057
      %v1090 = vunpack.c.l.b16 %v1058
      %v1091 = vunpack.c.l.b16 %v1059
      %v1092 = vunpack.c.l.b16 %v1060
      %v1093 = vunpack.c.l.b16 %v1061
      %v1094 = vunpack.c.l.b16 %v1062
      %v1095 = vunpack.c.l.b16 %v1063
      %v1096 = vpack.c.b16 %v1081, %v1080
      %v1097 = vpack.c.b16 %v1083, %v1082
      %v1098 = vpack.c.b16 %v1085, %v1084
      %v1099 = vpack.c.b16 %v1087, %v1086
      %v1100 = vpack.c.b16 %v1089, %v1088
      %v1101 = vpack.c.b16 %v1091, %v1090
      %v1102 = vpack.c.b16 %v1093, %v1092
      %v1103 = vpack.c.b16 %v1095, %v1094
      %1112 = vmatpush.bf16.msra.mxu0 %v1103
      %1113 = vmatpush.bf16.msra.mxu0 %v1102
      %1114 = vmatpush.bf16.msra.mxu0 %v1101
      %1115 = vmatpush.bf16.msra.mxu0 %v1100
      %1116 = vmatpush.bf16.msra.mxu0 %v1099
      %1117 = vmatpush.bf16.msra.mxu0 %v1098
      %1118 = vmatpush.bf16.msra.mxu0 %v1097
      %1119 = vmatpush.bf16.msra.mxu0 %v1096
      %1120 = vmatmul.bf16.gmra.mxu0 %v766
      %v1121 = vpop.f32.mrf.mxu0
      %v1122 = vadd.f32 0.0, %v1121
      %v1123 = vpop.f32.mrf.mxu0
      %1124 = vdwg.mxu0
      %v1125 = vunpack.c.l.bf16 %v1047
      %v1126 = vadd.f32 %v1125, %v1122
      %v1127 = vxor.u32 %v1126, 2147483648
      %v1128 = vmul.f32 %v1127, 1.442695
      %v1129 = vpow.pop %v1128
      %v1130 = vadd.f32 %v1129, 1.0
      %v1131 = vrcp.pop %v1130
      %v1132 = vmul.f32 %v1130, %v1131
      %v1133 = vsub.f32 1.0, %v1132
      %v1134 = vmul.f32 %v1131, %v1133
      %v1135 = vadd.f32 %v1131, %v1134
      %vm1136 = vweird.f32 %v1130
      %vm1137 = vweird.f32 %v1131
      %vm1138 = vmor %vm1136, %vm1137
      %v1139 = vsel %vm1138, %v1131, %v1135
      %v1140 = vand.u32 2147483647, %v1130
      %vm1141 = vcmp.eq.f32.partialorder %v1140, 8.507059e+37
      %v1142 = vand.u32 %v1130, 2147483648
      %v1143 = vor.u32 1.1754944e-38, %v1142
      %v1144 = vsel %vm1141, %v1143, %v1139
      %v1145 = vmul.f32 1.0, %v1144
      %v1146 = vmul.f32 %v965, %v763
      %v1147 = vmul.f32 %v866, %v1046
      %v1148 = vadd.f32 %v1146, %v1147
      %v1149 = vtanh.pop %v1148
      %v1150 = vmul.f32 %v1145, %v1149
      %s1151 = sadd.s32 %s754, 1
      %v1152 = vstv %s1151
      %vm1153 = vcmp.lt.s32.totalorder %v1152, %v367
      %v1154 = vsel %vm1153, 1, 0
      %1155 = vset.pattern.permute.xlu0 0
      %1156 = vperm.xlu0 %1155, %v1154
      %v1157 = vpop.permute.xlu0 %1156
      %vm1158 = vcmp.eq.s32.totalorder %v1157, 1
      %v1159 = vsel %vm1158, %v1150, %v762
      %v1160 = vsel %vm1158, %v1148, %v763
      %v1161 = vsel %vm1158, %v1150, 0.0
      %s1162 = scalar_lea.vmem %s267, 8
      %1163 = vst [vmem:[%s1162] sm:$0xff] %v1161
      %v1164 = vpack.c.bf16 %v1159, %v1159
      %s1165 = scalar_lea.vmem %s258, 32
      %v1166 = vld [vmem:[%s1165] sm:$0xf]
      %v1167 = vld [vmem:[#allocation2] sm:$0xf]
      %v1168 = vld [vmem:[#allocation2 + $0x10] sm:$0xf]
      %v1169 = vld [vmem:[#allocation2 + $0x20] sm:$0xf]
      %v1170 = vld [vmem:[#allocation2 + $0x30] sm:$0xf]
      %v1171 = vld [vmem:[#allocation2 + $0x40] sm:$0xf]
      %v1172 = vld [vmem:[#allocation2 + $0x50] sm:$0xf]
      %v1173 = vld [vmem:[#allocation2 + $0x60] sm:$0xf]
      %v1174 = vld [vmem:[#allocation2 + $0x70] sm:$0xf]
      %v1175 = vld [vmem:[#allocation2 + $0x80] sm:$0xf]
      %v1176 = vld [vmem:[#allocation2 + $0x90] sm:$0xf]
      %v1177 = vld [vmem:[#allocation2 + $0xa0] sm:$0xf]
      %v1178 = vld [vmem:[#allocation2 + $0xb0] sm:$0xf]
      %v1179 = vld [vmem:[#allocation2 + $0xc0] sm:$0xf]
      %v1180 = vld [vmem:[#allocation2 + $0xd0] sm:$0xf]
      %v1181 = vld [vmem:[#allocation2 + $0xe0] sm:$0xf]
      %v1182 = vld [vmem:[#allocation2 + $0xf0] sm:$0xf]
      %v1199 = vunpack.c.l.b16 %v1167
      %v1200 = vunpack.c.l.b16 %v1168
      %v1201 = vunpack.c.l.b16 %v1169
      %v1202 = vunpack.c.l.b16 %v1170
      %v1203 = vunpack.c.l.b16 %v1171
      %v1204 = vunpack.c.l.b16 %v1172
      %v1205 = vunpack.c.l.b16 %v1173
      %v1206 = vunpack.c.l.b16 %v1174
      %v1207 = vunpack.c.l.b16 %v1175
      %v1208 = vunpack.c.l.b16 %v1176
      %v1209 = vunpack.c.l.b16 %v1177
      %v1210 = vunpack.c.l.b16 %v1178
      %v1211 = vunpack.c.l.b16 %v1179
      %v1212 = vunpack.c.l.b16 %v1180
      %v1213 = vunpack.c.l.b16 %v1181
      %v1214 = vunpack.c.l.b16 %v1182
      %v1215 = vpack.c.b16 %v1200, %v1199
      %v1216 = vpack.c.b16 %v1202, %v1201
      %v1217 = vpack.c.b16 %v1204, %v1203
      %v1218 = vpack.c.b16 %v1206, %v1205
      %v1219 = vpack.c.b16 %v1208, %v1207
      %v1220 = vpack.c.b16 %v1210, %v1209
      %v1221 = vpack.c.b16 %v1212, %v1211
      %v1222 = vpack.c.b16 %v1214, %v1213
      %1231 = vmatpush.bf16.msra.mxu0 %v1222
      %1232 = vmatpush.bf16.msra.mxu0 %v1221
      %1233 = vmatpush.bf16.msra.mxu0 %v1220
      %1234 = vmatpush.bf16.msra.mxu0 %v1219
      %1235 = vmatpush.bf16.msra.mxu0 %v1218
      %1236 = vmatpush.bf16.msra.mxu0 %v1217
      %1237 = vmatpush.bf16.msra.mxu0 %v1216
      %1238 = vmatpush.bf16.msra.mxu0 %v1215
      %1239 = vmatmul.bf16.gmra.mxu0 %v1164
      %v1240 = vpop.f32.mrf.mxu0
      %v1241 = vadd.f32 0.0, %v1240
      %v1242 = vpop.f32.mrf.mxu0
      %1243 = vdwg.mxu0
      %v1244 = vunpack.c.l.bf16 %v1166
      %v1245 = vadd.f32 %v1244, %v1241
      %v1246 = vxor.u32 %v1245, 2147483648
      %v1247 = vmul.f32 %v1246, 1.442695
      %v1248 = vpow.pop %v1247
      %v1249 = vadd.f32 %v1248, 1.0
      %v1250 = vrcp.pop %v1249
      %v1251 = vmul.f32 %v1249, %v1250
      %v1252 = vsub.f32 1.0, %v1251
      %v1253 = vmul.f32 %v1250, %v1252
      %v1254 = vadd.f32 %v1250, %v1253
      %vm1255 = vweird.f32 %v1249
      %vm1256 = vweird.f32 %v1250
      %vm1257 = vmor %vm1255, %vm1256
      %v1258 = vsel %vm1257, %v1250, %v1254
      %v1259 = vand.u32 2147483647, %v1249
      %vm1260 = vcmp.eq.f32.partialorder %v1259, 8.507059e+37
      %v1261 = vand.u32 %v1249, 2147483648
      %v1262 = vor.u32 1.1754944e-38, %v1261
      %v1263 = vsel %vm1260, %v1262, %v1258
      %v1264 = vmul.f32 1.0, %v1263
      %v1265 = vld [vmem:[%s1165 + $0x4] sm:$0xf]
      %v1266 = vld [vmem:[#allocation2 + $0x4] sm:$0xf]
      %v1267 = vld [vmem:[#allocation2 + $0x14] sm:$0xf]
      %v1268 = vld [vmem:[#allocation2 + $0x24] sm:$0xf]
      %v1269 = vld [vmem:[#allocation2 + $0x34] sm:$0xf]
      %v1270 = vld [vmem:[#allocation2 + $0x44] sm:$0xf]
      %v1271 = vld [vmem:[#allocation2 + $0x54] sm:$0xf]
      %v1272 = vld [vmem:[#allocation2 + $0x64] sm:$0xf]
      %v1273 = vld [vmem:[#allocation2 + $0x74] sm:$0xf]
      %v1274 = vld [vmem:[#allocation2 + $0x84] sm:$0xf]
      %v1275 = vld [vmem:[#allocation2 + $0x94] sm:$0xf]
      %v1276 = vld [vmem:[#allocation2 + $0xa4] sm:$0xf]
      %v1277 = vld [vmem:[#allocation2 + $0xb4] sm:$0xf]
      %v1278 = vld [vmem:[#allocation2 + $0xc4] sm:$0xf]
      %v1279 = vld [vmem:[#allocation2 + $0xd4] sm:$0xf]
      %v1280 = vld [vmem:[#allocation2 + $0xe4] sm:$0xf]
      %v1281 = vld [vmem:[#allocation2 + $0xf4] sm:$0xf]
      %v1298 = vunpack.c.l.b16 %v1266
      %v1299 = vunpack.c.l.b16 %v1267
      %v1300 = vunpack.c.l.b16 %v1268
      %v1301 = vunpack.c.l.b16 %v1269
      %v1302 = vunpack.c.l.b16 %v1270
      %v1303 = vunpack.c.l.b16 %v1271
      %v1304 = vunpack.c.l.b16 %v1272
      %v1305 = vunpack.c.l.b16 %v1273
      %v1306 = vunpack.c.l.b16 %v1274
      %v1307 = vunpack.c.l.b16 %v1275
      %v1308 = vunpack.c.l.b16 %v1276
      %v1309 = vunpack.c.l.b16 %v1277
      %v1310 = vunpack.c.l.b16 %v1278
      %v1311 = vunpack.c.l.b16 %v1279
      %v1312 = vunpack.c.l.b16 %v1280
      %v1313 = vunpack.c.l.b16 %v1281
      %v1314 = vpack.c.b16 %v1299, %v1298
      %v1315 = vpack.c.b16 %v1301, %v1300
      %v1316 = vpack.c.b16 %v1303, %v1302
      %v1317 = vpack.c.b16 %v1305, %v1304
      %v1318 = vpack.c.b16 %v1307, %v1306
      %v1319 = vpack.c.b16 %v1309, %v1308
      %v1320 = vpack.c.b16 %v1311, %v1310
      %v1321 = vpack.c.b16 %v1313, %v1312
      %1330 = vmatpush.bf16.msra.mxu0 %v1321
      %1331 = vmatpush.bf16.msra.mxu0 %v1320
      %1332 = vmatpush.bf16.msra.mxu0 %v1319
      %1333 = vmatpush.bf16.msra.mxu0 %v1318
      %1334 = vmatpush.bf16.msra.mxu0 %v1317
      %1335 = vmatpush.bf16.msra.mxu0 %v1316
      %1336 = vmatpush.bf16.msra.mxu0 %v1315
      %1337 = vmatpush.bf16.msra.mxu0 %v1314
      %1338 = vmatmul.bf16.gmra.mxu0 %v1164
      %v1339 = vpop.f32.mrf.mxu0
      %v1340 = vadd.f32 0.0, %v1339
      %v1341 = vpop.f32.mrf.mxu0
      %1342 = vdwg.mxu0
      %v1343 = vunpack.c.l.bf16 %v1265
      %v1344 = vadd.f32 %v1343, %v1340
      %v1345 = vxor.u32 %v1344, 2147483648
      %v1346 = vmul.f32 %v1345, 1.442695
      %v1347 = vpow.pop %v1346
      %v1348 = vadd.f32 %v1347, 1.0
      %v1349 = vrcp.pop %v1348
      %v1350 = vmul.f32 %v1348, %v1349
      %v1351 = vsub.f32 1.0, %v1350
      %v1352 = vmul.f32 %v1349, %v1351
      %v1353 = vadd.f32 %v1349, %v1352
      %vm1354 = vweird.f32 %v1348
      %vm1355 = vweird.f32 %v1349
      %vm1356 = vmor %vm1354, %vm1355
      %v1357 = vsel %vm1356, %v1349, %v1353
      %v1358 = vand.u32 2147483647, %v1348
      %vm1359 = vcmp.eq.f32.partialorder %v1358, 8.507059e+37
      %v1360 = vand.u32 %v1348, 2147483648
      %v1361 = vor.u32 1.1754944e-38, %v1360
      %v1362 = vsel %vm1359, %v1361, %v1357
      %v1363 = vmul.f32 1.0, %v1362
      %v1364 = vld [vmem:[%s1165 + $0x8] sm:$0xf]
      %v1365 = vld [vmem:[#allocation2 + $0x8] sm:$0xf]
      %v1366 = vld [vmem:[#allocation2 + $0x18] sm:$0xf]
      %v1367 = vld [vmem:[#allocation2 + $0x28] sm:$0xf]
      %v1368 = vld [vmem:[#allocation2 + $0x38] sm:$0xf]
      %v1369 = vld [vmem:[#allocation2 + $0x48] sm:$0xf]
      %v1370 = vld [vmem:[#allocation2 + $0x58] sm:$0xf]
      %v1371 = vld [vmem:[#allocation2 + $0x68] sm:$0xf]
      %v1372 = vld [vmem:[#allocation2 + $0x78] sm:$0xf]
      %v1373 = vld [vmem:[#allocation2 + $0x88] sm:$0xf]
      %v1374 = vld [vmem:[#allocation2 + $0x98] sm:$0xf]
      %v1375 = vld [vmem:[#allocation2 + $0xa8] sm:$0xf]
      %v1376 = vld [vmem:[#allocation2 + $0xb8] sm:$0xf]
      %v1377 = vld [vmem:[#allocation2 + $0xc8] sm:$0xf]
      %v1378 = vld [vmem:[#allocation2 + $0xd8] sm:$0xf]
      %v1379 = vld [vmem:[#allocation2 + $0xe8] sm:$0xf]
      %v1380 = vld [vmem:[#allocation2 + $0xf8] sm:$0xf]
      %v1397 = vunpack.c.l.b16 %v1365
      %v1398 = vunpack.c.l.b16 %v1366
      %v1399 = vunpack.c.l.b16 %v1367
      %v1400 = vunpack.c.l.b16 %v1368
      %v1401 = vunpack.c.l.b16 %v1369
      %v1402 = vunpack.c.l.b16 %v1370
      %v1403 = vunpack.c.l.b16 %v1371
      %v1404 = vunpack.c.l.b16 %v1372
      %v1405 = vunpack.c.l.b16 %v1373
      %v1406 = vunpack.c.l.b16 %v1374
      %v1407 = vunpack.c.l.b16 %v1375
      %v1408 = vunpack.c.l.b16 %v1376
      %v1409 = vunpack.c.l.b16 %v1377
      %v1410 = vunpack.c.l.b16 %v1378
      %v1411 = vunpack.c.l.b16 %v1379
      %v1412 = vunpack.c.l.b16 %v1380
      %v1413 = vpack.c.b16 %v1398, %v1397
      %v1414 = vpack.c.b16 %v1400, %v1399
      %v1415 = vpack.c.b16 %v1402, %v1401
      %v1416 = vpack.c.b16 %v1404, %v1403
      %v1417 = vpack.c.b16 %v1406, %v1405
      %v1418 = vpack.c.b16 %v1408, %v1407
      %v1419 = vpack.c.b16 %v1410, %v1409
      %v1420 = vpack.c.b16 %v1412, %v1411
      %1429 = vmatpush.bf16.msra.mxu0 %v1420
      %1430 = vmatpush.bf16.msra.mxu0 %v1419
      %1431 = vmatpush.bf16.msra.mxu0 %v1418
      %1432 = vmatpush.bf16.msra.mxu0 %v1417
      %1433 = vmatpush.bf16.msra.mxu0 %v1416
      %1434 = vmatpush.bf16.msra.mxu0 %v1415
      %1435 = vmatpush.bf16.msra.mxu0 %v1414
      %1436 = vmatpush.bf16.msra.mxu0 %v1413
      %1437 = vmatmul.bf16.gmra.mxu0 %v1164
      %v1438 = vpop.f32.mrf.mxu0
      %v1439 = vadd.f32 0.0, %v1438
      %v1440 = vpop.f32.mrf.mxu0
      %1441 = vdwg.mxu0
      %v1442 = vunpack.c.l.bf16 %v1364
      %v1443 = vadd.f32 %v1442, %v1439
      %v1444 = vtanh.pop %v1443
      %v1445 = vld [vmem:[%s1165 + $0xc] sm:$0xf]
      %v1446 = vld [vmem:[#allocation2 + $0xc] sm:$0xf]
      %v1447 = vld [vmem:[#allocation2 + $0x1c] sm:$0xf]
      %v1448 = vld [vmem:[#allocation2 + $0x2c] sm:$0xf]
      %v1449 = vld [vmem:[#allocation2 + $0x3c] sm:$0xf]
      %v1450 = vld [vmem:[#allocation2 + $0x4c] sm:$0xf]
      %v1451 = vld [vmem:[#allocation2 + $0x5c] sm:$0xf]
      %v1452 = vld [vmem:[#allocation2 + $0x6c] sm:$0xf]
      %v1453 = vld [vmem:[#allocation2 + $0x7c] sm:$0xf]
      %v1454 = vld [vmem:[#allocation2 + $0x8c] sm:$0xf]
      %v1455 = vld [vmem:[#allocation2 + $0x9c] sm:$0xf]
      %v1456 = vld [vmem:[#allocation2 + $0xac] sm:$0xf]
      %v1457 = vld [vmem:[#allocation2 + $0xbc] sm:$0xf]
      %v1458 = vld [vmem:[#allocation2 + $0xcc] sm:$0xf]
      %v1459 = vld [vmem:[#allocation2 + $0xdc] sm:$0xf]
      %v1460 = vld [vmem:[#allocation2 + $0xec] sm:$0xf]
      %v1461 = vld [vmem:[#allocation2 + $0xfc] sm:$0xf]
      %v1478 = vunpack.c.l.b16 %v1446
      %v1479 = vunpack.c.l.b16 %v1447
      %v1480 = vunpack.c.l.b16 %v1448
      %v1481 = vunpack.c.l.b16 %v1449
      %v1482 = vunpack.c.l.b16 %v1450
      %v1483 = vunpack.c.l.b16 %v1451
      %v1484 = vunpack.c.l.b16 %v1452
      %v1485 = vunpack.c.l.b16 %v1453
      %v1486 = vunpack.c.l.b16 %v1454
      %v1487 = vunpack.c.l.b16 %v1455
      %v1488 = vunpack.c.l.b16 %v1456
      %v1489 = vunpack.c.l.b16 %v1457
      %v1490 = vunpack.c.l.b16 %v1458
      %v1491 = vunpack.c.l.b16 %v1459
      %v1492 = vunpack.c.l.b16 %v1460
      %v1493 = vunpack.c.l.b16 %v1461
      %v1494 = vpack.c.b16 %v1479, %v1478
      %v1495 = vpack.c.b16 %v1481, %v1480
      %v1496 = vpack.c.b16 %v1483, %v1482
      %v1497 = vpack.c.b16 %v1485, %v1484
      %v1498 = vpack.c.b16 %v1487, %v1486
      %v1499 = vpack.c.b16 %v1489, %v1488
      %v1500 = vpack.c.b16 %v1491, %v1490
      %v1501 = vpack.c.b16 %v1493, %v1492
      %1510 = vmatpush.bf16.msra.mxu0 %v1501
      %1511 = vmatpush.bf16.msra.mxu0 %v1500
      %1512 = vmatpush.bf16.msra.mxu0 %v1499
      %1513 = vmatpush.bf16.msra.mxu0 %v1498
      %1514 = vmatpush.bf16.msra.mxu0 %v1497
      %1515 = vmatpush.bf16.msra.mxu0 %v1496
      %1516 = vmatpush.bf16.msra.mxu0 %v1495
      %1517 = vmatpush.bf16.msra.mxu0 %v1494
      %1518 = vmatmul.bf16.gmra.mxu0 %v1164
      %v1519 = vpop.f32.mrf.mxu0
      %v1520 = vadd.f32 0.0, %v1519
      %v1521 = vpop.f32.mrf.mxu0
      %1522 = vdwg.mxu0
      %v1523 = vunpack.c.l.bf16 %v1445
      %v1524 = vadd.f32 %v1523, %v1520
      %v1525 = vxor.u32 %v1524, 2147483648
      %v1526 = vmul.f32 %v1525, 1.442695
      %v1527 = vpow.pop %v1526
      %v1528 = vadd.f32 %v1527, 1.0
      %v1529 = vrcp.pop %v1528
      %v1530 = vmul.f32 %v1528, %v1529
      %v1531 = vsub.f32 1.0, %v1530
      %v1532 = vmul.f32 %v1529, %v1531
      %v1533 = vadd.f32 %v1529, %v1532
      %vm1534 = vweird.f32 %v1528
      %vm1535 = vweird.f32 %v1529
      %vm1536 = vmor %vm1534, %vm1535
      %v1537 = vsel %vm1536, %v1529, %v1533
      %v1538 = vand.u32 2147483647, %v1528
      %vm1539 = vcmp.eq.f32.partialorder %v1538, 8.507059e+37
      %v1540 = vand.u32 %v1528, 2147483648
      %v1541 = vor.u32 1.1754944e-38, %v1540
      %v1542 = vsel %vm1539, %v1541, %v1537
      %v1543 = vmul.f32 1.0, %v1542
      %v1544 = vmul.f32 %v1363, %v1160
      %v1545 = vmul.f32 %v1264, %v1444
      %v1546 = vadd.f32 %v1544, %v1545
      %v1547 = vtanh.pop %v1546
      %v1548 = vmul.f32 %v1543, %v1547
      %s1549 = sadd.s32 %s754, 2
      %v1550 = vstv %s1549
      %vm1551 = vcmp.lt.s32.totalorder %v1550, %v367
      %v1552 = vsel %vm1551, 1, 0
      %1553 = vset.pattern.permute.xlu0 0
      %1554 = vperm.xlu0 %1553, %v1552
      %v1555 = vpop.permute.xlu0 %1554
      %vm1556 = vcmp.eq.s32.totalorder %v1555, 1
      %v1557 = vsel %vm1556, %v1548, %v1159
      %v1558 = vsel %vm1556, %v1546, %v1160
      %v1559 = vsel %vm1556, %v1548, 0.0
      %s1560 = scalar_lea.vmem %s267, 16
      %1561 = vst [vmem:[%s1560] sm:$0xff] %v1559
      %v1562 = vpack.c.bf16 %v1557, %v1557
      %s1563 = scalar_lea.vmem %s258, 48
      %v1564 = vld [vmem:[%s1563] sm:$0xf]
      %v1565 = vld [vmem:[#allocation2] sm:$0xf]
      %v1566 = vld [vmem:[#allocation2 + $0x10] sm:$0xf]
      %v1567 = vld [vmem:[#allocation2 + $0x20] sm:$0xf]
      %v1568 = vld [vmem:[#allocation2 + $0x30] sm:$0xf]
      %v1569 = vld [vmem:[#allocation2 + $0x40] sm:$0xf]
      %v1570 = vld [vmem:[#allocation2 + $0x50] sm:$0xf]
      %v1571 = vld [vmem:[#allocation2 + $0x60] sm:$0xf]
      %v1572 = vld [vmem:[#allocation2 + $0x70] sm:$0xf]
      %v1573 = vld [vmem:[#allocation2 + $0x80] sm:$0xf]
      %v1574 = vld [vmem:[#allocation2 + $0x90] sm:$0xf]
      %v1575 = vld [vmem:[#allocation2 + $0xa0] sm:$0xf]
      %v1576 = vld [vmem:[#allocation2 + $0xb0] sm:$0xf]
      %v1577 = vld [vmem:[#allocation2 + $0xc0] sm:$0xf]
      %v1578 = vld [vmem:[#allocation2 + $0xd0] sm:$0xf]
      %v1579 = vld [vmem:[#allocation2 + $0xe0] sm:$0xf]
      %v1580 = vld [vmem:[#allocation2 + $0xf0] sm:$0xf]
      %v1597 = vunpack.c.l.b16 %v1565
      %v1598 = vunpack.c.l.b16 %v1566
      %v1599 = vunpack.c.l.b16 %v1567
      %v1600 = vunpack.c.l.b16 %v1568
      %v1601 = vunpack.c.l.b16 %v1569
      %v1602 = vunpack.c.l.b16 %v1570
      %v1603 = vunpack.c.l.b16 %v1571
      %v1604 = vunpack.c.l.b16 %v1572
      %v1605 = vunpack.c.l.b16 %v1573
      %v1606 = vunpack.c.l.b16 %v1574
      %v1607 = vunpack.c.l.b16 %v1575
      %v1608 = vunpack.c.l.b16 %v1576
      %v1609 = vunpack.c.l.b16 %v1577
      %v1610 = vunpack.c.l.b16 %v1578
      %v1611 = vunpack.c.l.b16 %v1579
      %v1612 = vunpack.c.l.b16 %v1580
      %v1613 = vpack.c.b16 %v1598, %v1597
      %v1614 = vpack.c.b16 %v1600, %v1599
      %v1615 = vpack.c.b16 %v1602, %v1601
      %v1616 = vpack.c.b16 %v1604, %v1603
      %v1617 = vpack.c.b16 %v1606, %v1605
      %v1618 = vpack.c.b16 %v1608, %v1607
      %v1619 = vpack.c.b16 %v1610, %v1609
      %v1620 = vpack.c.b16 %v1612, %v1611
      %1629 = vmatpush.bf16.msra.mxu0 %v1620
      %1630 = vmatpush.bf16.msra.mxu0 %v1619
      %1631 = vmatpush.bf16.msra.mxu0 %v1618
      %1632 = vmatpush.bf16.msra.mxu0 %v1617
      %1633 = vmatpush.bf16.msra.mxu0 %v1616
      %1634 = vmatpush.bf16.msra.mxu0 %v1615
      %1635 = vmatpush.bf16.msra.mxu0 %v1614
      %1636 = vmatpush.bf16.msra.mxu0 %v1613
      %1637 = vmatmul.bf16.gmra.mxu0 %v1562
      %v1638 = vpop.f32.mrf.mxu0
      %v1639 = vadd.f32 0.0, %v1638
      %v1640 = vpop.f32.mrf.mxu0
      %1641 = vdwg.mxu0
      %v1642 = vunpack.c.l.bf16 %v1564
      %v1643 = vadd.f32 %v1642, %v1639
      %v1644 = vxor.u32 %v1643, 2147483648
      %v1645 = vmul.f32 %v1644, 1.442695
      %v1646 = vpow.pop %v1645
      %v1647 = vadd.f32 %v1646, 1.0
      %v1648 = vrcp.pop %v1647
      %v1649 = vmul.f32 %v1647, %v1648
      %v1650 = vsub.f32 1.0, %v1649
      %v1651 = vmul.f32 %v1648, %v1650
      %v1652 = vadd.f32 %v1648, %v1651
      %vm1653 = vweird.f32 %v1647
      %vm1654 = vweird.f32 %v1648
      %vm1655 = vmor %vm1653, %vm1654
      %v1656 = vsel %vm1655, %v1648, %v1652
      %v1657 = vand.u32 2147483647, %v1647
      %vm1658 = vcmp.eq.f32.partialorder %v1657, 8.507059e+37
      %v1659 = vand.u32 %v1647, 2147483648
      %v1660 = vor.u32 1.1754944e-38, %v1659
      %v1661 = vsel %vm1658, %v1660, %v1656
      %v1662 = vmul.f32 1.0, %v1661
      %v1663 = vld [vmem:[%s1563 + $0x4] sm:$0xf]
      %v1664 = vld [vmem:[#allocation2 + $0x4] sm:$0xf]
      %v1665 = vld [vmem:[#allocation2 + $0x14] sm:$0xf]
      %v1666 = vld [vmem:[#allocation2 + $0x24] sm:$0xf]
      %v1667 = vld [vmem:[#allocation2 + $0x34] sm:$0xf]
      %v1668 = vld [vmem:[#allocation2 + $0x44] sm:$0xf]
      %v1669 = vld [vmem:[#allocation2 + $0x54] sm:$0xf]
      %v1670 = vld [vmem:[#allocation2 + $0x64] sm:$0xf]
      %v1671 = vld [vmem:[#allocation2 + $0x74] sm:$0xf]
      %v1672 = vld [vmem:[#allocation2 + $0x84] sm:$0xf]
      %v1673 = vld [vmem:[#allocation2 + $0x94] sm:$0xf]
      %v1674 = vld [vmem:[#allocation2 + $0xa4] sm:$0xf]
      %v1675 = vld [vmem:[#allocation2 + $0xb4] sm:$0xf]
      %v1676 = vld [vmem:[#allocation2 + $0xc4] sm:$0xf]
      %v1677 = vld [vmem:[#allocation2 + $0xd4] sm:$0xf]
      %v1678 = vld [vmem:[#allocation2 + $0xe4] sm:$0xf]
      %v1679 = vld [vmem:[#allocation2 + $0xf4] sm:$0xf]
      %v1696 = vunpack.c.l.b16 %v1664
      %v1697 = vunpack.c.l.b16 %v1665
      %v1698 = vunpack.c.l.b16 %v1666
      %v1699 = vunpack.c.l.b16 %v1667
      %v1700 = vunpack.c.l.b16 %v1668
      %v1701 = vunpack.c.l.b16 %v1669
      %v1702 = vunpack.c.l.b16 %v1670
      %v1703 = vunpack.c.l.b16 %v1671
      %v1704 = vunpack.c.l.b16 %v1672
      %v1705 = vunpack.c.l.b16 %v1673
      %v1706 = vunpack.c.l.b16 %v1674
      %v1707 = vunpack.c.l.b16 %v1675
      %v1708 = vunpack.c.l.b16 %v1676
      %v1709 = vunpack.c.l.b16 %v1677
      %v1710 = vunpack.c.l.b16 %v1678
      %v1711 = vunpack.c.l.b16 %v1679
      %v1712 = vpack.c.b16 %v1697, %v1696
      %v1713 = vpack.c.b16 %v1699, %v1698
      %v1714 = vpack.c.b16 %v1701, %v1700
      %v1715 = vpack.c.b16 %v1703, %v1702
      %v1716 = vpack.c.b16 %v1705, %v1704
      %v1717 = vpack.c.b16 %v1707, %v1706
      %v1718 = vpack.c.b16 %v1709, %v1708
      %v1719 = vpack.c.b16 %v1711, %v1710
      %1728 = vmatpush.bf16.msra.mxu0 %v1719
      %1729 = vmatpush.bf16.msra.mxu0 %v1718
      %1730 = vmatpush.bf16.msra.mxu0 %v1717
      %1731 = vmatpush.bf16.msra.mxu0 %v1716
      %1732 = vmatpush.bf16.msra.mxu0 %v1715
      %1733 = vmatpush.bf16.msra.mxu0 %v1714
      %1734 = vmatpush.bf16.msra.mxu0 %v1713
      %1735 = vmatpush.bf16.msra.mxu0 %v1712
      %1736 = vmatmul.bf16.gmra.mxu0 %v1562
      %v1737 = vpop.f32.mrf.mxu0
      %v1738 = vadd.f32 0.0, %v1737
      %v1739 = vpop.f32.mrf.mxu0
      %1740 = vdwg.mxu0
      %v1741 = vunpack.c.l.bf16 %v1663
      %v1742 = vadd.f32 %v1741, %v1738
      %v1743 = vxor.u32 %v1742, 2147483648
      %v1744 = vmul.f32 %v1743, 1.442695
      %v1745 = vpow.pop %v1744
      %v1746 = vadd.f32 %v1745, 1.0
      %v1747 = vrcp.pop %v1746
      %v1748 = vmul.f32 %v1746, %v1747
      %v1749 = vsub.f32 1.0, %v1748
      %v1750 = vmul.f32 %v1747, %v1749
      %v1751 = vadd.f32 %v1747, %v1750
      %vm1752 = vweird.f32 %v1746
      %vm1753 = vweird.f32 %v1747
      %vm1754 = vmor %vm1752, %vm1753
      %v1755 = vsel %vm1754, %v1747, %v1751
      %v1756 = vand.u32 2147483647, %v1746
      %vm1757 = vcmp.eq.f32.partialorder %v1756, 8.507059e+37
      %v1758 = vand.u32 %v1746, 2147483648
      %v1759 = vor.u32 1.1754944e-38, %v1758
      %v1760 = vsel %vm1757, %v1759, %v1755
      %v1761 = vmul.f32 1.0, %v1760
      %v1762 = vld [vmem:[%s1563 + $0x8] sm:$0xf]
      %v1763 = vld [vmem:[#allocation2 + $0x8] sm:$0xf]
      %v1764 = vld [vmem:[#allocation2 + $0x18] sm:$0xf]
      %v1765 = vld [vmem:[#allocation2 + $0x28] sm:$0xf]
      %v1766 = vld [vmem:[#allocation2 + $0x38] sm:$0xf]
      %v1767 = vld [vmem:[#allocation2 + $0x48] sm:$0xf]
      %v1768 = vld [vmem:[#allocation2 + $0x58] sm:$0xf]
      %v1769 = vld [vmem:[#allocation2 + $0x68] sm:$0xf]
      %v1770 = vld [vmem:[#allocation2 + $0x78] sm:$0xf]
      %v1771 = vld [vmem:[#allocation2 + $0x88] sm:$0xf]
      %v1772 = vld [vmem:[#allocation2 + $0x98] sm:$0xf]
      %v1773 = vld [vmem:[#allocation2 + $0xa8] sm:$0xf]
      %v1774 = vld [vmem:[#allocation2 + $0xb8] sm:$0xf]
      %v1775 = vld [vmem:[#allocation2 + $0xc8] sm:$0xf]
      %v1776 = vld [vmem:[#allocation2 + $0xd8] sm:$0xf]
      %v1777 = vld [vmem:[#allocation2 + $0xe8] sm:$0xf]
      %v1778 = vld [vmem:[#allocation2 + $0xf8] sm:$0xf]
      %v1795 = vunpack.c.l.b16 %v1763
      %v1796 = vunpack.c.l.b16 %v1764
      %v1797 = vunpack.c.l.b16 %v1765
      %v1798 = vunpack.c.l.b16 %v1766
      %v1799 = vunpack.c.l.b16 %v1767
      %v1800 = vunpack.c.l.b16 %v1768
      %v1801 = vunpack.c.l.b16 %v1769
      %v1802 = vunpack.c.l.b16 %v1770
      %v1803 = vunpack.c.l.b16 %v1771
      %v1804 = vunpack.c.l.b16 %v1772
      %v1805 = vunpack.c.l.b16 %v1773
      %v1806 = vunpack.c.l.b16 %v1774
      %v1807 = vunpack.c.l.b16 %v1775
      %v1808 = vunpack.c.l.b16 %v1776
      %v1809 = vunpack.c.l.b16 %v1777
      %v1810 = vunpack.c.l.b16 %v1778
      %v1811 = vpack.c.b16 %v1796, %v1795
      %v1812 = vpack.c.b16 %v1798, %v1797
      %v1813 = vpack.c.b16 %v1800, %v1799
      %v1814 = vpack.c.b16 %v1802, %v1801
      %v1815 = vpack.c.b16 %v1804, %v1803
      %v1816 = vpack.c.b16 %v1806, %v1805
      %v1817 = vpack.c.b16 %v1808, %v1807
      %v1818 = vpack.c.b16 %v1810, %v1809
      %1827 = vmatpush.bf16.msra.mxu0 %v1818
      %1828 = vmatpush.bf16.msra.mxu0 %v1817
      %1829 = vmatpush.bf16.msra.mxu0 %v1816
      %1830 = vmatpush.bf16.msra.mxu0 %v1815
      %1831 = vmatpush.bf16.msra.mxu0 %v1814
      %1832 = vmatpush.bf16.msra.mxu0 %v1813
      %1833 = vmatpush.bf16.msra.mxu0 %v1812
      %1834 = vmatpush.bf16.msra.mxu0 %v1811
      %1835 = vmatmul.bf16.gmra.mxu0 %v1562
      %v1836 = vpop.f32.mrf.mxu0
      %v1837 = vadd.f32 0.0, %v1836
      %v1838 = vpop.f32.mrf.mxu0
      %1839 = vdwg.mxu0
      %v1840 = vunpack.c.l.bf16 %v1762
      %v1841 = vadd.f32 %v1840, %v1837
      %v1842 = vtanh.pop %v1841
      %v1843 = vld [vmem:[%s1563 + $0xc] sm:$0xf]
      %v1844 = vld [vmem:[#allocation2 + $0xc] sm:$0xf]
      %v1845 = vld [vmem:[#allocation2 + $0x1c] sm:$0xf]
      %v1846 = vld [vmem:[#allocation2 + $0x2c] sm:$0xf]
      %v1847 = vld [vmem:[#allocation2 + $0x3c] sm:$0xf]
      %v1848 = vld [vmem:[#allocation2 + $0x4c] sm:$0xf]
      %v1849 = vld [vmem:[#allocation2 + $0x5c] sm:$0xf]
      %v1850 = vld [vmem:[#allocation2 + $0x6c] sm:$0xf]
      %v1851 = vld [vmem:[#allocation2 + $0x7c] sm:$0xf]
      %v1852 = vld [vmem:[#allocation2 + $0x8c] sm:$0xf]
      %v1853 = vld [vmem:[#allocation2 + $0x9c] sm:$0xf]
      %v1854 = vld [vmem:[#allocation2 + $0xac] sm:$0xf]
      %v1855 = vld [vmem:[#allocation2 + $0xbc] sm:$0xf]
      %v1856 = vld [vmem:[#allocation2 + $0xcc] sm:$0xf]
      %v1857 = vld [vmem:[#allocation2 + $0xdc] sm:$0xf]
      %v1858 = vld [vmem:[#allocation2 + $0xec] sm:$0xf]
      %v1859 = vld [vmem:[#allocation2 + $0xfc] sm:$0xf]
      %v1876 = vunpack.c.l.b16 %v1844
      %v1877 = vunpack.c.l.b16 %v1845
      %v1878 = vunpack.c.l.b16 %v1846
      %v1879 = vunpack.c.l.b16 %v1847
      %v1880 = vunpack.c.l.b16 %v1848
      %v1881 = vunpack.c.l.b16 %v1849
      %v1882 = vunpack.c.l.b16 %v1850
      %v1883 = vunpack.c.l.b16 %v1851
      %v1884 = vunpack.c.l.b16 %v1852
      %v1885 = vunpack.c.l.b16 %v1853
      %v1886 = vunpack.c.l.b16 %v1854
      %v1887 = vunpack.c.l.b16 %v1855
      %v1888 = vunpack.c.l.b16 %v1856
      %v1889 = vunpack.c.l.b16 %v1857
      %v1890 = vunpack.c.l.b16 %v1858
      %v1891 = vunpack.c.l.b16 %v1859
      %v1892 = vpack.c.b16 %v1877, %v1876
      %v1893 = vpack.c.b16 %v1879, %v1878
      %v1894 = vpack.c.b16 %v1881, %v1880
      %v1895 = vpack.c.b16 %v1883, %v1882
      %v1896 = vpack.c.b16 %v1885, %v1884
      %v1897 = vpack.c.b16 %v1887, %v1886
      %v1898 = vpack.c.b16 %v1889, %v1888
      %v1899 = vpack.c.b16 %v1891, %v1890
      %1908 = vmatpush.bf16.msra.mxu0 %v1899
      %1909 = vmatpush.bf16.msra.mxu0 %v1898
      %1910 = vmatpush.bf16.msra.mxu0 %v1897
      %1911 = vmatpush.bf16.msra.mxu0 %v1896
      %1912 = vmatpush.bf16.msra.mxu0 %v1895
      %1913 = vmatpush.bf16.msra.mxu0 %v1894
      %1914 = vmatpush.bf16.msra.mxu0 %v1893
      %1915 = vmatpush.bf16.msra.mxu0 %v1892
      %1916 = vmatmul.bf16.gmra.mxu0 %v1562
      %v1917 = vpop.f32.mrf.mxu0
      %v1918 = vadd.f32 0.0, %v1917
      %v1919 = vpop.f32.mrf.mxu0
      %1920 = vdwg.mxu0
      %v1921 = vunpack.c.l.bf16 %v1843
      %v1922 = vadd.f32 %v1921, %v1918
      %v1923 = vxor.u32 %v1922, 2147483648
      %v1924 = vmul.f32 %v1923, 1.442695
      %v1925 = vpow.pop %v1924
      %v1926 = vadd.f32 %v1925, 1.0
      %v1927 = vrcp.pop %v1926
      %v1928 = vmul.f32 %v1926, %v1927
      %v1929 = vsub.f32 1.0, %v1928
      %v1930 = vmul.f32 %v1927, %v1929
      %v1931 = vadd.f32 %v1927, %v1930
      %vm1932 = vweird.f32 %v1926
      %vm1933 = vweird.f32 %v1927
      %vm1934 = vmor %vm1932, %vm1933
      %v1935 = vsel %vm1934, %v1927, %v1931
      %v1936 = vand.u32 2147483647, %v1926
      %vm1937 = vcmp.eq.f32.partialorder %v1936, 8.507059e+37
      %v1938 = vand.u32 %v1926, 2147483648
      %v1939 = vor.u32 1.1754944e-38, %v1938
      %v1940 = vsel %vm1937, %v1939, %v1935
      %v1941 = vmul.f32 1.0, %v1940
      %v1942 = vmul.f32 %v1761, %v1558
      %v1943 = vmul.f32 %v1662, %v1842
      %v1944 = vadd.f32 %v1942, %v1943
      %v1945 = vtanh.pop %v1944
      %v1946 = vmul.f32 %v1941, %v1945
      %s1947 = sadd.s32 %s754, 3
      %v1948 = vstv %s1947
      %vm1949 = vcmp.lt.s32.totalorder %v1948, %v367
      %v1950 = vsel %vm1949, 1, 0
      %1951 = vset.pattern.permute.xlu0 0
      %1952 = vperm.xlu0 %1951, %v1950
      %v1953 = vpop.permute.xlu0 %1952
      %vm1954 = vcmp.eq.s32.totalorder %v1953, 1
      %v1955 = vsel %vm1954, %v1946, %v1557
      %v1956 = vsel %vm1954, %v1944, %v1558
      %v1957 = vsel %vm1954, %v1946, 0.0
      %s1958 = scalar_lea.vmem %s267, 24
      %1959 = vst [vmem:[%s1958] sm:$0xff] %v1957
      %v1960 = vpack.c.bf16 %v1955, %v1955
      %s1961 = scalar_lea.vmem %s258, 64
      %v1962 = vld [vmem:[%s1961] sm:$0xf]
      %v1963 = vld [vmem:[#allocation2] sm:$0xf]
      %v1964 = vld [vmem:[#allocation2 + $0x10] sm:$0xf]
      %v1965 = vld [vmem:[#allocation2 + $0x20] sm:$0xf]
      %v1966 = vld [vmem:[#allocation2 + $0x30] sm:$0xf]
      %v1967 = vld [vmem:[#allocation2 + $0x40] sm:$0xf]
      %v1968 = vld [vmem:[#allocation2 + $0x50] sm:$0xf]
      %v1969 = vld [vmem:[#allocation2 + $0x60] sm:$0xf]
      %v1970 = vld [vmem:[#allocation2 + $0x70] sm:$0xf]
      %v1971 = vld [vmem:[#allocation2 + $0x80] sm:$0xf]
      %v1972 = vld [vmem:[#allocation2 + $0x90] sm:$0xf]
      %v1973 = vld [vmem:[#allocation2 + $0xa0] sm:$0xf]
      %v1974 = vld [vmem:[#allocation2 + $0xb0] sm:$0xf]
      %v1975 = vld [vmem:[#allocation2 + $0xc0] sm:$0xf]
      %v1976 = vld [vmem:[#allocation2 + $0xd0] sm:$0xf]
      %v1977 = vld [vmem:[#allocation2 + $0xe0] sm:$0xf]
      %v1978 = vld [vmem:[#allocation2 + $0xf0] sm:$0xf]
      %v1995 = vunpack.c.l.b16 %v1963
      %v1996 = vunpack.c.l.b16 %v1964
      %v1997 = vunpack.c.l.b16 %v1965
      %v1998 = vunpack.c.l.b16 %v1966
      %v1999 = vunpack.c.l.b16 %v1967
      %v2000 = vunpack.c.l.b16 %v1968
      %v2001 = vunpack.c.l.b16 %v1969
      %v2002 = vunpack.c.l.b16 %v1970
      %v2003 = vunpack.c.l.b16 %v1971
      %v2004 = vunpack.c.l.b16 %v1972
      %v2005 = vunpack.c.l.b16 %v1973
      %v2006 = vunpack.c.l.b16 %v1974
      %v2007 = vunpack.c.l.b16 %v1975
      %v2008 = vunpack.c.l.b16 %v1976
      %v2009 = vunpack.c.l.b16 %v1977
      %v2010 = vunpack.c.l.b16 %v1978
      %v2011 = vpack.c.b16 %v1996, %v1995
      %v2012 = vpack.c.b16 %v1998, %v1997
      %v2013 = vpack.c.b16 %v2000, %v1999
      %v2014 = vpack.c.b16 %v2002, %v2001
      %v2015 = vpack.c.b16 %v2004, %v2003
      %v2016 = vpack.c.b16 %v2006, %v2005
      %v2017 = vpack.c.b16 %v2008, %v2007
      %v2018 = vpack.c.b16 %v2010, %v2009
      %2027 = vmatpush.bf16.msra.mxu0 %v2018
      %2028 = vmatpush.bf16.msra.mxu0 %v2017
      %2029 = vmatpush.bf16.msra.mxu0 %v2016
      %2030 = vmatpush.bf16.msra.mxu0 %v2015
      %2031 = vmatpush.bf16.msra.mxu0 %v2014
      %2032 = vmatpush.bf16.msra.mxu0 %v2013
      %2033 = vmatpush.bf16.msra.mxu0 %v2012
      %2034 = vmatpush.bf16.msra.mxu0 %v2011
      %2035 = vmatmul.bf16.gmra.mxu0 %v1960
      %v2036 = vpop.f32.mrf.mxu0
      %v2037 = vadd.f32 0.0, %v2036
      %v2038 = vpop.f32.mrf.mxu0
      %2039 = vdwg.mxu0
      %v2040 = vunpack.c.l.bf16 %v1962
      %v2041 = vadd.f32 %v2040, %v2037
      %v2042 = vxor.u32 %v2041, 2147483648
      %v2043 = vmul.f32 %v2042, 1.442695
      %v2044 = vpow.pop %v2043
      %v2045 = vadd.f32 %v2044, 1.0
      %v2046 = vrcp.pop %v2045
      %v2047 = vmul.f32 %v2045, %v2046
      %v2048 = vsub.f32 1.0, %v2047
      %v2049 = vmul.f32 %v2046, %v2048
      %v2050 = vadd.f32 %v2046, %v2049
      %vm2051 = vweird.f32 %v2045
      %vm2052 = vweird.f32 %v2046
      %vm2053 = vmor %vm2051, %vm2052
      %v2054 = vsel %vm2053, %v2046, %v2050
      %v2055 = vand.u32 2147483647, %v2045
      %vm2056 = vcmp.eq.f32.partialorder %v2055, 8.507059e+37
      %v2057 = vand.u32 %v2045, 2147483648
      %v2058 = vor.u32 1.1754944e-38, %v2057
      %v2059 = vsel %vm2056, %v2058, %v2054
      %v2060 = vmul.f32 1.0, %v2059
      %v2061 = vld [vmem:[%s1961 + $0x4] sm:$0xf]
      %v2062 = vld [vmem:[#allocation2 + $0x4] sm:$0xf]
      %v2063 = vld [vmem:[#allocation2 + $0x14] sm:$0xf]
      %v2064 = vld [vmem:[#allocation2 + $0x24] sm:$0xf]
      %v2065 = vld [vmem:[#allocation2 + $0x34] sm:$0xf]
      %v2066 = vld [vmem:[#allocation2 + $0x44] sm:$0xf]
      %v2067 = vld [vmem:[#allocation2 + $0x54] sm:$0xf]
      %v2068 = vld [vmem:[#allocation2 + $0x64] sm:$0xf]
      %v2069 = vld [vmem:[#allocation2 + $0x74] sm:$0xf]
      %v2070 = vld [vmem:[#allocation2 + $0x84] sm:$0xf]
      %v2071 = vld [vmem:[#allocation2 + $0x94] sm:$0xf]
      %v2072 = vld [vmem:[#allocation2 + $0xa4] sm:$0xf]
      %v2073 = vld [vmem:[#allocation2 + $0xb4] sm:$0xf]
      %v2074 = vld [vmem:[#allocation2 + $0xc4] sm:$0xf]
      %v2075 = vld [vmem:[#allocation2 + $0xd4] sm:$0xf]
      %v2076 = vld [vmem:[#allocation2 + $0xe4] sm:$0xf]
      %v2077 = vld [vmem:[#allocation2 + $0xf4] sm:$0xf]
      %v2094 = vunpack.c.l.b16 %v2062
      %v2095 = vunpack.c.l.b16 %v2063
      %v2096 = vunpack.c.l.b16 %v2064
      %v2097 = vunpack.c.l.b16 %v2065
      %v2098 = vunpack.c.l.b16 %v2066
      %v2099 = vunpack.c.l.b16 %v2067
      %v2100 = vunpack.c.l.b16 %v2068
      %v2101 = vunpack.c.l.b16 %v2069
      %v2102 = vunpack.c.l.b16 %v2070
      %v2103 = vunpack.c.l.b16 %v2071
      %v2104 = vunpack.c.l.b16 %v2072
      %v2105 = vunpack.c.l.b16 %v2073
      %v2106 = vunpack.c.l.b16 %v2074
      %v2107 = vunpack.c.l.b16 %v2075
      %v2108 = vunpack.c.l.b16 %v2076
      %v2109 = vunpack.c.l.b16 %v2077
      %v2110 = vpack.c.b16 %v2095, %v2094
      %v2111 = vpack.c.b16 %v2097, %v2096
      %v2112 = vpack.c.b16 %v2099, %v2098
      %v2113 = vpack.c.b16 %v2101, %v2100
      %v2114 = vpack.c.b16 %v2103, %v2102
      %v2115 = vpack.c.b16 %v2105, %v2104
      %v2116 = vpack.c.b16 %v2107, %v2106
      %v2117 = vpack.c.b16 %v2109, %v2108
      %2126 = vmatpush.bf16.msra.mxu0 %v2117
      %2127 = vmatpush.bf16.msra.mxu0 %v2116
      %2128 = vmatpush.bf16.msra.mxu0 %v2115
      %2129 = vmatpush.bf16.msra.mxu0 %v2114
      %2130 = vmatpush.bf16.msra.mxu0 %v2113
      %2131 = vmatpush.bf16.msra.mxu0 %v2112
      %2132 = vmatpush.bf16.msra.mxu0 %v2111
      %2133 = vmatpush.bf16.msra.mxu0 %v2110
      %2134 = vmatmul.bf16.gmra.mxu0 %v1960
      %v2135 = vpop.f32.mrf.mxu0
      %v2136 = vadd.f32 0.0, %v2135
      %v2137 = vpop.f32.mrf.mxu0
      %2138 = vdwg.mxu0
      %v2139 = vunpack.c.l.bf16 %v2061
      %v2140 = vadd.f32 %v2139, %v2136
      %v2141 = vxor.u32 %v2140, 2147483648
      %v2142 = vmul.f32 %v2141, 1.442695
      %v2143 = vpow.pop %v2142
      %v2144 = vadd.f32 %v2143, 1.0
      %v2145 = vrcp.pop %v2144
      %v2146 = vmul.f32 %v2144, %v2145
      %v2147 = vsub.f32 1.0, %v2146
      %v2148 = vmul.f32 %v2145, %v2147
      %v2149 = vadd.f32 %v2145, %v2148
      %vm2150 = vweird.f32 %v2144
      %vm2151 = vweird.f32 %v2145
      %vm2152 = vmor %vm2150, %vm2151
      %v2153 = vsel %vm2152, %v2145, %v2149
      %v2154 = vand.u32 2147483647, %v2144
      %vm2155 = vcmp.eq.f32.partialorder %v2154, 8.507059e+37
      %v2156 = vand.u32 %v2144, 2147483648
      %v2157 = vor.u32 1.1754944e-38, %v2156
      %v2158 = vsel %vm2155, %v2157, %v2153
      %v2159 = vmul.f32 1.0, %v2158
      %v2160 = vld [vmem:[%s1961 + $0x8] sm:$0xf]
      %v2161 = vld [vmem:[#allocation2 + $0x8] sm:$0xf]
      %v2162 = vld [vmem:[#allocation2 + $0x18] sm:$0xf]
      %v2163 = vld [vmem:[#allocation2 + $0x28] sm:$0xf]
      %v2164 = vld [vmem:[#allocation2 + $0x38] sm:$0xf]
      %v2165 = vld [vmem:[#allocation2 + $0x48] sm:$0xf]
      %v2166 = vld [vmem:[#allocation2 + $0x58] sm:$0xf]
      %v2167 = vld [vmem:[#allocation2 + $0x68] sm:$0xf]
      %v2168 = vld [vmem:[#allocation2 + $0x78] sm:$0xf]
      %v2169 = vld [vmem:[#allocation2 + $0x88] sm:$0xf]
      %v2170 = vld [vmem:[#allocation2 + $0x98] sm:$0xf]
      %v2171 = vld [vmem:[#allocation2 + $0xa8] sm:$0xf]
      %v2172 = vld [vmem:[#allocation2 + $0xb8] sm:$0xf]
      %v2173 = vld [vmem:[#allocation2 + $0xc8] sm:$0xf]
      %v2174 = vld [vmem:[#allocation2 + $0xd8] sm:$0xf]
      %v2175 = vld [vmem:[#allocation2 + $0xe8] sm:$0xf]
      %v2176 = vld [vmem:[#allocation2 + $0xf8] sm:$0xf]
      %v2193 = vunpack.c.l.b16 %v2161
      %v2194 = vunpack.c.l.b16 %v2162
      %v2195 = vunpack.c.l.b16 %v2163
      %v2196 = vunpack.c.l.b16 %v2164
      %v2197 = vunpack.c.l.b16 %v2165
      %v2198 = vunpack.c.l.b16 %v2166
      %v2199 = vunpack.c.l.b16 %v2167
      %v2200 = vunpack.c.l.b16 %v2168
      %v2201 = vunpack.c.l.b16 %v2169
      %v2202 = vunpack.c.l.b16 %v2170
      %v2203 = vunpack.c.l.b16 %v2171
      %v2204 = vunpack.c.l.b16 %v2172
      %v2205 = vunpack.c.l.b16 %v2173
      %v2206 = vunpack.c.l.b16 %v2174
      %v2207 = vunpack.c.l.b16 %v2175
      %v2208 = vunpack.c.l.b16 %v2176
      %v2209 = vpack.c.b16 %v2194, %v2193
      %v2210 = vpack.c.b16 %v2196, %v2195
      %v2211 = vpack.c.b16 %v2198, %v2197
      %v2212 = vpack.c.b16 %v2200, %v2199
      %v2213 = vpack.c.b16 %v2202, %v2201
      %v2214 = vpack.c.b16 %v2204, %v2203
      %v2215 = vpack.c.b16 %v2206, %v2205
      %v2216 = vpack.c.b16 %v2208, %v2207
      %2225 = vmatpush.bf16.msra.mxu0 %v2216
      %2226 = vmatpush.bf16.msra.mxu0 %v2215
      %2227 = vmatpush.bf16.msra.mxu0 %v2214
      %2228 = vmatpush.bf16.msra.mxu0 %v2213
      %2229 = vmatpush.bf16.msra.mxu0 %v2212
      %2230 = vmatpush.bf16.msra.mxu0 %v2211
      %2231 = vmatpush.bf16.msra.mxu0 %v2210
      %2232 = vmatpush.bf16.msra.mxu0 %v2209
      %2233 = vmatmul.bf16.gmra.mxu0 %v1960
      %v2234 = vpop.f32.mrf.mxu0
      %v2235 = vadd.f32 0.0, %v2234
      %v2236 = vpop.f32.mrf.mxu0
      %2237 = vdwg.mxu0
      %v2238 = vunpack.c.l.bf16 %v2160
      %v2239 = vadd.f32 %v2238, %v2235
      %v2240 = vtanh.pop %v2239
      %v2241 = vld [vmem:[%s1961 + $0xc] sm:$0xf]
      %v2242 = vld [vmem:[#allocation2 + $0xc] sm:$0xf]
      %v2243 = vld [vmem:[#allocation2 + $0x1c] sm:$0xf]
      %v2244 = vld [vmem:[#allocation2 + $0x2c] sm:$0xf]
      %v2245 = vld [vmem:[#allocation2 + $0x3c] sm:$0xf]
      %v2246 = vld [vmem:[#allocation2 + $0x4c] sm:$0xf]
      %v2247 = vld [vmem:[#allocation2 + $0x5c] sm:$0xf]
      %v2248 = vld [vmem:[#allocation2 + $0x6c] sm:$0xf]
      %v2249 = vld [vmem:[#allocation2 + $0x7c] sm:$0xf]
      %v2250 = vld [vmem:[#allocation2 + $0x8c] sm:$0xf]
      %v2251 = vld [vmem:[#allocation2 + $0x9c] sm:$0xf]
      %v2252 = vld [vmem:[#allocation2 + $0xac] sm:$0xf]
      %v2253 = vld [vmem:[#allocation2 + $0xbc] sm:$0xf]
      %v2254 = vld [vmem:[#allocation2 + $0xcc] sm:$0xf]
      %v2255 = vld [vmem:[#allocation2 + $0xdc] sm:$0xf]
      %v2256 = vld [vmem:[#allocation2 + $0xec] sm:$0xf]
      %v2257 = vld [vmem:[#allocation2 + $0xfc] sm:$0xf]
      %v2274 = vunpack.c.l.b16 %v2242
      %v2275 = vunpack.c.l.b16 %v2243
      %v2276 = vunpack.c.l.b16 %v2244
      %v2277 = vunpack.c.l.b16 %v2245
      %v2278 = vunpack.c.l.b16 %v2246
      %v2279 = vunpack.c.l.b16 %v2247
      %v2280 = vunpack.c.l.b16 %v2248
      %v2281 = vunpack.c.l.b16 %v2249
      %v2282 = vunpack.c.l.b16 %v2250
      %v2283 = vunpack.c.l.b16 %v2251
      %v2284 = vunpack.c.l.b16 %v2252
      %v2285 = vunpack.c.l.b16 %v2253
      %v2286 = vunpack.c.l.b16 %v2254
      %v2287 = vunpack.c.l.b16 %v2255
      %v2288 = vunpack.c.l.b16 %v2256
      %v2289 = vunpack.c.l.b16 %v2257
      %v2290 = vpack.c.b16 %v2275, %v2274
      %v2291 = vpack.c.b16 %v2277, %v2276
      %v2292 = vpack.c.b16 %v2279, %v2278
      %v2293 = vpack.c.b16 %v2281, %v2280
      %v2294 = vpack.c.b16 %v2283, %v2282
      %v2295 = vpack.c.b16 %v2285, %v2284
      %v2296 = vpack.c.b16 %v2287, %v2286
      %v2297 = vpack.c.b16 %v2289, %v2288
      %2306 = vmatpush.bf16.msra.mxu0 %v2297
      %2307 = vmatpush.bf16.msra.mxu0 %v2296
      %2308 = vmatpush.bf16.msra.mxu0 %v2295
      %2309 = vmatpush.bf16.msra.mxu0 %v2294
      %2310 = vmatpush.bf16.msra.mxu0 %v2293
      %2311 = vmatpush.bf16.msra.mxu0 %v2292
      %2312 = vmatpush.bf16.msra.mxu0 %v2291
      %2313 = vmatpush.bf16.msra.mxu0 %v2290
      %2314 = vmatmul.bf16.gmra.mxu0 %v1960
      %v2315 = vpop.f32.mrf.mxu0
      %v2316 = vadd.f32 0.0, %v2315
      %v2317 = vpop.f32.mrf.mxu0
      %2318 = vdwg.mxu0
      %v2319 = vunpack.c.l.bf16 %v2241
      %v2320 = vadd.f32 %v2319, %v2316
      %v2321 = vxor.u32 %v2320, 2147483648
      %v2322 = vmul.f32 %v2321, 1.442695
      %v2323 = vpow.pop %v2322
      %v2324 = vadd.f32 %v2323, 1.0
      %v2325 = vrcp.pop %v2324
      %v2326 = vmul.f32 %v2324, %v2325
      %v2327 = vsub.f32 1.0, %v2326
      %v2328 = vmul.f32 %v2325, %v2327
      %v2329 = vadd.f32 %v2325, %v2328
      %vm2330 = vweird.f32 %v2324
      %vm2331 = vweird.f32 %v2325
      %vm2332 = vmor %vm2330, %vm2331
      %v2333 = vsel %vm2332, %v2325, %v2329
      %v2334 = vand.u32 2147483647, %v2324
      %vm2335 = vcmp.eq.f32.partialorder %v2334, 8.507059e+37
      %v2336 = vand.u32 %v2324, 2147483648
      %v2337 = vor.u32 1.1754944e-38, %v2336
      %v2338 = vsel %vm2335, %v2337, %v2333
      %v2339 = vmul.f32 1.0, %v2338
      %v2340 = vmul.f32 %v2159, %v1956
      %v2341 = vmul.f32 %v2060, %v2240
      %v2342 = vadd.f32 %v2340, %v2341
      %v2343 = vtanh.pop %v2342
      %v2344 = vmul.f32 %v2339, %v2343
      %s2345 = sadd.s32 %s754, 4
      %v2346 = vstv %s2345
      %vm2347 = vcmp.lt.s32.totalorder %v2346, %v367
      %v2348 = vsel %vm2347, 1, 0
      %2349 = vset.pattern.permute.xlu0 0
      %2350 = vperm.xlu0 %2349, %v2348
      %v2351 = vpop.permute.xlu0 %2350
      %vm2352 = vcmp.eq.s32.totalorder %v2351, 1
      %v2353 = vsel %vm2352, %v2344, %v1955
      %v2354 = vsel %vm2352, %v2342, %v1956
      %v2355 = vsel %vm2352, %v2344, 0.0
      %s2356 = scalar_lea.vmem %s267, 32
      %2357 = vst [vmem:[%s2356] sm:$0xff] %v2355
      %v2358 = vpack.c.bf16 %v2353, %v2353
      %s2359 = scalar_lea.vmem %s258, 80
      %v2360 = vld [vmem:[%s2359] sm:$0xf]
      %v2361 = vld [vmem:[#allocation2] sm:$0xf]
      %v2362 = vld [vmem:[#allocation2 + $0x10] sm:$0xf]
      %v2363 = vld [vmem:[#allocation2 + $0x20] sm:$0xf]
      %v2364 = vld [vmem:[#allocation2 + $0x30] sm:$0xf]
      %v2365 = vld [vmem:[#allocation2 + $0x40] sm:$0xf]
      %v2366 = vld [vmem:[#allocation2 + $0x50] sm:$0xf]
      %v2367 = vld [vmem:[#allocation2 + $0x60] sm:$0xf]
      %v2368 = vld [vmem:[#allocation2 + $0x70] sm:$0xf]
      %v2369 = vld [vmem:[#allocation2 + $0x80] sm:$0xf]
      %v2370 = vld [vmem:[#allocation2 + $0x90] sm:$0xf]
      %v2371 = vld [vmem:[#allocation2 + $0xa0] sm:$0xf]
      %v2372 = vld [vmem:[#allocation2 + $0xb0] sm:$0xf]
      %v2373 = vld [vmem:[#allocation2 + $0xc0] sm:$0xf]
      %v2374 = vld [vmem:[#allocation2 + $0xd0] sm:$0xf]
      %v2375 = vld [vmem:[#allocation2 + $0xe0] sm:$0xf]
      %v2376 = vld [vmem:[#allocation2 + $0xf0] sm:$0xf]
      %v2393 = vunpack.c.l.b16 %v2361
      %v2394 = vunpack.c.l.b16 %v2362
      %v2395 = vunpack.c.l.b16 %v2363
      %v2396 = vunpack.c.l.b16 %v2364
      %v2397 = vunpack.c.l.b16 %v2365
      %v2398 = vunpack.c.l.b16 %v2366
      %v2399 = vunpack.c.l.b16 %v2367
      %v2400 = vunpack.c.l.b16 %v2368
      %v2401 = vunpack.c.l.b16 %v2369
      %v2402 = vunpack.c.l.b16 %v2370
      %v2403 = vunpack.c.l.b16 %v2371
      %v2404 = vunpack.c.l.b16 %v2372
      %v2405 = vunpack.c.l.b16 %v2373
      %v2406 = vunpack.c.l.b16 %v2374
      %v2407 = vunpack.c.l.b16 %v2375
      %v2408 = vunpack.c.l.b16 %v2376
      %v2409 = vpack.c.b16 %v2394, %v2393
      %v2410 = vpack.c.b16 %v2396, %v2395
      %v2411 = vpack.c.b16 %v2398, %v2397
      %v2412 = vpack.c.b16 %v2400, %v2399
      %v2413 = vpack.c.b16 %v2402, %v2401
      %v2414 = vpack.c.b16 %v2404, %v2403
      %v2415 = vpack.c.b16 %v2406, %v2405
      %v2416 = vpack.c.b16 %v2408, %v2407
      %2425 = vmatpush.bf16.msra.mxu0 %v2416
      %2426 = vmatpush.bf16.msra.mxu0 %v2415
      %2427 = vmatpush.bf16.msra.mxu0 %v2414
      %2428 = vmatpush.bf16.msra.mxu0 %v2413
      %2429 = vmatpush.bf16.msra.mxu0 %v2412
      %2430 = vmatpush.bf16.msra.mxu0 %v2411
      %2431 = vmatpush.bf16.msra.mxu0 %v2410
      %2432 = vmatpush.bf16.msra.mxu0 %v2409
      %2433 = vmatmul.bf16.gmra.mxu0 %v2358
      %v2434 = vpop.f32.mrf.mxu0
      %v2435 = vadd.f32 0.0, %v2434
      %v2436 = vpop.f32.mrf.mxu0
      %2437 = vdwg.mxu0
      %v2438 = vunpack.c.l.bf16 %v2360
      %v2439 = vadd.f32 %v2438, %v2435
      %v2440 = vxor.u32 %v2439, 2147483648
      %v2441 = vmul.f32 %v2440, 1.442695
      %v2442 = vpow.pop %v2441
      %v2443 = vadd.f32 %v2442, 1.0
      %v2444 = vrcp.pop %v2443
      %v2445 = vmul.f32 %v2443, %v2444
      %v2446 = vsub.f32 1.0, %v2445
      %v2447 = vmul.f32 %v2444, %v2446
      %v2448 = vadd.f32 %v2444, %v2447
      %vm2449 = vweird.f32 %v2443
      %vm2450 = vweird.f32 %v2444
      %vm2451 = vmor %vm2449, %vm2450
      %v2452 = vsel %vm2451, %v2444, %v2448
      %v2453 = vand.u32 2147483647, %v2443
      %vm2454 = vcmp.eq.f32.partialorder %v2453, 8.507059e+37
      %v2455 = vand.u32 %v2443, 2147483648
      %v2456 = vor.u32 1.1754944e-38, %v2455
      %v2457 = vsel %vm2454, %v2456, %v2452
      %v2458 = vmul.f32 1.0, %v2457
      %v2459 = vld [vmem:[%s2359 + $0x4] sm:$0xf]
      %v2460 = vld [vmem:[#allocation2 + $0x4] sm:$0xf]
      %v2461 = vld [vmem:[#allocation2 + $0x14] sm:$0xf]
      %v2462 = vld [vmem:[#allocation2 + $0x24] sm:$0xf]
      %v2463 = vld [vmem:[#allocation2 + $0x34] sm:$0xf]
      %v2464 = vld [vmem:[#allocation2 + $0x44] sm:$0xf]
      %v2465 = vld [vmem:[#allocation2 + $0x54] sm:$0xf]
      %v2466 = vld [vmem:[#allocation2 + $0x64] sm:$0xf]
      %v2467 = vld [vmem:[#allocation2 + $0x74] sm:$0xf]
      %v2468 = vld [vmem:[#allocation2 + $0x84] sm:$0xf]
      %v2469 = vld [vmem:[#allocation2 + $0x94] sm:$0xf]
      %v2470 = vld [vmem:[#allocation2 + $0xa4] sm:$0xf]
      %v2471 = vld [vmem:[#allocation2 + $0xb4] sm:$0xf]
      %v2472 = vld [vmem:[#allocation2 + $0xc4] sm:$0xf]
      %v2473 = vld [vmem:[#allocation2 + $0xd4] sm:$0xf]
      %v2474 = vld [vmem:[#allocation2 + $0xe4] sm:$0xf]
      %v2475 = vld [vmem:[#allocation2 + $0xf4] sm:$0xf]
      %v2492 = vunpack.c.l.b16 %v2460
      %v2493 = vunpack.c.l.b16 %v2461
      %v2494 = vunpack.c.l.b16 %v2462
      %v2495 = vunpack.c.l.b16 %v2463
      %v2496 = vunpack.c.l.b16 %v2464
      %v2497 = vunpack.c.l.b16 %v2465
      %v2498 = vunpack.c.l.b16 %v2466
      %v2499 = vunpack.c.l.b16 %v2467
      %v2500 = vunpack.c.l.b16 %v2468
      %v2501 = vunpack.c.l.b16 %v2469
      %v2502 = vunpack.c.l.b16 %v2470
      %v2503 = vunpack.c.l.b16 %v2471
      %v2504 = vunpack.c.l.b16 %v2472
      %v2505 = vunpack.c.l.b16 %v2473
      %v2506 = vunpack.c.l.b16 %v2474
      %v2507 = vunpack.c.l.b16 %v2475
      %v2508 = vpack.c.b16 %v2493, %v2492
      %v2509 = vpack.c.b16 %v2495, %v2494
      %v2510 = vpack.c.b16 %v2497, %v2496
      %v2511 = vpack.c.b16 %v2499, %v2498
      %v2512 = vpack.c.b16 %v2501, %v2500
      %v2513 = vpack.c.b16 %v2503, %v2502
      %v2514 = vpack.c.b16 %v2505, %v2504
      %v2515 = vpack.c.b16 %v2507, %v2506
      %2524 = vmatpush.bf16.msra.mxu0 %v2515
      %2525 = vmatpush.bf16.msra.mxu0 %v2514
      %2526 = vmatpush.bf16.msra.mxu0 %v2513
      %2527 = vmatpush.bf16.msra.mxu0 %v2512
      %2528 = vmatpush.bf16.msra.mxu0 %v2511
      %2529 = vmatpush.bf16.msra.mxu0 %v2510
      %2530 = vmatpush.bf16.msra.mxu0 %v2509
      %2531 = vmatpush.bf16.msra.mxu0 %v2508
      %2532 = vmatmul.bf16.gmra.mxu0 %v2358
      %v2533 = vpop.f32.mrf.mxu0
      %v2534 = vadd.f32 0.0, %v2533
      %v2535 = vpop.f32.mrf.mxu0
      %2536 = vdwg.mxu0
      %v2537 = vunpack.c.l.bf16 %v2459
      %v2538 = vadd.f32 %v2537, %v2534
      %v2539 = vxor.u32 %v2538, 2147483648
      %v2540 = vmul.f32 %v2539, 1.442695
      %v2541 = vpow.pop %v2540
      %v2542 = vadd.f32 %v2541, 1.0
      %v2543 = vrcp.pop %v2542
      %v2544 = vmul.f32 %v2542, %v2543
      %v2545 = vsub.f32 1.0, %v2544
      %v2546 = vmul.f32 %v2543, %v2545
      %v2547 = vadd.f32 %v2543, %v2546
      %vm2548 = vweird.f32 %v2542
      %vm2549 = vweird.f32 %v2543
      %vm2550 = vmor %vm2548, %vm2549
      %v2551 = vsel %vm2550, %v2543, %v2547
      %v2552 = vand.u32 2147483647, %v2542
      %vm2553 = vcmp.eq.f32.partialorder %v2552, 8.507059e+37
      %v2554 = vand.u32 %v2542, 2147483648
      %v2555 = vor.u32 1.1754944e-38, %v2554
      %v2556 = vsel %vm2553, %v2555, %v2551
      %v2557 = vmul.f32 1.0, %v2556
      %v2558 = vld [vmem:[%s2359 + $0x8] sm:$0xf]
      %v2559 = vld [vmem:[#allocation2 + $0x8] sm:$0xf]
      %v2560 = vld [vmem:[#allocation2 + $0x18] sm:$0xf]
      %v2561 = vld [vmem:[#allocation2 + $0x28] sm:$0xf]
      %v2562 = vld [vmem:[#allocation2 + $0x38] sm:$0xf]
      %v2563 = vld [vmem:[#allocation2 + $0x48] sm:$0xf]
      %v2564 = vld [vmem:[#allocation2 + $0x58] sm:$0xf]
      %v2565 = vld [vmem:[#allocation2 + $0x68] sm:$0xf]
      %v2566 = vld [vmem:[#allocation2 + $0x78] sm:$0xf]
      %v2567 = vld [vmem:[#allocation2 + $0x88] sm:$0xf]
      %v2568 = vld [vmem:[#allocation2 + $0x98] sm:$0xf]
      %v2569 = vld [vmem:[#allocation2 + $0xa8] sm:$0xf]
      %v2570 = vld [vmem:[#allocation2 + $0xb8] sm:$0xf]
      %v2571 = vld [vmem:[#allocation2 + $0xc8] sm:$0xf]
      %v2572 = vld [vmem:[#allocation2 + $0xd8] sm:$0xf]
      %v2573 = vld [vmem:[#allocation2 + $0xe8] sm:$0xf]
      %v2574 = vld [vmem:[#allocation2 + $0xf8] sm:$0xf]
      %v2591 = vunpack.c.l.b16 %v2559
      %v2592 = vunpack.c.l.b16 %v2560
      %v2593 = vunpack.c.l.b16 %v2561
      %v2594 = vunpack.c.l.b16 %v2562
      %v2595 = vunpack.c.l.b16 %v2563
      %v2596 = vunpack.c.l.b16 %v2564
      %v2597 = vunpack.c.l.b16 %v2565
      %v2598 = vunpack.c.l.b16 %v2566
      %v2599 = vunpack.c.l.b16 %v2567
      %v2600 = vunpack.c.l.b16 %v2568
      %v2601 = vunpack.c.l.b16 %v2569
      %v2602 = vunpack.c.l.b16 %v2570
      %v2603 = vunpack.c.l.b16 %v2571
      %v2604 = vunpack.c.l.b16 %v2572
      %v2605 = vunpack.c.l.b16 %v2573
      %v2606 = vunpack.c.l.b16 %v2574
      %v2607 = vpack.c.b16 %v2592, %v2591
      %v2608 = vpack.c.b16 %v2594, %v2593
      %v2609 = vpack.c.b16 %v2596, %v2595
      %v2610 = vpack.c.b16 %v2598, %v2597
      %v2611 = vpack.c.b16 %v2600, %v2599
      %v2612 = vpack.c.b16 %v2602, %v2601
      %v2613 = vpack.c.b16 %v2604, %v2603
      %v2614 = vpack.c.b16 %v2606, %v2605
      %2623 = vmatpush.bf16.msra.mxu0 %v2614
      %2624 = vmatpush.bf16.msra.mxu0 %v2613
      %2625 = vmatpush.bf16.msra.mxu0 %v2612
      %2626 = vmatpush.bf16.msra.mxu0 %v2611
      %2627 = vmatpush.bf16.msra.mxu0 %v2610
      %2628 = vmatpush.bf16.msra.mxu0 %v2609
      %2629 = vmatpush.bf16.msra.mxu0 %v2608
      %2630 = vmatpush.bf16.msra.mxu0 %v2607
      %2631 = vmatmul.bf16.gmra.mxu0 %v2358
      %v2632 = vpop.f32.mrf.mxu0
      %v2633 = vadd.f32 0.0, %v2632
      %v2634 = vpop.f32.mrf.mxu0
      %2635 = vdwg.mxu0
      %v2636 = vunpack.c.l.bf16 %v2558
      %v2637 = vadd.f32 %v2636, %v2633
      %v2638 = vtanh.pop %v2637
      %v2639 = vld [vmem:[%s2359 + $0xc] sm:$0xf]
      %v2640 = vld [vmem:[#allocation2 + $0xc] sm:$0xf]
      %v2641 = vld [vmem:[#allocation2 + $0x1c] sm:$0xf]
      %v2642 = vld [vmem:[#allocation2 + $0x2c] sm:$0xf]
      %v2643 = vld [vmem:[#allocation2 + $0x3c] sm:$0xf]
      %v2644 = vld [vmem:[#allocation2 + $0x4c] sm:$0xf]
      %v2645 = vld [vmem:[#allocation2 + $0x5c] sm:$0xf]
      %v2646 = vld [vmem:[#allocation2 + $0x6c] sm:$0xf]
      %v2647 = vld [vmem:[#allocation2 + $0x7c] sm:$0xf]
      %v2648 = vld [vmem:[#allocation2 + $0x8c] sm:$0xf]
      %v2649 = vld [vmem:[#allocation2 + $0x9c] sm:$0xf]
      %v2650 = vld [vmem:[#allocation2 + $0xac] sm:$0xf]
      %v2651 = vld [vmem:[#allocation2 + $0xbc] sm:$0xf]
      %v2652 = vld [vmem:[#allocation2 + $0xcc] sm:$0xf]
      %v2653 = vld [vmem:[#allocation2 + $0xdc] sm:$0xf]
      %v2654 = vld [vmem:[#allocation2 + $0xec] sm:$0xf]
      %v2655 = vld [vmem:[#allocation2 + $0xfc] sm:$0xf]
      %v2672 = vunpack.c.l.b16 %v2640
      %v2673 = vunpack.c.l.b16 %v2641
      %v2674 = vunpack.c.l.b16 %v2642
      %v2675 = vunpack.c.l.b16 %v2643
      %v2676 = vunpack.c.l.b16 %v2644
      %v2677 = vunpack.c.l.b16 %v2645
      %v2678 = vunpack.c.l.b16 %v2646
      %v2679 = vunpack.c.l.b16 %v2647
      %v2680 = vunpack.c.l.b16 %v2648
      %v2681 = vunpack.c.l.b16 %v2649
      %v2682 = vunpack.c.l.b16 %v2650
      %v2683 = vunpack.c.l.b16 %v2651
      %v2684 = vunpack.c.l.b16 %v2652
      %v2685 = vunpack.c.l.b16 %v2653
      %v2686 = vunpack.c.l.b16 %v2654
      %v2687 = vunpack.c.l.b16 %v2655
      %v2688 = vpack.c.b16 %v2673, %v2672
      %v2689 = vpack.c.b16 %v2675, %v2674
      %v2690 = vpack.c.b16 %v2677, %v2676
      %v2691 = vpack.c.b16 %v2679, %v2678
      %v2692 = vpack.c.b16 %v2681, %v2680
      %v2693 = vpack.c.b16 %v2683, %v2682
      %v2694 = vpack.c.b16 %v2685, %v2684
      %v2695 = vpack.c.b16 %v2687, %v2686
      %2704 = vmatpush.bf16.msra.mxu0 %v2695
      %2705 = vmatpush.bf16.msra.mxu0 %v2694
      %2706 = vmatpush.bf16.msra.mxu0 %v2693
      %2707 = vmatpush.bf16.msra.mxu0 %v2692
      %2708 = vmatpush.bf16.msra.mxu0 %v2691
      %2709 = vmatpush.bf16.msra.mxu0 %v2690
      %2710 = vmatpush.bf16.msra.mxu0 %v2689
      %2711 = vmatpush.bf16.msra.mxu0 %v2688
      %2712 = vmatmul.bf16.gmra.mxu0 %v2358
      %v2713 = vpop.f32.mrf.mxu0
      %v2714 = vadd.f32 0.0, %v2713
      %v2715 = vpop.f32.mrf.mxu0
      %2716 = vdwg.mxu0
      %v2717 = vunpack.c.l.bf16 %v2639
      %v2718 = vadd.f32 %v2717, %v2714
      %v2719 = vxor.u32 %v2718, 2147483648
      %v2720 = vmul.f32 %v2719, 1.442695
      %v2721 = vpow.pop %v2720
      %v2722 = vadd.f32 %v2721, 1.0
      %v2723 = vrcp.pop %v2722
      %v2724 = vmul.f32 %v2722, %v2723
      %v2725 = vsub.f32 1.0, %v2724
      %v2726 = vmul.f32 %v2723, %v2725
      %v2727 = vadd.f32 %v2723, %v2726
      %vm2728 = vweird.f32 %v2722
      %vm2729 = vweird.f32 %v2723
      %vm2730 = vmor %vm2728, %vm2729
      %v2731 = vsel %vm2730, %v2723, %v2727
      %v2732 = vand.u32 2147483647, %v2722
      %vm2733 = vcmp.eq.f32.partialorder %v2732, 8.507059e+37
      %v2734 = vand.u32 %v2722, 2147483648
      %v2735 = vor.u32 1.1754944e-38, %v2734
      %v2736 = vsel %vm2733, %v2735, %v2731
      %v2737 = vmul.f32 1.0, %v2736
      %v2738 = vmul.f32 %v2557, %v2354
      %v2739 = vmul.f32 %v2458, %v2638
      %v2740 = vadd.f32 %v2738, %v2739
      %v2741 = vtanh.pop %v2740
      %v2742 = vmul.f32 %v2737, %v2741
      %s2743 = sadd.s32 %s754, 5
      %v2744 = vstv %s2743
      %vm2745 = vcmp.lt.s32.totalorder %v2744, %v367
      %v2746 = vsel %vm2745, 1, 0
      %2747 = vset.pattern.permute.xlu0 0
      %2748 = vperm.xlu0 %2747, %v2746
      %v2749 = vpop.permute.xlu0 %2748
      %vm2750 = vcmp.eq.s32.totalorder %v2749, 1
      %v2751 = vsel %vm2750, %v2742, %v2353
      %v2752 = vsel %vm2750, %v2740, %v2354
      %v2753 = vsel %vm2750, %v2742, 0.0
      %s2754 = scalar_lea.vmem %s267, 40
      %2755 = vst [vmem:[%s2754] sm:$0xff] %v2753
      %v2756 = vpack.c.bf16 %v2751, %v2751
      %s2757 = scalar_lea.vmem %s258, 96
      %v2758 = vld [vmem:[%s2757] sm:$0xf]
      %v2759 = vld [vmem:[#allocation2] sm:$0xf]
      %v2760 = vld [vmem:[#allocation2 + $0x10] sm:$0xf]
      %v2761 = vld [vmem:[#allocation2 + $0x20] sm:$0xf]
      %v2762 = vld [vmem:[#allocation2 + $0x30] sm:$0xf]
      %v2763 = vld [vmem:[#allocation2 + $0x40] sm:$0xf]
      %v2764 = vld [vmem:[#allocation2 + $0x50] sm:$0xf]
      %v2765 = vld [vmem:[#allocation2 + $0x60] sm:$0xf]
      %v2766 = vld [vmem:[#allocation2 + $0x70] sm:$0xf]
      %v2767 = vld [vmem:[#allocation2 + $0x80] sm:$0xf]
      %v2768 = vld [vmem:[#allocation2 + $0x90] sm:$0xf]
      %v2769 = vld [vmem:[#allocation2 + $0xa0] sm:$0xf]
      %v2770 = vld [vmem:[#allocation2 + $0xb0] sm:$0xf]
      %v2771 = vld [vmem:[#allocation2 + $0xc0] sm:$0xf]
      %v2772 = vld [vmem:[#allocation2 + $0xd0] sm:$0xf]
      %v2773 = vld [vmem:[#allocation2 + $0xe0] sm:$0xf]
      %v2774 = vld [vmem:[#allocation2 + $0xf0] sm:$0xf]
      %v2791 = vunpack.c.l.b16 %v2759
      %v2792 = vunpack.c.l.b16 %v2760
      %v2793 = vunpack.c.l.b16 %v2761
      %v2794 = vunpack.c.l.b16 %v2762
      %v2795 = vunpack.c.l.b16 %v2763
      %v2796 = vunpack.c.l.b16 %v2764
      %v2797 = vunpack.c.l.b16 %v2765
      %v2798 = vunpack.c.l.b16 %v2766
      %v2799 = vunpack.c.l.b16 %v2767
      %v2800 = vunpack.c.l.b16 %v2768
      %v2801 = vunpack.c.l.b16 %v2769
      %v2802 = vunpack.c.l.b16 %v2770
      %v2803 = vunpack.c.l.b16 %v2771
      %v2804 = vunpack.c.l.b16 %v2772
      %v2805 = vunpack.c.l.b16 %v2773
      %v2806 = vunpack.c.l.b16 %v2774
      %v2807 = vpack.c.b16 %v2792, %v2791
      %v2808 = vpack.c.b16 %v2794, %v2793
      %v2809 = vpack.c.b16 %v2796, %v2795
      %v2810 = vpack.c.b16 %v2798, %v2797
      %v2811 = vpack.c.b16 %v2800, %v2799
      %v2812 = vpack.c.b16 %v2802, %v2801
      %v2813 = vpack.c.b16 %v2804, %v2803
      %v2814 = vpack.c.b16 %v2806, %v2805
      %2823 = vmatpush.bf16.msra.mxu0 %v2814
      %2824 = vmatpush.bf16.msra.mxu0 %v2813
      %2825 = vmatpush.bf16.msra.mxu0 %v2812
      %2826 = vmatpush.bf16.msra.mxu0 %v2811
      %2827 = vmatpush.bf16.msra.mxu0 %v2810
      %2828 = vmatpush.bf16.msra.mxu0 %v2809
      %2829 = vmatpush.bf16.msra.mxu0 %v2808
      %2830 = vmatpush.bf16.msra.mxu0 %v2807
      %2831 = vmatmul.bf16.gmra.mxu0 %v2756
      %v2832 = vpop.f32.mrf.mxu0
      %v2833 = vadd.f32 0.0, %v2832
      %v2834 = vpop.f32.mrf.mxu0
      %2835 = vdwg.mxu0
      %v2836 = vunpack.c.l.bf16 %v2758
      %v2837 = vadd.f32 %v2836, %v2833
      %v2838 = vxor.u32 %v2837, 2147483648
      %v2839 = vmul.f32 %v2838, 1.442695
      %v2840 = vpow.pop %v2839
      %v2841 = vadd.f32 %v2840, 1.0
      %v2842 = vrcp.pop %v2841
      %v2843 = vmul.f32 %v2841, %v2842
      %v2844 = vsub.f32 1.0, %v2843
      %v2845 = vmul.f32 %v2842, %v2844
      %v2846 = vadd.f32 %v2842, %v2845
      %vm2847 = vweird.f32 %v2841
      %vm2848 = vweird.f32 %v2842
      %vm2849 = vmor %vm2847, %vm2848
      %v2850 = vsel %vm2849, %v2842, %v2846
      %v2851 = vand.u32 2147483647, %v2841
      %vm2852 = vcmp.eq.f32.partialorder %v2851, 8.507059e+37
      %v2853 = vand.u32 %v2841, 2147483648
      %v2854 = vor.u32 1.1754944e-38, %v2853
      %v2855 = vsel %vm2852, %v2854, %v2850
      %v2856 = vmul.f32 1.0, %v2855
      %v2857 = vld [vmem:[%s2757 + $0x4] sm:$0xf]
      %v2858 = vld [vmem:[#allocation2 + $0x4] sm:$0xf]
      %v2859 = vld [vmem:[#allocation2 + $0x14] sm:$0xf]
      %v2860 = vld [vmem:[#allocation2 + $0x24] sm:$0xf]
      %v2861 = vld [vmem:[#allocation2 + $0x34] sm:$0xf]
      %v2862 = vld [vmem:[#allocation2 + $0x44] sm:$0xf]
      %v2863 = vld [vmem:[#allocation2 + $0x54] sm:$0xf]
      %v2864 = vld [vmem:[#allocation2 + $0x64] sm:$0xf]
      %v2865 = vld [vmem:[#allocation2 + $0x74] sm:$0xf]
      %v2866 = vld [vmem:[#allocation2 + $0x84] sm:$0xf]
      %v2867 = vld [vmem:[#allocation2 + $0x94] sm:$0xf]
      %v2868 = vld [vmem:[#allocation2 + $0xa4] sm:$0xf]
      %v2869 = vld [vmem:[#allocation2 + $0xb4] sm:$0xf]
      %v2870 = vld [vmem:[#allocation2 + $0xc4] sm:$0xf]
      %v2871 = vld [vmem:[#allocation2 + $0xd4] sm:$0xf]
      %v2872 = vld [vmem:[#allocation2 + $0xe4] sm:$0xf]
      %v2873 = vld [vmem:[#allocation2 + $0xf4] sm:$0xf]
      %v2890 = vunpack.c.l.b16 %v2858
      %v2891 = vunpack.c.l.b16 %v2859
      %v2892 = vunpack.c.l.b16 %v2860
      %v2893 = vunpack.c.l.b16 %v2861
      %v2894 = vunpack.c.l.b16 %v2862
      %v2895 = vunpack.c.l.b16 %v2863
      %v2896 = vunpack.c.l.b16 %v2864
      %v2897 = vunpack.c.l.b16 %v2865
      %v2898 = vunpack.c.l.b16 %v2866
      %v2899 = vunpack.c.l.b16 %v2867
      %v2900 = vunpack.c.l.b16 %v2868
      %v2901 = vunpack.c.l.b16 %v2869
      %v2902 = vunpack.c.l.b16 %v2870
      %v2903 = vunpack.c.l.b16 %v2871
      %v2904 = vunpack.c.l.b16 %v2872
      %v2905 = vunpack.c.l.b16 %v2873
      %v2906 = vpack.c.b16 %v2891, %v2890
      %v2907 = vpack.c.b16 %v2893, %v2892
      %v2908 = vpack.c.b16 %v2895, %v2894
      %v2909 = vpack.c.b16 %v2897, %v2896
      %v2910 = vpack.c.b16 %v2899, %v2898
      %v2911 = vpack.c.b16 %v2901, %v2900
      %v2912 = vpack.c.b16 %v2903, %v2902
      %v2913 = vpack.c.b16 %v2905, %v2904
      %2922 = vmatpush.bf16.msra.mxu0 %v2913
      %2923 = vmatpush.bf16.msra.mxu0 %v2912
      %2924 = vmatpush.bf16.msra.mxu0 %v2911
      %2925 = vmatpush.bf16.msra.mxu0 %v2910
      %2926 = vmatpush.bf16.msra.mxu0 %v2909
      %2927 = vmatpush.bf16.msra.mxu0 %v2908
      %2928 = vmatpush.bf16.msra.mxu0 %v2907
      %2929 = vmatpush.bf16.msra.mxu0 %v2906
      %2930 = vmatmul.bf16.gmra.mxu0 %v2756
      %v2931 = vpop.f32.mrf.mxu0
      %v2932 = vadd.f32 0.0, %v2931
      %v2933 = vpop.f32.mrf.mxu0
      %2934 = vdwg.mxu0
      %v2935 = vunpack.c.l.bf16 %v2857
      %v2936 = vadd.f32 %v2935, %v2932
      %v2937 = vxor.u32 %v2936, 2147483648
      %v2938 = vmul.f32 %v2937, 1.442695
      %v2939 = vpow.pop %v2938
      %v2940 = vadd.f32 %v2939, 1.0
      %v2941 = vrcp.pop %v2940
      %v2942 = vmul.f32 %v2940, %v2941
      %v2943 = vsub.f32 1.0, %v2942
      %v2944 = vmul.f32 %v2941, %v2943
      %v2945 = vadd.f32 %v2941, %v2944
      %vm2946 = vweird.f32 %v2940
      %vm2947 = vweird.f32 %v2941
      %vm2948 = vmor %vm2946, %vm2947
      %v2949 = vsel %vm2948, %v2941, %v2945
      %v2950 = vand.u32 2147483647, %v2940
      %vm2951 = vcmp.eq.f32.partialorder %v2950, 8.507059e+37
      %v2952 = vand.u32 %v2940, 2147483648
      %v2953 = vor.u32 1.1754944e-38, %v2952
      %v2954 = vsel %vm2951, %v2953, %v2949
      %v2955 = vmul.f32 1.0, %v2954
      %v2956 = vld [vmem:[%s2757 + $0x8] sm:$0xf]
      %v2957 = vld [vmem:[#allocation2 + $0x8] sm:$0xf]
      %v2958 = vld [vmem:[#allocation2 + $0x18] sm:$0xf]
      %v2959 = vld [vmem:[#allocation2 + $0x28] sm:$0xf]
      %v2960 = vld [vmem:[#allocation2 + $0x38] sm:$0xf]
      %v2961 = vld [vmem:[#allocation2 + $0x48] sm:$0xf]
      %v2962 = vld [vmem:[#allocation2 + $0x58] sm:$0xf]
      %v2963 = vld [vmem:[#allocation2 + $0x68] sm:$0xf]
      %v2964 = vld [vmem:[#allocation2 + $0x78] sm:$0xf]
      %v2965 = vld [vmem:[#allocation2 + $0x88] sm:$0xf]
      %v2966 = vld [vmem:[#allocation2 + $0x98] sm:$0xf]
      %v2967 = vld [vmem:[#allocation2 + $0xa8] sm:$0xf]
      %v2968 = vld [vmem:[#allocation2 + $0xb8] sm:$0xf]
      %v2969 = vld [vmem:[#allocation2 + $0xc8] sm:$0xf]
      %v2970 = vld [vmem:[#allocation2 + $0xd8] sm:$0xf]
      %v2971 = vld [vmem:[#allocation2 + $0xe8] sm:$0xf]
      %v2972 = vld [vmem:[#allocation2 + $0xf8] sm:$0xf]
      %v2989 = vunpack.c.l.b16 %v2957
      %v2990 = vunpack.c.l.b16 %v2958
      %v2991 = vunpack.c.l.b16 %v2959
      %v2992 = vunpack.c.l.b16 %v2960
      %v2993 = vunpack.c.l.b16 %v2961
      %v2994 = vunpack.c.l.b16 %v2962
      %v2995 = vunpack.c.l.b16 %v2963
      %v2996 = vunpack.c.l.b16 %v2964
      %v2997 = vunpack.c.l.b16 %v2965
      %v2998 = vunpack.c.l.b16 %v2966
      %v2999 = vunpack.c.l.b16 %v2967
      %v3000 = vunpack.c.l.b16 %v2968
      %v3001 = vunpack.c.l.b16 %v2969
      %v3002 = vunpack.c.l.b16 %v2970
      %v3003 = vunpack.c.l.b16 %v2971
      %v3004 = vunpack.c.l.b16 %v2972
      %v3005 = vpack.c.b16 %v2990, %v2989
      %v3006 = vpack.c.b16 %v2992, %v2991
      %v3007 = vpack.c.b16 %v2994, %v2993
      %v3008 = vpack.c.b16 %v2996, %v2995
      %v3009 = vpack.c.b16 %v2998, %v2997
      %v3010 = vpack.c.b16 %v3000, %v2999
      %v3011 = vpack.c.b16 %v3002, %v3001
      %v3012 = vpack.c.b16 %v3004, %v3003
      %3021 = vmatpush.bf16.msra.mxu0 %v3012
      %3022 = vmatpush.bf16.msra.mxu0 %v3011
      %3023 = vmatpush.bf16.msra.mxu0 %v3010
      %3024 = vmatpush.bf16.msra.mxu0 %v3009
      %3025 = vmatpush.bf16.msra.mxu0 %v3008
      %3026 = vmatpush.bf16.msra.mxu0 %v3007
      %3027 = vmatpush.bf16.msra.mxu0 %v3006
      %3028 = vmatpush.bf16.msra.mxu0 %v3005
      %3029 = vmatmul.bf16.gmra.mxu0 %v2756
      %v3030 = vpop.f32.mrf.mxu0
      %v3031 = vadd.f32 0.0, %v3030
      %v3032 = vpop.f32.mrf.mxu0
      %3033 = vdwg.mxu0
      %v3034 = vunpack.c.l.bf16 %v2956
      %v3035 = vadd.f32 %v3034, %v3031
      %v3036 = vtanh.pop %v3035
      %v3037 = vld [vmem:[%s2757 + $0xc] sm:$0xf]
      %v3038 = vld [vmem:[#allocation2 + $0xc] sm:$0xf]
      %v3039 = vld [vmem:[#allocation2 + $0x1c] sm:$0xf]
      %v3040 = vld [vmem:[#allocation2 + $0x2c] sm:$0xf]
      %v3041 = vld [vmem:[#allocation2 + $0x3c] sm:$0xf]
      %v3042 = vld [vmem:[#allocation2 + $0x4c] sm:$0xf]
      %v3043 = vld [vmem:[#allocation2 + $0x5c] sm:$0xf]
      %v3044 = vld [vmem:[#allocation2 + $0x6c] sm:$0xf]
      %v3045 = vld [vmem:[#allocation2 + $0x7c] sm:$0xf]
      %v3046 = vld [vmem:[#allocation2 + $0x8c] sm:$0xf]
      %v3047 = vld [vmem:[#allocation2 + $0x9c] sm:$0xf]
      %v3048 = vld [vmem:[#allocation2 + $0xac] sm:$0xf]
      %v3049 = vld [vmem:[#allocation2 + $0xbc] sm:$0xf]
      %v3050 = vld [vmem:[#allocation2 + $0xcc] sm:$0xf]
      %v3051 = vld [vmem:[#allocation2 + $0xdc] sm:$0xf]
      %v3052 = vld [vmem:[#allocation2 + $0xec] sm:$0xf]
      %v3053 = vld [vmem:[#allocation2 + $0xfc] sm:$0xf]
      %v3070 = vunpack.c.l.b16 %v3038
      %v3071 = vunpack.c.l.b16 %v3039
      %v3072 = vunpack.c.l.b16 %v3040
      %v3073 = vunpack.c.l.b16 %v3041
      %v3074 = vunpack.c.l.b16 %v3042
      %v3075 = vunpack.c.l.b16 %v3043
      %v3076 = vunpack.c.l.b16 %v3044
      %v3077 = vunpack.c.l.b16 %v3045
      %v3078 = vunpack.c.l.b16 %v3046
      %v3079 = vunpack.c.l.b16 %v3047
      %v3080 = vunpack.c.l.b16 %v3048
      %v3081 = vunpack.c.l.b16 %v3049
      %v3082 = vunpack.c.l.b16 %v3050
      %v3083 = vunpack.c.l.b16 %v3051
      %v3084 = vunpack.c.l.b16 %v3052
      %v3085 = vunpack.c.l.b16 %v3053
      %v3086 = vpack.c.b16 %v3071, %v3070
      %v3087 = vpack.c.b16 %v3073, %v3072
      %v3088 = vpack.c.b16 %v3075, %v3074
      %v3089 = vpack.c.b16 %v3077, %v3076
      %v3090 = vpack.c.b16 %v3079, %v3078
      %v3091 = vpack.c.b16 %v3081, %v3080
      %v3092 = vpack.c.b16 %v3083, %v3082
      %v3093 = vpack.c.b16 %v3085, %v3084
      %3102 = vmatpush.bf16.msra.mxu0 %v3093
      %3103 = vmatpush.bf16.msra.mxu0 %v3092
      %3104 = vmatpush.bf16.msra.mxu0 %v3091
      %3105 = vmatpush.bf16.msra.mxu0 %v3090
      %3106 = vmatpush.bf16.msra.mxu0 %v3089
      %3107 = vmatpush.bf16.msra.mxu0 %v3088
      %3108 = vmatpush.bf16.msra.mxu0 %v3087
      %3109 = vmatpush.bf16.msra.mxu0 %v3086
      %3110 = vmatmul.bf16.gmra.mxu0 %v2756
      %v3111 = vpop.f32.mrf.mxu0
      %v3112 = vadd.f32 0.0, %v3111
      %v3113 = vpop.f32.mrf.mxu0
      %3114 = vdwg.mxu0
      %v3115 = vunpack.c.l.bf16 %v3037
      %v3116 = vadd.f32 %v3115, %v3112
      %v3117 = vxor.u32 %v3116, 2147483648
      %v3118 = vmul.f32 %v3117, 1.442695
      %v3119 = vpow.pop %v3118
      %v3120 = vadd.f32 %v3119, 1.0
      %v3121 = vrcp.pop %v3120
      %v3122 = vmul.f32 %v3120, %v3121
      %v3123 = vsub.f32 1.0, %v3122
      %v3124 = vmul.f32 %v3121, %v3123
      %v3125 = vadd.f32 %v3121, %v3124
      %vm3126 = vweird.f32 %v3120
      %vm3127 = vweird.f32 %v3121
      %vm3128 = vmor %vm3126, %vm3127
      %v3129 = vsel %vm3128, %v3121, %v3125
      %v3130 = vand.u32 2147483647, %v3120
      %vm3131 = vcmp.eq.f32.partialorder %v3130, 8.507059e+37
      %v3132 = vand.u32 %v3120, 2147483648
      %v3133 = vor.u32 1.1754944e-38, %v3132
      %v3134 = vsel %vm3131, %v3133, %v3129
      %v3135 = vmul.f32 1.0, %v3134
      %v3136 = vmul.f32 %v2955, %v2752
      %v3137 = vmul.f32 %v2856, %v3036
      %v3138 = vadd.f32 %v3136, %v3137
      %v3139 = vtanh.pop %v3138
      %v3140 = vmul.f32 %v3135, %v3139
      %s3141 = sadd.s32 %s754, 6
      %v3142 = vstv %s3141
      %vm3143 = vcmp.lt.s32.totalorder %v3142, %v367
      %v3144 = vsel %vm3143, 1, 0
      %3145 = vset.pattern.permute.xlu0 0
      %3146 = vperm.xlu0 %3145, %v3144
      %v3147 = vpop.permute.xlu0 %3146
      %vm3148 = vcmp.eq.s32.totalorder %v3147, 1
      %v3149 = vsel %vm3148, %v3140, %v2751
      %v3150 = vsel %vm3148, %v3138, %v2752
      %v3151 = vsel %vm3148, %v3140, 0.0
      %s3152 = scalar_lea.vmem %s267, 48
      %3153 = vst [vmem:[%s3152] sm:$0xff] %v3151
      %v3154 = vpack.c.bf16 %v3149, %v3149
      %s3155 = scalar_lea.vmem %s258, 112
      %v3156 = vld [vmem:[%s3155] sm:$0xf]
      %v3157 = vld [vmem:[#allocation2] sm:$0xf]
      %v3158 = vld [vmem:[#allocation2 + $0x10] sm:$0xf]
      %v3159 = vld [vmem:[#allocation2 + $0x20] sm:$0xf]
      %v3160 = vld [vmem:[#allocation2 + $0x30] sm:$0xf]
      %v3161 = vld [vmem:[#allocation2 + $0x40] sm:$0xf]
      %v3162 = vld [vmem:[#allocation2 + $0x50] sm:$0xf]
      %v3163 = vld [vmem:[#allocation2 + $0x60] sm:$0xf]
      %v3164 = vld [vmem:[#allocation2 + $0x70] sm:$0xf]
      %v3165 = vld [vmem:[#allocation2 + $0x80] sm:$0xf]
      %v3166 = vld [vmem:[#allocation2 + $0x90] sm:$0xf]
      %v3167 = vld [vmem:[#allocation2 + $0xa0] sm:$0xf]
      %v3168 = vld [vmem:[#allocation2 + $0xb0] sm:$0xf]
      %v3169 = vld [vmem:[#allocation2 + $0xc0] sm:$0xf]
      %v3170 = vld [vmem:[#allocation2 + $0xd0] sm:$0xf]
      %v3171 = vld [vmem:[#allocation2 + $0xe0] sm:$0xf]
      %v3172 = vld [vmem:[#allocation2 + $0xf0] sm:$0xf]
      %v3189 = vunpack.c.l.b16 %v3157
      %v3190 = vunpack.c.l.b16 %v3158
      %v3191 = vunpack.c.l.b16 %v3159
      %v3192 = vunpack.c.l.b16 %v3160
      %v3193 = vunpack.c.l.b16 %v3161
      %v3194 = vunpack.c.l.b16 %v3162
      %v3195 = vunpack.c.l.b16 %v3163
      %v3196 = vunpack.c.l.b16 %v3164
      %v3197 = vunpack.c.l.b16 %v3165
      %v3198 = vunpack.c.l.b16 %v3166
      %v3199 = vunpack.c.l.b16 %v3167
      %v3200 = vunpack.c.l.b16 %v3168
      %v3201 = vunpack.c.l.b16 %v3169
      %v3202 = vunpack.c.l.b16 %v3170
      %v3203 = vunpack.c.l.b16 %v3171
      %v3204 = vunpack.c.l.b16 %v3172
      %v3205 = vpack.c.b16 %v3190, %v3189
      %v3206 = vpack.c.b16 %v3192, %v3191
      %v3207 = vpack.c.b16 %v3194, %v3193
      %v3208 = vpack.c.b16 %v3196, %v3195
      %v3209 = vpack.c.b16 %v3198, %v3197
      %v3210 = vpack.c.b16 %v3200, %v3199
      %v3211 = vpack.c.b16 %v3202, %v3201
      %v3212 = vpack.c.b16 %v3204, %v3203
      %3221 = vmatpush.bf16.msra.mxu0 %v3212
      %3222 = vmatpush.bf16.msra.mxu0 %v3211
      %3223 = vmatpush.bf16.msra.mxu0 %v3210
      %3224 = vmatpush.bf16.msra.mxu0 %v3209
      %3225 = vmatpush.bf16.msra.mxu0 %v3208
      %3226 = vmatpush.bf16.msra.mxu0 %v3207
      %3227 = vmatpush.bf16.msra.mxu0 %v3206
      %3228 = vmatpush.bf16.msra.mxu0 %v3205
      %3229 = vmatmul.bf16.gmra.mxu0 %v3154
      %v3230 = vpop.f32.mrf.mxu0
      %v3231 = vadd.f32 0.0, %v3230
      %v3232 = vpop.f32.mrf.mxu0
      %3233 = vdwg.mxu0
      %v3234 = vunpack.c.l.bf16 %v3156
      %v3235 = vadd.f32 %v3234, %v3231
      %v3236 = vxor.u32 %v3235, 2147483648
      %v3237 = vmul.f32 %v3236, 1.442695
      %v3238 = vpow.pop %v3237
      %v3239 = vadd.f32 %v3238, 1.0
      %v3240 = vrcp.pop %v3239
      %v3241 = vmul.f32 %v3239, %v3240
      %v3242 = vsub.f32 1.0, %v3241
      %v3243 = vmul.f32 %v3240, %v3242
      %v3244 = vadd.f32 %v3240, %v3243
      %vm3245 = vweird.f32 %v3239
      %vm3246 = vweird.f32 %v3240
      %vm3247 = vmor %vm3245, %vm3246
      %v3248 = vsel %vm3247, %v3240, %v3244
      %v3249 = vand.u32 2147483647, %v3239
      %vm3250 = vcmp.eq.f32.partialorder %v3249, 8.507059e+37
      %v3251 = vand.u32 %v3239, 2147483648
      %v3252 = vor.u32 1.1754944e-38, %v3251
      %v3253 = vsel %vm3250, %v3252, %v3248
      %v3254 = vmul.f32 1.0, %v3253
      %v3255 = vld [vmem:[%s3155 + $0x4] sm:$0xf]
      %v3256 = vld [vmem:[#allocation2 + $0x4] sm:$0xf]
      %v3257 = vld [vmem:[#allocation2 + $0x14] sm:$0xf]
      %v3258 = vld [vmem:[#allocation2 + $0x24] sm:$0xf]
      %v3259 = vld [vmem:[#allocation2 + $0x34] sm:$0xf]
      %v3260 = vld [vmem:[#allocation2 + $0x44] sm:$0xf]
      %v3261 = vld [vmem:[#allocation2 + $0x54] sm:$0xf]
      %v3262 = vld [vmem:[#allocation2 + $0x64] sm:$0xf]
      %v3263 = vld [vmem:[#allocation2 + $0x74] sm:$0xf]
      %v3264 = vld [vmem:[#allocation2 + $0x84] sm:$0xf]
      %v3265 = vld [vmem:[#allocation2 + $0x94] sm:$0xf]
      %v3266 = vld [vmem:[#allocation2 + $0xa4] sm:$0xf]
      %v3267 = vld [vmem:[#allocation2 + $0xb4] sm:$0xf]
      %v3268 = vld [vmem:[#allocation2 + $0xc4] sm:$0xf]
      %v3269 = vld [vmem:[#allocation2 + $0xd4] sm:$0xf]
      %v3270 = vld [vmem:[#allocation2 + $0xe4] sm:$0xf]
      %v3271 = vld [vmem:[#allocation2 + $0xf4] sm:$0xf]
      %v3288 = vunpack.c.l.b16 %v3256
      %v3289 = vunpack.c.l.b16 %v3257
      %v3290 = vunpack.c.l.b16 %v3258
      %v3291 = vunpack.c.l.b16 %v3259
      %v3292 = vunpack.c.l.b16 %v3260
      %v3293 = vunpack.c.l.b16 %v3261
      %v3294 = vunpack.c.l.b16 %v3262
      %v3295 = vunpack.c.l.b16 %v3263
      %v3296 = vunpack.c.l.b16 %v3264
      %v3297 = vunpack.c.l.b16 %v3265
      %v3298 = vunpack.c.l.b16 %v3266
      %v3299 = vunpack.c.l.b16 %v3267
      %v3300 = vunpack.c.l.b16 %v3268
      %v3301 = vunpack.c.l.b16 %v3269
      %v3302 = vunpack.c.l.b16 %v3270
      %v3303 = vunpack.c.l.b16 %v3271
      %v3304 = vpack.c.b16 %v3289, %v3288
      %v3305 = vpack.c.b16 %v3291, %v3290
      %v3306 = vpack.c.b16 %v3293, %v3292
      %v3307 = vpack.c.b16 %v3295, %v3294
      %v3308 = vpack.c.b16 %v3297, %v3296
      %v3309 = vpack.c.b16 %v3299, %v3298
      %v3310 = vpack.c.b16 %v3301, %v3300
      %v3311 = vpack.c.b16 %v3303, %v3302
      %3320 = vmatpush.bf16.msra.mxu0 %v3311
      %3321 = vmatpush.bf16.msra.mxu0 %v3310
      %3322 = vmatpush.bf16.msra.mxu0 %v3309
      %3323 = vmatpush.bf16.msra.mxu0 %v3308
      %3324 = vmatpush.bf16.msra.mxu0 %v3307
      %3325 = vmatpush.bf16.msra.mxu0 %v3306
      %3326 = vmatpush.bf16.msra.mxu0 %v3305
      %3327 = vmatpush.bf16.msra.mxu0 %v3304
      %3328 = vmatmul.bf16.gmra.mxu0 %v3154
      %v3329 = vpop.f32.mrf.mxu0
      %v3330 = vadd.f32 0.0, %v3329
      %v3331 = vpop.f32.mrf.mxu0
      %3332 = vdwg.mxu0
      %v3333 = vunpack.c.l.bf16 %v3255
      %v3334 = vadd.f32 %v3333, %v3330
      %v3335 = vxor.u32 %v3334, 2147483648
      %v3336 = vmul.f32 %v3335, 1.442695
      %v3337 = vpow.pop %v3336
      %v3338 = vadd.f32 %v3337, 1.0
      %v3339 = vrcp.pop %v3338
      %v3340 = vmul.f32 %v3338, %v3339
      %v3341 = vsub.f32 1.0, %v3340
      %v3342 = vmul.f32 %v3339, %v3341
      %v3343 = vadd.f32 %v3339, %v3342
      %vm3344 = vweird.f32 %v3338
      %vm3345 = vweird.f32 %v3339
      %vm3346 = vmor %vm3344, %vm3345
      %v3347 = vsel %vm3346, %v3339, %v3343
      %v3348 = vand.u32 2147483647, %v3338
      %vm3349 = vcmp.eq.f32.partialorder %v3348, 8.507059e+37
      %v3350 = vand.u32 %v3338, 2147483648
      %v3351 = vor.u32 1.1754944e-38, %v3350
      %v3352 = vsel %vm3349, %v3351, %v3347
      %v3353 = vmul.f32 1.0, %v3352
      %v3354 = vld [vmem:[%s3155 + $0x8] sm:$0xf]
      %v3355 = vld [vmem:[#allocation2 + $0x8] sm:$0xf]
      %v3356 = vld [vmem:[#allocation2 + $0x18] sm:$0xf]
      %v3357 = vld [vmem:[#allocation2 + $0x28] sm:$0xf]
      %v3358 = vld [vmem:[#allocation2 + $0x38] sm:$0xf]
      %v3359 = vld [vmem:[#allocation2 + $0x48] sm:$0xf]
      %v3360 = vld [vmem:[#allocation2 + $0x58] sm:$0xf]
      %v3361 = vld [vmem:[#allocation2 + $0x68] sm:$0xf]
      %v3362 = vld [vmem:[#allocation2 + $0x78] sm:$0xf]
      %v3363 = vld [vmem:[#allocation2 + $0x88] sm:$0xf]
      %v3364 = vld [vmem:[#allocation2 + $0x98] sm:$0xf]
      %v3365 = vld [vmem:[#allocation2 + $0xa8] sm:$0xf]
      %v3366 = vld [vmem:[#allocation2 + $0xb8] sm:$0xf]
      %v3367 = vld [vmem:[#allocation2 + $0xc8] sm:$0xf]
      %v3368 = vld [vmem:[#allocation2 + $0xd8] sm:$0xf]
      %v3369 = vld [vmem:[#allocation2 + $0xe8] sm:$0xf]
      %v3370 = vld [vmem:[#allocation2 + $0xf8] sm:$0xf]
      %v3387 = vunpack.c.l.b16 %v3355
      %v3388 = vunpack.c.l.b16 %v3356
      %v3389 = vunpack.c.l.b16 %v3357
      %v3390 = vunpack.c.l.b16 %v3358
      %v3391 = vunpack.c.l.b16 %v3359
      %v3392 = vunpack.c.l.b16 %v3360
      %v3393 = vunpack.c.l.b16 %v3361
      %v3394 = vunpack.c.l.b16 %v3362
      %v3395 = vunpack.c.l.b16 %v3363
      %v3396 = vunpack.c.l.b16 %v3364
      %v3397 = vunpack.c.l.b16 %v3365
      %v3398 = vunpack.c.l.b16 %v3366
      %v3399 = vunpack.c.l.b16 %v3367
      %v3400 = vunpack.c.l.b16 %v3368
      %v3401 = vunpack.c.l.b16 %v3369
      %v3402 = vunpack.c.l.b16 %v3370
      %v3403 = vpack.c.b16 %v3388, %v3387
      %v3404 = vpack.c.b16 %v3390, %v3389
      %v3405 = vpack.c.b16 %v3392, %v3391
      %v3406 = vpack.c.b16 %v3394, %v3393
      %v3407 = vpack.c.b16 %v3396, %v3395
      %v3408 = vpack.c.b16 %v3398, %v3397
      %v3409 = vpack.c.b16 %v3400, %v3399
      %v3410 = vpack.c.b16 %v3402, %v3401
      %3419 = vmatpush.bf16.msra.mxu0 %v3410
      %3420 = vmatpush.bf16.msra.mxu0 %v3409
      %3421 = vmatpush.bf16.msra.mxu0 %v3408
      %3422 = vmatpush.bf16.msra.mxu0 %v3407
      %3423 = vmatpush.bf16.msra.mxu0 %v3406
      %3424 = vmatpush.bf16.msra.mxu0 %v3405
      %3425 = vmatpush.bf16.msra.mxu0 %v3404
      %3426 = vmatpush.bf16.msra.mxu0 %v3403
      %3427 = vmatmul.bf16.gmra.mxu0 %v3154
      %v3428 = vpop.f32.mrf.mxu0
      %v3429 = vadd.f32 0.0, %v3428
      %v3430 = vpop.f32.mrf.mxu0
      %3431 = vdwg.mxu0
      %v3432 = vunpack.c.l.bf16 %v3354
      %v3433 = vadd.f32 %v3432, %v3429
      %v3434 = vtanh.pop %v3433
      %v3435 = vld [vmem:[%s3155 + $0xc] sm:$0xf]
      %v3436 = vld [vmem:[#allocation2 + $0xc] sm:$0xf]
      %v3437 = vld [vmem:[#allocation2 + $0x1c] sm:$0xf]
      %v3438 = vld [vmem:[#allocation2 + $0x2c] sm:$0xf]
      %v3439 = vld [vmem:[#allocation2 + $0x3c] sm:$0xf]
      %v3440 = vld [vmem:[#allocation2 + $0x4c] sm:$0xf]
      %v3441 = vld [vmem:[#allocation2 + $0x5c] sm:$0xf]
      %v3442 = vld [vmem:[#allocation2 + $0x6c] sm:$0xf]
      %v3443 = vld [vmem:[#allocation2 + $0x7c] sm:$0xf]
      %v3444 = vld [vmem:[#allocation2 + $0x8c] sm:$0xf]
      %v3445 = vld [vmem:[#allocation2 + $0x9c] sm:$0xf]
      %v3446 = vld [vmem:[#allocation2 + $0xac] sm:$0xf]
      %v3447 = vld [vmem:[#allocation2 + $0xbc] sm:$0xf]
      %v3448 = vld [vmem:[#allocation2 + $0xcc] sm:$0xf]
      %v3449 = vld [vmem:[#allocation2 + $0xdc] sm:$0xf]
      %v3450 = vld [vmem:[#allocation2 + $0xec] sm:$0xf]
      %v3451 = vld [vmem:[#allocation2 + $0xfc] sm:$0xf]
      %v3468 = vunpack.c.l.b16 %v3436
      %v3469 = vunpack.c.l.b16 %v3437
      %v3470 = vunpack.c.l.b16 %v3438
      %v3471 = vunpack.c.l.b16 %v3439
      %v3472 = vunpack.c.l.b16 %v3440
      %v3473 = vunpack.c.l.b16 %v3441
      %v3474 = vunpack.c.l.b16 %v3442
      %v3475 = vunpack.c.l.b16 %v3443
      %v3476 = vunpack.c.l.b16 %v3444
      %v3477 = vunpack.c.l.b16 %v3445
      %v3478 = vunpack.c.l.b16 %v3446
      %v3479 = vunpack.c.l.b16 %v3447
      %v3480 = vunpack.c.l.b16 %v3448
      %v3481 = vunpack.c.l.b16 %v3449
      %v3482 = vunpack.c.l.b16 %v3450
      %v3483 = vunpack.c.l.b16 %v3451
      %v3484 = vpack.c.b16 %v3469, %v3468
      %v3485 = vpack.c.b16 %v3471, %v3470
      %v3486 = vpack.c.b16 %v3473, %v3472
      %v3487 = vpack.c.b16 %v3475, %v3474
      %v3488 = vpack.c.b16 %v3477, %v3476
      %v3489 = vpack.c.b16 %v3479, %v3478
      %v3490 = vpack.c.b16 %v3481, %v3480
      %v3491 = vpack.c.b16 %v3483, %v3482
      %3500 = vmatpush.bf16.msra.mxu0 %v3491
      %3501 = vmatpush.bf16.msra.mxu0 %v3490
      %3502 = vmatpush.bf16.msra.mxu0 %v3489
      %3503 = vmatpush.bf16.msra.mxu0 %v3488
      %3504 = vmatpush.bf16.msra.mxu0 %v3487
      %3505 = vmatpush.bf16.msra.mxu0 %v3486
      %3506 = vmatpush.bf16.msra.mxu0 %v3485
      %3507 = vmatpush.bf16.msra.mxu0 %v3484
      %3508 = vmatmul.bf16.gmra.mxu0 %v3154
      %v3509 = vpop.f32.mrf.mxu0
      %v3510 = vadd.f32 0.0, %v3509
      %v3511 = vpop.f32.mrf.mxu0
      %3512 = vdwg.mxu0
      %v3513 = vunpack.c.l.bf16 %v3435
      %v3514 = vadd.f32 %v3513, %v3510
      %v3515 = vxor.u32 %v3514, 2147483648
      %v3516 = vmul.f32 %v3515, 1.442695
      %v3517 = vpow.pop %v3516
      %v3518 = vadd.f32 %v3517, 1.0
      %v3519 = vrcp.pop %v3518
      %v3520 = vmul.f32 %v3518, %v3519
      %v3521 = vsub.f32 1.0, %v3520
      %v3522 = vmul.f32 %v3519, %v3521
      %v3523 = vadd.f32 %v3519, %v3522
      %vm3524 = vweird.f32 %v3518
      %vm3525 = vweird.f32 %v3519
      %vm3526 = vmor %vm3524, %vm3525
      %v3527 = vsel %vm3526, %v3519, %v3523
      %v3528 = vand.u32 2147483647, %v3518
      %vm3529 = vcmp.eq.f32.partialorder %v3528, 8.507059e+37
      %v3530 = vand.u32 %v3518, 2147483648
      %v3531 = vor.u32 1.1754944e-38, %v3530
      %v3532 = vsel %vm3529, %v3531, %v3527
      %v3533 = vmul.f32 1.0, %v3532
      %v3534 = vmul.f32 %v3353, %v3150
      %v3535 = vmul.f32 %v3254, %v3434
      %v3536 = vadd.f32 %v3534, %v3535
      %v3537 = vtanh.pop %v3536
      %v3538 = vmul.f32 %v3533, %v3537
      %s3539 = sadd.s32 %s754, 7
      %v3540 = vstv %s3539
      %vm3541 = vcmp.lt.s32.totalorder %v3540, %v367
      %v3542 = vsel %vm3541, 1, 0
      %3543 = vset.pattern.permute.xlu0 0
      %3544 = vperm.xlu0 %3543, %v3542
      %v3545 = vpop.permute.xlu0 %3544
      %vm3546 = vcmp.eq.s32.totalorder %v3545, 1
      %v3547 = vsel %vm3546, %v3538, %v3149
      %v3548 = vsel %vm3546, %v3536, %v3150
      %v3549 = vsel %vm3546, %v3538, 0.0
      %s3550 = scalar_lea.vmem %s267, 56
      %3551 = vst [vmem:[%s3550] sm:$0xff] %v3549
      %3552 = vst [vmem:[%s272] sm:$0xff] %v3547
      %3553 = vst [vmem:[%s276] sm:$0xff] %v3548
      %s3554 = smul.u32 8, %s22
      %p3555 = scmp.lt.s32.totalorder %s3554, 15
      %s3556 = scalar_select %p3555, %s3554, 15
      %p3557 = scmp.lt.s32.totalorder %s21, 0
      %s3558 = scalar_select %p3557, %s21, 0
      %s3559 = sadd.s32 %s3558, %s3556
      %s3560 = smul.addr %s3559, 8
      %s3561 = scalar_lea.vmem %s3, %s3560
      %p3562 = scmp.lt.s32.totalorder %s21, 0
      %s3563 = scalar_select %p3562, %s21, 0
      %s3564 = smul.addr %s3563, 8
      %s3565 = scalar_lea.vmem %s4, %s3564
      %p3566 = scmp.lt.s32.totalorder %s21, 0
      %s3567 = scalar_select %p3566, %s21, 0
      %s3568 = smul.addr %s3567, 8
      %s3569 = scalar_lea.vmem %s5, %s3568
      // Predicated region
      $region53: #{batch_rnn_forward.1} parent=27 // pred_check
        %p3570 = pneg %p103
      $region54: #{batch_rnn_forward.1} parent=27 // pred_check_branch
        %3572 = sbr.rel (%p3570) target = $region56
      $region55: #{batch_rnn_forward.1} parent=27 // pred_region
        %s3573 = smul.u32 8, %s22
      $region56: #{batch_rnn_forward.1} parent=27 // pred_fallthru
        _
      // Predicated region
      $region57: #{batch_rnn_forward.1} parent=27 // pred_check
        %p3574 = pneg %p129
      $region58: #{batch_rnn_forward.1} parent=27 // pred_check_branch
        %3576 = sbr.rel (%p3574) target = $region60
      $region59: #{batch_rnn_forward.1} parent=27 // pred_region
        _
      $region60: #{batch_rnn_forward.1} parent=27 // pred_fallthru
        _
      // Predicated region
      $region61: #{batch_rnn_forward.1} parent=27 // pred_check
        %p3577 = pneg %p155
      $region62: #{batch_rnn_forward.1} parent=27 // pred_check_branch
        %3579 = sbr.rel (%p3577) target = $region64
      $region63: #{batch_rnn_forward.1} parent=27 // pred_region
        _
      $region64: #{batch_rnn_forward.1} parent=27 // pred_fallthru
        _
      // Predicated region
      $region65: #{batch_rnn_forward.1} parent=27 // pred_check
        %p3580 = pneg %p129
      $region66: #{batch_rnn_forward.1} parent=27 // pred_check_branch
        %3582 = sbr.rel (%p3580) target = $region68
      $region67: #{batch_rnn_forward.1} parent=27 // pred_region
        %p3583 = scmp.lt.s32.totalorder %s21, 0
        %s3584 = scalar_select %p3583, %s21, 0
        %s3585 = smul.addr %s3584, 8
        %s3586 = scalar_lea.vmem %s4, %s3585
      $region68: #{batch_rnn_forward.1} parent=27 // pred_fallthru
        _
      // Predicated region
      $region69: #{batch_rnn_forward.1} parent=27 // pred_check
        %p3587 = pneg %p155
      $region70: #{batch_rnn_forward.1} parent=27 // pred_check_branch
        %3589 = sbr.rel (%p3587) target = $region72
      $region71: #{batch_rnn_forward.1} parent=27 // pred_region
        %p3590 = scmp.lt.s32.totalorder %s21, 0
        %s3591 = scalar_select %p3590, %s21, 0
        %s3592 = smul.addr %s3591, 8
        %s3593 = scalar_lea.vmem %s5, %s3592
      $region72: #{batch_rnn_forward.1} parent=27 // pred_fallthru
        _
    $region28: #{batch_rnn_forward.1} parent=5 // pred_fallthru
      _
    %p3594 = scmp.le.s32.totalorder 2, %s12
    // Predicated region
    $region73: #{batch_rnn_forward.1} parent=5 // pred_check
      %p3595 = pneg %p3594
    $region74: #{batch_rnn_forward.1} parent=5 // pred_check_branch
      %3597 = sbr.rel (%p3595) target = $region76
    $region75: #{batch_rnn_forward.1} parent=5 // pred_region
      %s3598 = ssub.s32 %s12, 2
      // Predicated region
      $region77: #{batch_rnn_forward.1} parent=75 // pred_check
        %p3599 = pneg %p109
      $region78: #{batch_rnn_forward.1} parent=75 // pred_check_branch
        %3601 = sbr.rel (%p3599) target = $region80
      $region79: #{batch_rnn_forward.1} parent=75 // pred_region
        %s3602 = smul.u32 8, %s24
        %p3603 = scmp.lt.s32.totalorder %s3602, 15
        %s3604 = scalar_select %p3603, %s3602, 15
        %p3605 = scmp.lt.s32.totalorder %s23, 0
        %s3606 = scalar_select %p3605, %s23, 0
        %s3607 = sadd.s32 %s3606, %s3604
        %s3608 = smul.addr %s3607, 8
        %s3609 = scalar_lea.vmem %s3, %s3608
      $region80: #{batch_rnn_forward.1} parent=75 // pred_fallthru
        _
    $region76: #{batch_rnn_forward.1} parent=5 // pred_fallthru
      _
  $region6: #{batch_rnn_forward.1} parent=0 // loop_footer
    %s16 = sadd.s32 1, %s12
  $region7: #{batch_rnn_forward.1} parent=0 // loop_footer_branch
    %11 = sbr.rel target = $region3
  $region8: #{batch_rnn_forward.1} parent=0 // loop_exit
    _

</llo_original>
